<compile_context>
chip_gen: v5e
topology: v5e:2x2
jax: 0.10.0
libtpu: 0.0.40
codegen_flags: <defaults>
</compile_context>

<pallas_src>
import functools

import jax
import jax.numpy as jnp
from jax.experimental import pallas as pl
from jax.experimental.pallas import tpu as pltpu

# ------------------------- small whisper-tiny-like dimensions -------------------------
BATCH = 2
T_NEW = 1                      # decoder-with-past consumes one new token per step
D_MODEL = 128
N_HEADS = 2
D_HEAD = D_MODEL // N_HEADS    # 64 (same head dim as real whisper-tiny)
D_FF = 256
N_LAYERS = 4                   # matches WhisperDecoderWithPast(num_layers=4)
VOCAB = 384                    # multiple of 128 -> lane-dense lm_head output
MAX_POS = 64
PAST_LEN = 7                   # past decoder KV length; present length = 8 (sublane aligned)
ENC_LEN = 16                   # cached encoder KV length
LN_EPS = 1e-5
ATTN_SCALE = float(D_HEAD) ** -0.5
BH = BATCH * N_HEADS

_LAYER_PARAM_NAMES = (
    "ln1_g", "ln1_b", "w_qkv", "b_qkv", "wo", "bo",
    "lnx_g", "lnx_b", "wqx", "bqx", "wox", "box",
    "ln2_g", "ln2_b", "w_fc1", "b_fc1", "w_fc2", "b_fc2",
)


# ----------------------------- in-kernel math helpers -------------------------------
def _erf(x):
    # Eigen/XLA f32 rational erf approximation; exact final divide (correctness feedback).
    x = jnp.clip(x, -4.0, 4.0)
    x2 = x * x
    p = -2.72614225801306e-10
    for c in (2.77068142495902e-08, -2.10102402082508e-06, -5.69250639462346e-05,
              -7.34990630326855e-04, -2.95459980854025e-03, -1.60960333262415e-02):
        p = p * x2 + c
    p = x * p
    q = -1.45660718464996e-05
    for c in (-2.13374055278905e-04, -1.68282697438203e-03, -7.37332916720468e-03,
              -1.42647390514189e-02):
        q = q * x2 + c
    return p / q


def _gelu(x):
    # erf-based GELU (torch.nn.functional.gelu default)
    return 0.5 * x * (1.0 + _erf(x * 0.7071067811865476))


def _layernorm(x, g, b):
    mu = jnp.mean(x, axis=-1, keepdims=True)
    xc = x - mu
    var = jnp.mean(xc * xc, axis=-1, keepdims=True)
    return xc * jax.lax.rsqrt(var + LN_EPS) * g + b


def _bf16_matmul(x, w_bf16):
    # MXU pass: bf16 operands, f32 accumulation.
    return jnp.dot(x.astype(jnp.bfloat16), w_bf16, preferred_element_type=jnp.float32)


def _sdpa_row(q, k, v):
    # q: (1, dh) already scaled; k, v: (S, dh); f32 (tiny head dim -> no bf16 win here).
    s = jax.lax.dot_general(q, k, (((1,), (1,)), ((), ())),
                            preferred_element_type=jnp.float32)        # (1, S)
    s = s - jnp.max(s, axis=-1, keepdims=True)
    p = jnp.exp(s)
    p = p * pl.reciprocal(jnp.sum(p, axis=-1, keepdims=True), approx=True)
    return jnp.dot(p, v, preferred_element_type=jnp.float32)           # (1, dh)


# ----------------------------------- fused kernel ----------------------------------------
def _fused_decoder_kernel(
        past_len,
        # inputs
        h0_ref, past_k_ref, past_v_ref, enc_k_ref, enc_v_ref,
        ln1_g_ref, ln1_b_ref, w_qkv_ref, b_qkv_ref, wo_ref, bo_ref,
        lnx_g_ref, lnx_b_ref, wqx_ref, bqx_ref, wox_ref, box_ref,
        ln2_g_ref, ln2_b_ref, w_fc1_ref, b_fc1_ref, w_fc2_ref, b_fc2_ref,
        lnf_g_ref, lnf_b_ref, emb_ref,
        # outputs
        logits_ref, pres_k_ref, pres_v_ref,
        # scratch
        h_scr, attn_scr):
    layer = pl.program_id(0)

    @pl.when(layer == 0)
    def _():
        h_scr[...] = h0_ref[...]

    h = h_scr[...]                                                      # (B, D) f32, lives in VMEM

    # ---------------- self attention (pre-LN, KV-cache append) ----------------
    hn = _layernorm(h, ln1_g_ref[...], ln1_b_ref[...])
    qkv = _bf16_matmul(hn, w_qkv_ref[...]) + b_qkv_ref[...]             # fused QKV, (B, 3D) lane-dense
    q = qkv[:, 0:D_MODEL] * ATTN_SCALE                                  # HF scales after the bias add
    k_new = qkv[:, D_MODEL:2 * D_MODEL]                                 # k_proj has no bias
    v_new = qkv[:, 2 * D_MODEL:3 * D_MODEL]

    # cache append: ONE bulk copy of the past block + single-row writes (no per-head concatenates).
    pres_k_ref[:, 0:past_len, :] = past_k_ref[...]
    pres_v_ref[:, 0:past_len, :] = past_v_ref[...]
    for b in range(BATCH):
        for hh in range(N_HEADS):
            idx = b * N_HEADS + hh
            sl = slice(hh * D_HEAD, (hh + 1) * D_HEAD)
            pres_k_ref[idx, past_len:past_len + 1, :] = k_new[b:b + 1, sl]
            pres_v_ref[idx, past_len:past_len + 1, :] = v_new[b:b + 1, sl]

    # per-(batch, head) SDPA reading K/V straight from the present-cache VMEM buffer;
    # head outputs assembled through a VMEM scratch (no concatenate temporaries).
    # TODO(synk): at real sizes replace the static head loop with a batched dot_general over
    #             (BH, 1, dh) x (BH, S, dh) and a lane-dense (B, S, H*dh) KV layout.
    for b in range(BATCH):
        for hh in range(N_HEADS):
            idx = b * N_HEADS + hh
            sl = slice(hh * D_HEAD, (hh + 1) * D_HEAD)
            attn_scr[b:b + 1, sl] = _sdpa_row(q[b:b + 1, sl], pres_k_ref[idx], pres_v_ref[idx])
    h = h + _bf16_matmul(attn_scr[...], wo_ref[...]) + bo_ref[...]      # o-proj + residual

    # ---------------- cross attention (pre-LN, cached encoder K/V) ----------------
    hn = _layernorm(h, lnx_g_ref[...], lnx_b_ref[...])
    qx = (_bf16_matmul(hn, wqx_ref[...]) + bqx_ref[...]) * ATTN_SCALE
    for b in range(BATCH):
        for hh in range(N_HEADS):
            idx = b * N_HEADS + hh
            sl = slice(hh * D_HEAD, (hh + 1) * D_HEAD)
            attn_scr[b:b + 1, sl] = _sdpa_row(qx[b:b + 1, sl], enc_k_ref[idx], enc_v_ref[idx])
    h = h + _bf16_matmul(attn_scr[...], wox_ref[...]) + box_ref[...]

    # ---------------- feed forward (pre-LN) ----------------
    hn = _layernorm(h, ln2_g_ref[...], ln2_b_ref[...])
    y = _gelu(_bf16_matmul(hn, w_fc1_ref[...]) + b_fc1_ref[...])
    h = h + _bf16_matmul(y, w_fc2_ref[...]) + b_fc2_ref[...]

    h_scr[...] = h                                                      # carry to the next layer in VMEM

    # ---------------- final LN + tied lm_head, fused into the last grid step ----------------
    @pl.when(layer == pl.num_programs(0) - 1)
    def _():
        hn_f = _layernorm(h, lnf_g_ref[...], lnf_b_ref[...])
        logits_ref[...] = jax.lax.dot_general(                          # hn @ embed.T (tied weights)
            hn_f.astype(jnp.bfloat16), emb_ref[...],
            (((1,), (1,)), ((), ())), preferred_element_type=jnp.float32)


# --------------------------------- pallas wrapper ----------------------------------
def fused_decoder_forward(h0, past_k, past_v, enc_k, enc_v, layers, lnf_g, lnf_b, embed_bf16):
    """h0: (B, D).  past_k/v: (L, B*H, past_len, dh).  enc_k/v: (L, B*H, enc_len, dh).
    layers: dict of per-layer params stacked along a leading layer axis."""
    n_layers, _, past_len, _ = past_k.shape
    enc_len = enc_k.shape[2]
    s_new = past_len + T_NEW

    def per_layer3(l): return (l, 0, 0)
    def per_layer4(l): return (l, 0, 0, 0)
    def resident2(l): return (0, 0)

    in_specs = (
        [pl.BlockSpec((BATCH, D_MODEL), resident2),                     # h0 (loaded once)
         pl.BlockSpec((None, BH, past_len, D_HEAD), per_layer4),        # past decoder K (per layer)
         pl.BlockSpec((None, BH, past_len, D_HEAD), per_layer4),        # past decoder V
         pl.BlockSpec((None, BH, enc_len, D_HEAD), per_layer4),         # cached encoder K
         pl.BlockSpec((None, BH, enc_len, D_HEAD), per_layer4)]         # cached encoder V
        + [pl.BlockSpec((None,) + tuple(layers[n].shape[1:]), per_layer3)
           for n in _LAYER_PARAM_NAMES]                                 # streamed per-layer weights
        + [pl.BlockSpec((1, D_MODEL), resident2),                       # final LN gamma (resident)
           pl.BlockSpec((1, D_MODEL), resident2),                       # final LN beta
           pl.BlockSpec((VOCAB, D_MODEL), resident2)])                  # tied embedding / lm_head weight

    out_specs = (
        pl.BlockSpec((BATCH, VOCAB), resident2),                        # logits (written at last layer)
        pl.BlockSpec((None, BH, s_new, D_HEAD), per_layer4),            # present decoder K
        pl.BlockSpec((None, BH, s_new, D_HEAD), per_layer4),            # present decoder V
    )
    out_shape = (
        jax.ShapeDtypeStruct((BATCH, VOCAB), jnp.float32),
        jax.ShapeDtypeStruct((n_layers, BH, s_new, D_HEAD), jnp.float32),
        jax.ShapeDtypeStruct((n_layers, BH, s_new, D_HEAD), jnp.float32),
    )

    grid_spec = pltpu.PrefetchScalarGridSpec(
        num_scalar_prefetch=0,
        grid=(n_layers,),
        in_specs=in_specs,
        out_specs=out_specs,
        scratch_shapes=[pltpu.VMEM((BATCH, D_MODEL), jnp.float32),      # hidden state carried across layers
                        pltpu.VMEM((BATCH, D_MODEL), jnp.float32)])     # per-head attention output assembly

    return pl.pallas_call(
        functools.partial(_fused_decoder_kernel, past_len),
        grid_spec=grid_spec,
        out_shape=out_shape,
        compiler_params=pltpu.CompilerParams(
            dimension_semantics=("arbitrary",)),                        # layers are sequential (h carried)
    )(h0, past_k, past_v, enc_k, enc_v,
      *[layers[n] for n in _LAYER_PARAM_NAMES],
      lnf_g, lnf_b, embed_bf16)


# ----------------------------------- parameters -------------------------------------
def init_params(key):
    keys = iter(jax.random.split(key, 2 + N_LAYERS * 15))

    def norm(shape, scale=0.02):
        return scale * jax.random.normal(next(keys), shape, jnp.float32)

    embed = norm((VOCAB, D_MODEL))
    params = {
        "embed": embed.astype(jnp.bfloat16),          # single bf16 copy: token-gather AND tied lm_head
        "pos": norm((MAX_POS, D_MODEL)),              # learned positional embedding
        "lnf_g": jnp.ones((1, D_MODEL), jnp.float32),
        "lnf_b": jnp.zeros((1, D_MODEL), jnp.float32),
    }
    per = {n: [] for n in _LAYER_PARAM_NAMES}
    for _ in range(N_LAYERS):
        wq, wk, wv = norm((D_MODEL, D_MODEL)), norm((D_MODEL, D_MODEL)), norm((D_MODEL, D_MODEL))
        bq, bv = norm((1, D_MODEL)), norm((1, D_MODEL))
        per["ln1_g"].append(jnp.ones((1, D_MODEL), jnp.float32))
        per["ln1_b"].append(jnp.zeros((1, D_MODEL), jnp.float32))
        per["w_qkv"].append(jnp.concatenate([wq, wk, wv], axis=1).astype(jnp.bfloat16))    # (D, 3D)
        per["b_qkv"].append(jnp.concatenate([bq, jnp.zeros((1, D_MODEL), jnp.float32), bv], axis=1))
        per["wo"].append(norm((D_MODEL, D_MODEL)).astype(jnp.bfloat16))
        per["bo"].append(norm((1, D_MODEL)))
        per["lnx_g"].append(jnp.ones((1, D_MODEL), jnp.float32))
        per["lnx_b"].append(jnp.zeros((1, D_MODEL), jnp.float32))
        per["wqx"].append(norm((D_MODEL, D_MODEL)).astype(jnp.bfloat16))
        per["bqx"].append(norm((1, D_MODEL)))
        per["wox"].append(norm((D_MODEL, D_MODEL)).astype(jnp.bfloat16))
        per["box"].append(norm((1, D_MODEL)))
        per["ln2_g"].append(jnp.ones((1, D_MODEL), jnp.float32))
        per["ln2_b"].append(jnp.zeros((1, D_MODEL), jnp.float32))
        per["w_fc1"].append(norm((D_MODEL, D_FF)).astype(jnp.bfloat16))
        per["b_fc1"].append(norm((1, D_FF)))
        per["w_fc2"].append(norm((D_FF, D_MODEL)).astype(jnp.bfloat16))
        per["b_fc2"].append(norm((1, D_MODEL)))
    params["layers"] = {n: jnp.stack(v, axis=0) for n, v in per.items()}   # leading layer axis
    return params


# ------------------------------ decoder-with-past forward ---------------------------
@jax.jit
def whisper_decoder_with_past(input_ids, encoder_hidden_states, past_kv, params):
    """input_ids: (B, 1) int32; past_kv: tuple per layer of (dec_k, dec_v, enc_k, enc_v), HF (B,H,S,dh)
    layout.  encoder_hidden_states is accepted for interface parity with the PyTorch module but -- like
    HF when the cross-attention cache is present -- cross K/V are taken from past_kv."""
    del encoder_hidden_states
    b, t_new = input_ids.shape
    past_len = past_kv[0][0].shape[2]
    enc_len = past_kv[0][2].shape[2]

    # tiny data-dependent gather + positional add done in JAX glue (2 rows).
    tok = jnp.take(params["embed"], input_ids.reshape(-1), axis=0).astype(jnp.float32)     # (B*T, D)
    pos = params["pos"][past_len:past_len + t_new]                                          # (T, D)
    h0 = tok + jnp.tile(pos, (b, 1))                                                        # (B*T, D)

    # stack per-layer caches along a leading layer axis, head-major (B*H, S, dh) (contiguous reshapes).
    # TODO(synk): in a real autoregressive loop keep the caches stacked & fixed-max-length end-to-end
    #             (input_output_aliases + scalar-prefetched past_len) to avoid this copy and the
    #             per-step recompile from the growing present length.
    pk = jnp.stack([past_kv[i][0].reshape(BH, past_len, D_HEAD) for i in range(N_LAYERS)], axis=0)
    pv = jnp.stack([past_kv[i][1].reshape(BH, past_len, D_HEAD) for i in range(N_LAYERS)], axis=0)
    ek = jnp.stack([past_kv[i][2].reshape(BH, enc_len, D_HEAD) for i in range(N_LAYERS)], axis=0)
    ev = jnp.stack([past_kv[i][3].reshape(BH, enc_len, D_HEAD) for i in range(N_LAYERS)], axis=0)

    logits, pres_k, pres_v = fused_decoder_forward(
        h0, pk, pv, ek, ev, params["layers"], params["lnf_g"], params["lnf_b"], params["embed"])

    s_new = past_len + t_new
    out = {"logits": logits.reshape(b, t_new, VOCAB)}
    for i in range(N_LAYERS):
        out[f"present.{i}.decoder.key"] = pres_k[i].reshape(BATCH, N_HEADS, s_new, D_HEAD)
        out[f"present.{i}.decoder.value"] = pres_v[i].reshape(BATCH, N_HEADS, s_new, D_HEAD)
        out[f"present.{i}.encoder.key"] = past_kv[i][2]        # pass-through, zero-copy
        out[f"present.{i}.encoder.value"] = past_kv[i][3]
    return out


# -------------------------------------- main -----------------------------------------
if __name__ == "__main__":
    root = jax.random.PRNGKey(0)
    k_params, k_ids, k_enc, k_kv = jax.random.split(root, 4)
    params = init_params(k_params)

    input_ids = jax.random.randint(k_ids, (BATCH, T_NEW), 0, VOCAB, dtype=jnp.int32)
    encoder_hidden_states = jax.random.normal(k_enc, (BATCH, ENC_LEN, D_MODEL), jnp.float32)

    kv_keys = jax.random.split(k_kv, N_LAYERS * 4)
    past_kv = []
    for i in range(N_LAYERS):
        dec_k = 0.1 * jax.random.normal(kv_keys[4 * i + 0], (BATCH, N_HEADS, PAST_LEN, D_HEAD), jnp.float32)
        dec_v = 0.1 * jax.random.normal(kv_keys[4 * i + 1], (BATCH, N_HEADS, PAST_LEN, D_HEAD), jnp.float32)
        enc_k = 0.1 * jax.random.normal(kv_keys[4 * i + 2], (BATCH, N_HEADS, ENC_LEN, D_HEAD), jnp.float32)
        enc_v = 0.1 * jax.random.normal(kv_keys[4 * i + 3], (BATCH, N_HEADS, ENC_LEN, D_HEAD), jnp.float32)
        past_kv.append((dec_k, dec_v, enc_k, enc_v))
    past_kv = tuple(past_kv)

    out = whisper_decoder_with_past(input_ids, encoder_hidden_states, past_kv, params)
    out = jax.block_until_ready(out)

    assert out["logits"].shape == (BATCH, T_NEW, VOCAB), out["logits"].shape
    assert out["logits"].dtype == jnp.float32
    for i in range(N_LAYERS):
        assert out[f"present.{i}.decoder.key"].shape == (BATCH, N_HEADS, PAST_LEN + T_NEW, D_HEAD)
        assert out[f"present.{i}.decoder.value"].shape == (BATCH, N_HEADS, PAST_LEN + T_NEW, D_HEAD)
        assert out[f"present.{i}.encoder.key"].shape == (BATCH, N_HEADS, ENC_LEN, D_HEAD)
        assert out[f"present.{i}.encoder.value"].shape == (BATCH, N_HEADS, ENC_LEN, D_HEAD)
    assert all(bool(jnp.all(jnp.isfinite(v))) for v in jax.tree_util.tree_leaves(out))
    print("KERNEL_OK")
</pallas_src>

<mosaic_0001>
module attributes {stable_mosaic.version = 11 : i64} {
  func.func @_fused_decoder_kernel(%arg0: i32, %arg1: memref<2x128xf32, #tpu.memory_space<vmem>>, %arg2: memref<1x4x7x64xf32, #tpu.memory_space<vmem>>, %arg3: memref<1x4x7x64xf32, #tpu.memory_space<vmem>>, %arg4: memref<1x4x16x64xf32, #tpu.memory_space<vmem>>, %arg5: memref<1x4x16x64xf32, #tpu.memory_space<vmem>>, %arg6: memref<1x1x128xf32, #tpu.memory_space<vmem>>, %arg7: memref<1x1x128xf32, #tpu.memory_space<vmem>>, %arg8: memref<1x128x384xbf16, #tpu.memory_space<vmem>>, %arg9: memref<1x1x384xf32, #tpu.memory_space<vmem>>, %arg10: memref<1x128x128xbf16, #tpu.memory_space<vmem>>, %arg11: memref<1x1x128xf32, #tpu.memory_space<vmem>>, %arg12: memref<1x1x128xf32, #tpu.memory_space<vmem>>, %arg13: memref<1x1x128xf32, #tpu.memory_space<vmem>>, %arg14: memref<1x128x128xbf16, #tpu.memory_space<vmem>>, %arg15: memref<1x1x128xf32, #tpu.memory_space<vmem>>, %arg16: memref<1x128x128xbf16, #tpu.memory_space<vmem>>, %arg17: memref<1x1x128xf32, #tpu.memory_space<vmem>>, %arg18: memref<1x1x128xf32, #tpu.memory_space<vmem>>, %arg19: memref<1x1x128xf32, #tpu.memory_space<vmem>>, %arg20: memref<1x128x256xbf16, #tpu.memory_space<vmem>>, %arg21: memref<1x1x256xf32, #tpu.memory_space<vmem>>, %arg22: memref<1x256x128xbf16, #tpu.memory_space<vmem>>, %arg23: memref<1x1x128xf32, #tpu.memory_space<vmem>>, %arg24: memref<1x128xf32, #tpu.memory_space<vmem>>, %arg25: memref<1x128xf32, #tpu.memory_space<vmem>>, %arg26: memref<384x128xbf16, #tpu.memory_space<vmem>>, %arg27: memref<2x384xf32, #tpu.memory_space<vmem>>, %arg28: memref<1x4x8x64xf32, #tpu.memory_space<vmem>>, %arg29: memref<1x4x8x64xf32, #tpu.memory_space<vmem>>, %arg30: memref<2x128xf32, #tpu.memory_space<vmem>>, %arg31: memref<2x128xf32, #tpu.memory_space<vmem>>) attributes {dimension_semantics = [#tpu.dimension_semantics<arbitrary>], iteration_bounds = array<i64: 4>, scalar_prefetch = 0 : i64, scratch_operands = 2 : i64, tpu.core_type = #tpu.core_type<tc>, window_params = [{pipeline_mode = #tpu.pipeline_mode<synchronous>, transform_indices = @transform_0, window_bounds = array<i64: 2, 128>}, {transform_indices = @transform_1, window_bounds = array<i64: 1, 4, 7, 64>}, {transform_indices = @transform_2, window_bounds = array<i64: 1, 4, 7, 64>}, {transform_indices = @transform_3, window_bounds = array<i64: 1, 4, 16, 64>}, {transform_indices = @transform_4, window_bounds = array<i64: 1, 4, 16, 64>}, {transform_indices = @transform_5, window_bounds = array<i64: 1, 1, 128>}, {transform_indices = @transform_6, window_bounds = array<i64: 1, 1, 128>}, {transform_indices = @transform_7, window_bounds = array<i64: 1, 128, 384>}, {transform_indices = @transform_8, window_bounds = array<i64: 1, 1, 384>}, {transform_indices = @transform_9, window_bounds = array<i64: 1, 128, 128>}, {transform_indices = @transform_10, window_bounds = array<i64: 1, 1, 128>}, {transform_indices = @transform_11, window_bounds = array<i64: 1, 1, 128>}, {transform_indices = @transform_12, window_bounds = array<i64: 1, 1, 128>}, {transform_indices = @transform_13, window_bounds = array<i64: 1, 128, 128>}, {transform_indices = @transform_14, window_bounds = array<i64: 1, 1, 128>}, {transform_indices = @transform_15, window_bounds = array<i64: 1, 128, 128>}, {transform_indices = @transform_16, window_bounds = array<i64: 1, 1, 128>}, {transform_indices = @transform_17, window_bounds = array<i64: 1, 1, 128>}, {transform_indices = @transform_18, window_bounds = array<i64: 1, 1, 128>}, {transform_indices = @transform_19, window_bounds = array<i64: 1, 128, 256>}, {transform_indices = @transform_20, window_bounds = array<i64: 1, 1, 256>}, {transform_indices = @transform_21, window_bounds = array<i64: 1, 256, 128>}, {transform_indices = @transform_22, window_bounds = array<i64: 1, 1, 128>}, {pipeline_mode = #tpu.pipeline_mode<synchronous>, transform_indices = @transform_23, window_bounds = array<i64: 1, 128>}, {pipeline_mode = #tpu.pipeline_mode<synchronous>, transform_indices = @transform_24, window_bounds = array<i64: 1, 128>}, {pipeline_mode = #tpu.pipeline_mode<synchronous>, transform_indices = @transform_25, window_bounds = array<i64: 384, 128>}, {pipeline_mode = #tpu.pipeline_mode<synchronous>, transform_indices = @transform_26, window_bounds = array<i64: 2, 384>}, {transform_indices = @transform_27, window_bounds = array<i64: 1, 4, 8, 64>}, {transform_indices = @transform_28, window_bounds = array<i64: 1, 4, 8, 64>}]} {
    %c0_i32 = arith.constant 0 : i32
    %0 = arith.cmpi eq, %arg0, %c0_i32 : i32
    %1 = arith.extui %0 : i1 to i32
    %c0_i32_0 = arith.constant 0 : i32
    %2 = arith.cmpi ne, %1, %c0_i32_0 : i32
    scf.if %2 {
      %c0_257 = arith.constant 0 : index
      %c0_258 = arith.constant 0 : index
      %372 = vector.load %arg1[%c0_257, %c0_258] : memref<2x128xf32, #tpu.memory_space<vmem>>, vector<2x128xf32>
      %c0_259 = arith.constant 0 : index
      %c0_260 = arith.constant 0 : index
      %373 = vector.load %arg30[%c0_259, %c0_260] : memref<2x128xf32, #tpu.memory_space<vmem>>, vector<2x128xf32>
      tpu.vector_store %arg30[%c0_259, %c0_260], %372 {strides = array<i32>} : memref<2x128xf32, #tpu.memory_space<vmem>>, vector<2x128xf32>,
    } else {
    }
    %c0 = arith.constant 0 : index
    %c0_1 = arith.constant 0 : index
    %3 = vector.load %arg30[%c0, %c0_1] : memref<2x128xf32, #tpu.memory_space<vmem>>, vector<2x128xf32>
    %c0_2 = arith.constant 0 : index
    %c0_3 = arith.constant 0 : index
    %c0_4 = arith.constant 0 : index
    %4 = vector.load %arg6[%c0_2, %c0_3, %c0_4] : memref<1x1x128xf32, #tpu.memory_space<vmem>>, vector<1x1x128xf32>
    %5 = vector.shape_cast %4 : vector<1x1x128xf32> to vector<1x128xf32>
    %c0_5 = arith.constant 0 : index
    %c0_6 = arith.constant 0 : index
    %c0_7 = arith.constant 0 : index
    %6 = vector.load %arg7[%c0_5, %c0_6, %c0_7] : memref<1x1x128xf32, #tpu.memory_space<vmem>>, vector<1x1x128xf32>
    %7 = vector.shape_cast %6 : vector<1x1x128xf32> to vector<1x128xf32>
    %cst = arith.constant dense<0.000000e+00> : vector<2xf32>
    %8 = vector.multi_reduction <add>, %3, %cst [1] : vector<2x128xf32> to vector<2xf32>
    %9 = vector.shape_cast %8 : vector<2xf32> to vector<2x1xf32>
    %cst_8 = arith.constant 1.280000e+02 : f32
    %10 = vector.broadcast %cst_8 : f32 to vector<2x1xf32>
    %11 = arith.divf %9, %10 : vector<2x1xf32>
    %12 = vector.broadcast %11 : vector<2x1xf32> to vector<2x128xf32>
    %13 = arith.subf %3, %12 : vector<2x128xf32>
    %14 = arith.mulf %13, %13 : vector<2x128xf32>
    %cst_9 = arith.constant dense<0.000000e+00> : vector<2xf32>
    %15 = vector.multi_reduction <add>, %14, %cst_9 [1] : vector<2x128xf32> to vector<2xf32>
    %16 = vector.shape_cast %15 : vector<2xf32> to vector<2x1xf32>
    %cst_10 = arith.constant 1.280000e+02 : f32
    %17 = vector.broadcast %cst_10 : f32 to vector<2x1xf32>
    %18 = arith.divf %16, %17 : vector<2x1xf32>
    %cst_11 = arith.constant 9.99999974E-6 : f32
    %19 = vector.broadcast %cst_11 : f32 to vector<2x1xf32>
    %20 = arith.addf %18, %19 : vector<2x1xf32>
    %21 = math.rsqrt %20 : vector<2x1xf32>
    %22 = vector.broadcast %21 : vector<2x1xf32> to vector<2x128xf32>
    %23 = arith.mulf %13, %22 : vector<2x128xf32>
    %24 = vector.broadcast %5 : vector<1x128xf32> to vector<2x128xf32>
    %25 = arith.mulf %23, %24 : vector<2x128xf32>
    %26 = vector.broadcast %7 : vector<1x128xf32> to vector<2x128xf32>
    %27 = arith.addf %25, %26 : vector<2x128xf32>
    %c0_12 = arith.constant 0 : index
    %c0_13 = arith.constant 0 : index
    %c0_14 = arith.constant 0 : index
    %28 = vector.load %arg8[%c0_12, %c0_13, %c0_14] : memref<1x128x384xbf16, #tpu.memory_space<vmem>>, vector<1x128x384xbf16>
    %29 = vector.shape_cast %28 : vector<1x128x384xbf16> to vector<128x384xbf16>
    %30 = arith.truncf %27 : vector<2x128xf32> to vector<2x128xbf16>
    %cst_15 = arith.constant dense<0.000000e+00> : vector<2x384xf32>
    %31 = tpu.matmul %30, %29, %cst_15 {dimension_numbers = #tpu.dot_dimension_numbers<[1], [0], [0], [1], [0, 0, 1, 1], [], []>} : vector<2x128xbf16>, vector<128x384xbf16>, vector<2x384xf32> -> vector<2x384xf32>
    %c0_16 = arith.constant 0 : index
    %c0_17 = arith.constant 0 : index
    %c0_18 = arith.constant 0 : index
    %32 = vector.load %arg9[%c0_16, %c0_17, %c0_18] : memref<1x1x384xf32, #tpu.memory_space<vmem>>, vector<1x1x384xf32>
    %33 = vector.shape_cast %32 : vector<1x1x384xf32> to vector<1x384xf32>
    %34 = vector.broadcast %33 : vector<1x384xf32> to vector<2x384xf32>
    %35 = arith.addf %31, %34 : vector<2x384xf32>
    %36 = vector.extract_strided_slice %35 {offsets = [0, 0], sizes = [2, 128], strides = [1, 1]} : vector<2x384xf32> to vector<2x128xf32>
    %cst_19 = arith.constant 1.250000e-01 : f32
    %37 = vector.broadcast %cst_19 : f32 to vector<2x128xf32>
    %38 = arith.mulf %36, %37 : vector<2x128xf32>
    %39 = vector.extract_strided_slice %35 {offsets = [0, 128], sizes = [2, 128], strides = [1, 1]} : vector<2x384xf32> to vector<2x128xf32>
    %40 = vector.extract_strided_slice %35 {offsets = [0, 256], sizes = [2, 128], strides = [1, 1]} : vector<2x384xf32> to vector<2x128xf32>
    %c0_20 = arith.constant 0 : index
    %c0_21 = arith.constant 0 : index
    %c0_22 = arith.constant 0 : index
    %c0_23 = arith.constant 0 : index
    %41 = vector.load %arg2[%c0_20, %c0_21, %c0_22, %c0_23] : memref<1x4x7x64xf32, #tpu.memory_space<vmem>>, vector<1x4x7x64xf32>
    %42 = vector.shape_cast %41 : vector<1x4x7x64xf32> to vector<4x7x64xf32>
    %c0_24 = arith.constant 0 : index
    %c0_25 = arith.constant 0 : index
    %c0_26 = arith.constant 0 : index
    %c0_27 = arith.constant 0 : index
    %43 = vector.load %arg28[%c0_24, %c0_25, %c0_26, %c0_27] : memref<1x4x8x64xf32, #tpu.memory_space<vmem>>, vector<1x4x7x64xf32>
    %44 = vector.shape_cast %43 : vector<1x4x7x64xf32> to vector<4x7x64xf32>
    %45 = vector.shape_cast %42 : vector<4x7x64xf32> to vector<1x4x7x64xf32>
    tpu.vector_store %arg28[%c0_24, %c0_25, %c0_26, %c0_27], %45 {strides = array<i32>} : memref<1x4x8x64xf32, #tpu.memory_space<vmem>>, vector<1x4x7x64xf32>,
    %c0_28 = arith.constant 0 : index
    %c0_29 = arith.constant 0 : index
    %c0_30 = arith.constant 0 : index
    %c0_31 = arith.constant 0 : index
    %46 = vector.load %arg3[%c0_28, %c0_29, %c0_30, %c0_31] : memref<1x4x7x64xf32, #tpu.memory_space<vmem>>, vector<1x4x7x64xf32>
    %47 = vector.shape_cast %46 : vector<1x4x7x64xf32> to vector<4x7x64xf32>
    %c0_32 = arith.constant 0 : index
    %c0_33 = arith.constant 0 : index
    %c0_34 = arith.constant 0 : index
    %c0_35 = arith.constant 0 : index
    %48 = vector.load %arg29[%c0_32, %c0_33, %c0_34, %c0_35] : memref<1x4x8x64xf32, #tpu.memory_space<vmem>>, vector<1x4x7x64xf32>
    %49 = vector.shape_cast %48 : vector<1x4x7x64xf32> to vector<4x7x64xf32>
    %50 = vector.shape_cast %47 : vector<4x7x64xf32> to vector<1x4x7x64xf32>
    tpu.vector_store %arg29[%c0_32, %c0_33, %c0_34, %c0_35], %50 {strides = array<i32>} : memref<1x4x8x64xf32, #tpu.memory_space<vmem>>, vector<1x4x7x64xf32>,
    %51 = vector.extract_strided_slice %39 {offsets = [0, 0], sizes = [1, 64], strides = [1, 1]} : vector<2x128xf32> to vector<1x64xf32>
    %c0_36 = arith.constant 0 : index
    %c0_37 = arith.constant 0 : index
    %c7 = arith.constant 7 : index
    %c0_38 = arith.constant 0 : index
    %52 = vector.load %arg28[%c0_36, %c0_37, %c7, %c0_38] : memref<1x4x8x64xf32, #tpu.memory_space<vmem>>, vector<1x1x1x64xf32>
    %53 = vector.shape_cast %52 : vector<1x1x1x64xf32> to vector<1x64xf32>
    %54 = vector.shape_cast %51 : vector<1x64xf32> to vector<1x1x1x64xf32>
    tpu.vector_store %arg28[%c0_36, %c0_37, %c7, %c0_38], %54 {strides = array<i32>} : memref<1x4x8x64xf32, #tpu.memory_space<vmem>>, vector<1x1x1x64xf32>,
    %55 = vector.extract_strided_slice %40 {offsets = [0, 0], sizes = [1, 64], strides = [1, 1]} : vector<2x128xf32> to vector<1x64xf32>
    %c0_39 = arith.constant 0 : index
    %c0_40 = arith.constant 0 : index
    %c7_41 = arith.constant 7 : index
    %c0_42 = arith.constant 0 : index
    %56 = vector.load %arg29[%c0_39, %c0_40, %c7_41, %c0_42] : memref<1x4x8x64xf32, #tpu.memory_space<vmem>>, vector<1x1x1x64xf32>
    %57 = vector.shape_cast %56 : vector<1x1x1x64xf32> to vector<1x64xf32>
    %58 = vector.shape_cast %55 : vector<1x64xf32> to vector<1x1x1x64xf32>
    tpu.vector_store %arg29[%c0_39, %c0_40, %c7_41, %c0_42], %58 {strides = array<i32>} : memref<1x4x8x64xf32, #tpu.memory_space<vmem>>, vector<1x1x1x64xf32>,
    %59 = vector.extract_strided_slice %39 {offsets = [0, 64], sizes = [1, 64], strides = [1, 1]} : vector<2x128xf32> to vector<1x64xf32>
    %c0_43 = arith.constant 0 : index
    %c1 = arith.constant 1 : index
    %c7_44 = arith.constant 7 : index
    %c0_45 = arith.constant 0 : index
    %60 = vector.load %arg28[%c0_43, %c1, %c7_44, %c0_45] : memref<1x4x8x64xf32, #tpu.memory_space<vmem>>, vector<1x1x1x64xf32>
    %61 = vector.shape_cast %60 : vector<1x1x1x64xf32> to vector<1x64xf32>
    %62 = vector.shape_cast %59 : vector<1x64xf32> to vector<1x1x1x64xf32>
    tpu.vector_store %arg28[%c0_43, %c1, %c7_44, %c0_45], %62 {strides = array<i32>} : memref<1x4x8x64xf32, #tpu.memory_space<vmem>>, vector<1x1x1x64xf32>,
    %63 = vector.extract_strided_slice %40 {offsets = [0, 64], sizes = [1, 64], strides = [1, 1]} : vector<2x128xf32> to vector<1x64xf32>
    %c0_46 = arith.constant 0 : index
    %c1_47 = arith.constant 1 : index
    %c7_48 = arith.constant 7 : index
    %c0_49 = arith.constant 0 : index
    %64 = vector.load %arg29[%c0_46, %c1_47, %c7_48, %c0_49] : memref<1x4x8x64xf32, #tpu.memory_space<vmem>>, vector<1x1x1x64xf32>
    %65 = vector.shape_cast %64 : vector<1x1x1x64xf32> to vector<1x64xf32>
    %66 = vector.shape_cast %63 : vector<1x64xf32> to vector<1x1x1x64xf32>
    tpu.vector_store %arg29[%c0_46, %c1_47, %c7_48, %c0_49], %66 {strides = array<i32>} : memref<1x4x8x64xf32, #tpu.memory_space<vmem>>, vector<1x1x1x64xf32>,
    %67 = vector.extract_strided_slice %39 {offsets = [1, 0], sizes = [1, 64], strides = [1, 1]} : vector<2x128xf32> to vector<1x64xf32>
    %c0_50 = arith.constant 0 : index
    %c2 = arith.constant 2 : index
    %c7_51 = arith.constant 7 : index
    %c0_52 = arith.constant 0 : index
    %68 = vector.load %arg28[%c0_50, %c2, %c7_51, %c0_52] : memref<1x4x8x64xf32, #tpu.memory_space<vmem>>, vector<1x1x1x64xf32>
    %69 = vector.shape_cast %68 : vector<1x1x1x64xf32> to vector<1x64xf32>
    %70 = vector.shape_cast %67 : vector<1x64xf32> to vector<1x1x1x64xf32>
    tpu.vector_store %arg28[%c0_50, %c2, %c7_51, %c0_52], %70 {strides = array<i32>} : memref<1x4x8x64xf32, #tpu.memory_space<vmem>>, vector<1x1x1x64xf32>,
    %71 = vector.extract_strided_slice %40 {offsets = [1, 0], sizes = [1, 64], strides = [1, 1]} : vector<2x128xf32> to vector<1x64xf32>
    %c0_53 = arith.constant 0 : index
    %c2_54 = arith.constant 2 : index
    %c7_55 = arith.constant 7 : index
    %c0_56 = arith.constant 0 : index
    %72 = vector.load %arg29[%c0_53, %c2_54, %c7_55, %c0_56] : memref<1x4x8x64xf32, #tpu.memory_space<vmem>>, vector<1x1x1x64xf32>
    %73 = vector.shape_cast %72 : vector<1x1x1x64xf32> to vector<1x64xf32>
    %74 = vector.shape_cast %71 : vector<1x64xf32> to vector<1x1x1x64xf32>
    tpu.vector_store %arg29[%c0_53, %c2_54, %c7_55, %c0_56], %74 {strides = array<i32>} : memref<1x4x8x64xf32, #tpu.memory_space<vmem>>, vector<1x1x1x64xf32>,
    %75 = vector.extract_strided_slice %39 {offsets = [1, 64], sizes = [1, 64], strides = [1, 1]} : vector<2x128xf32> to vector<1x64xf32>
    %c0_57 = arith.constant 0 : index
    %c3 = arith.constant 3 : index
    %c7_58 = arith.constant 7 : index
    %c0_59 = arith.constant 0 : index
    %76 = vector.load %arg28[%c0_57, %c3, %c7_58, %c0_59] : memref<1x4x8x64xf32, #tpu.memory_space<vmem>>, vector<1x1x1x64xf32>
    %77 = vector.shape_cast %76 : vector<1x1x1x64xf32> to vector<1x64xf32>
    %78 = vector.shape_cast %75 : vector<1x64xf32> to vector<1x1x1x64xf32>
    tpu.vector_store %arg28[%c0_57, %c3, %c7_58, %c0_59], %78 {strides = array<i32>} : memref<1x4x8x64xf32, #tpu.memory_space<vmem>>, vector<1x1x1x64xf32>,
    %79 = vector.extract_strided_slice %40 {offsets = [1, 64], sizes = [1, 64], strides = [1, 1]} : vector<2x128xf32> to vector<1x64xf32>
    %c0_60 = arith.constant 0 : index
    %c3_61 = arith.constant 3 : index
    %c7_62 = arith.constant 7 : index
    %c0_63 = arith.constant 0 : index
    %80 = vector.load %arg29[%c0_60, %c3_61, %c7_62, %c0_63] : memref<1x4x8x64xf32, #tpu.memory_space<vmem>>, vector<1x1x1x64xf32>
    %81 = vector.shape_cast %80 : vector<1x1x1x64xf32> to vector<1x64xf32>
    %82 = vector.shape_cast %79 : vector<1x64xf32> to vector<1x1x1x64xf32>
    tpu.vector_store %arg29[%c0_60, %c3_61, %c7_62, %c0_63], %82 {strides = array<i32>} : memref<1x4x8x64xf32, #tpu.memory_space<vmem>>, vector<1x1x1x64xf32>,
    %83 = vector.extract_strided_slice %38 {offsets = [0, 0], sizes = [1, 64], strides = [1, 1]} : vector<2x128xf32> to vector<1x64xf32>
    %c0_64 = arith.constant 0 : index
    %c0_65 = arith.constant 0 : index
    %c0_66 = arith.constant 0 : index
    %c0_67 = arith.constant 0 : index
    %84 = vector.load %arg28[%c0_64, %c0_65, %c0_66, %c0_67] : memref<1x4x8x64xf32, #tpu.memory_space<vmem>>, vector<1x1x8x64xf32>
    %85 = vector.shape_cast %84 : vector<1x1x8x64xf32> to vector<8x64xf32>
    %c0_68 = arith.constant 0 : index
    %c0_69 = arith.constant 0 : index
    %c0_70 = arith.constant 0 : index
    %c0_71 = arith.constant 0 : index
    %86 = vector.load %arg29[%c0_68, %c0_69, %c0_70, %c0_71] : memref<1x4x8x64xf32, #tpu.memory_space<vmem>>, vector<1x1x8x64xf32>
    %87 = vector.shape_cast %86 : vector<1x1x8x64xf32> to vector<8x64xf32>
    %cst_72 = arith.constant dense<0.000000e+00> : vector<1x8xf32>
    %88 = tpu.matmul %83, %85, %cst_72 {dimension_numbers = #tpu.dot_dimension_numbers<[1], [1], [0], [0], [0, 0, 1, 0], [], []>} : vector<1x64xf32>, vector<8x64xf32>, vector<1x8xf32> -> vector<1x8xf32>
    %cst_73 = arith.constant dense<0xFF800000> : vector<1xf32>
    %89 = vector.multi_reduction <maximumf>, %88, %cst_73 [1] : vector<1x8xf32> to vector<1xf32>
    %90 = vector.shape_cast %89 : vector<1xf32> to vector<1x1xf32>
    %91 = vector.broadcast %90 : vector<1x1xf32> to vector<1x8xf32>
    %92 = arith.subf %88, %91 : vector<1x8xf32>
    %93 = math.exp %92 : vector<1x8xf32>
    %cst_74 = arith.constant dense<0.000000e+00> : vector<1xf32>
    %94 = vector.multi_reduction <add>, %93, %cst_74 [1] : vector<1x8xf32> to vector<1xf32>
    %95 = vector.shape_cast %94 : vector<1xf32> to vector<1x1xf32>
    %96 = tpu.reciprocal %95 {approx = true} : vector<1x1xf32> -> vector<1x1xf32>
    %97 = vector.broadcast %96 : vector<1x1xf32> to vector<1x8xf32>
    %98 = arith.mulf %93, %97 : vector<1x8xf32>
    %cst_75 = arith.constant dense<0.000000e+00> : vector<1x64xf32>
    %99 = tpu.matmul %98, %87, %cst_75 {dimension_numbers = #tpu.dot_dimension_numbers<[1], [0], [0], [1], [0, 0, 1, 1], [], []>} : vector<1x8xf32>, vector<8x64xf32>, vector<1x64xf32> -> vector<1x64xf32>
    %c0_76 = arith.constant 0 : index
    %c0_77 = arith.constant 0 : index
    %100 = vector.load %arg31[%c0_76, %c0_77] : memref<2x128xf32, #tpu.memory_space<vmem>>, vector<1x64xf32>
    tpu.vector_store %arg31[%c0_76, %c0_77], %99 {strides = array<i32>} : memref<2x128xf32, #tpu.memory_space<vmem>>, vector<1x64xf32>,
    %101 = vector.extract_strided_slice %38 {offsets = [0, 64], sizes = [1, 64], strides = [1, 1]} : vector<2x128xf32> to vector<1x64xf32>
    %c0_78 = arith.constant 0 : index
    %c1_79 = arith.constant 1 : index
    %c0_80 = arith.constant 0 : index
    %c0_81 = arith.constant 0 : index
    %102 = vector.load %arg28[%c0_78, %c1_79, %c0_80, %c0_81] : memref<1x4x8x64xf32, #tpu.memory_space<vmem>>, vector<1x1x8x64xf32>
    %103 = vector.shape_cast %102 : vector<1x1x8x64xf32> to vector<8x64xf32>
    %c0_82 = arith.constant 0 : index
    %c1_83 = arith.constant 1 : index
    %c0_84 = arith.constant 0 : index
    %c0_85 = arith.constant 0 : index
    %104 = vector.load %arg29[%c0_82, %c1_83, %c0_84, %c0_85] : memref<1x4x8x64xf32, #tpu.memory_space<vmem>>, vector<1x1x8x64xf32>
    %105 = vector.shape_cast %104 : vector<1x1x8x64xf32> to vector<8x64xf32>
    %cst_86 = arith.constant dense<0.000000e+00> : vector<1x8xf32>
    %106 = tpu.matmul %101, %103, %cst_86 {dimension_numbers = #tpu.dot_dimension_numbers<[1], [1], [0], [0], [0, 0, 1, 0], [], []>} : vector<1x64xf32>, vector<8x64xf32>, vector<1x8xf32> -> vector<1x8xf32>
    %cst_87 = arith.constant dense<0xFF800000> : vector<1xf32>
    %107 = vector.multi_reduction <maximumf>, %106, %cst_87 [1] : vector<1x8xf32> to vector<1xf32>
    %108 = vector.shape_cast %107 : vector<1xf32> to vector<1x1xf32>
    %109 = vector.broadcast %108 : vector<1x1xf32> to vector<1x8xf32>
    %110 = arith.subf %106, %109 : vector<1x8xf32>
    %111 = math.exp %110 : vector<1x8xf32>
    %cst_88 = arith.constant dense<0.000000e+00> : vector<1xf32>
    %112 = vector.multi_reduction <add>, %111, %cst_88 [1] : vector<1x8xf32> to vector<1xf32>
    %113 = vector.shape_cast %112 : vector<1xf32> to vector<1x1xf32>
    %114 = tpu.reciprocal %113 {approx = true} : vector<1x1xf32> -> vector<1x1xf32>
    %115 = vector.broadcast %114 : vector<1x1xf32> to vector<1x8xf32>
    %116 = arith.mulf %111, %115 : vector<1x8xf32>
    %cst_89 = arith.constant dense<0.000000e+00> : vector<1x64xf32>
    %117 = tpu.matmul %116, %105, %cst_89 {dimension_numbers = #tpu.dot_dimension_numbers<[1], [0], [0], [1], [0, 0, 1, 1], [], []>} : vector<1x8xf32>, vector<8x64xf32>, vector<1x64xf32> -> vector<1x64xf32>
    %c0_90 = arith.constant 0 : index
    %c64 = arith.constant 64 : index
    %118 = vector.load %arg31[%c0_90, %c64] : memref<2x128xf32, #tpu.memory_space<vmem>>, vector<1x64xf32>
    tpu.vector_store %arg31[%c0_90, %c64], %117 {strides = array<i32>} : memref<2x128xf32, #tpu.memory_space<vmem>>, vector<1x64xf32>,
    %119 = vector.extract_strided_slice %38 {offsets = [1, 0], sizes = [1, 64], strides = [1, 1]} : vector<2x128xf32> to vector<1x64xf32>
    %c0_91 = arith.constant 0 : index
    %c2_92 = arith.constant 2 : index
    %c0_93 = arith.constant 0 : index
    %c0_94 = arith.constant 0 : index
    %120 = vector.load %arg28[%c0_91, %c2_92, %c0_93, %c0_94] : memref<1x4x8x64xf32, #tpu.memory_space<vmem>>, vector<1x1x8x64xf32>
    %121 = vector.shape_cast %120 : vector<1x1x8x64xf32> to vector<8x64xf32>
    %c0_95 = arith.constant 0 : index
    %c2_96 = arith.constant 2 : index
    %c0_97 = arith.constant 0 : index
    %c0_98 = arith.constant 0 : index
    %122 = vector.load %arg29[%c0_95, %c2_96, %c0_97, %c0_98] : memref<1x4x8x64xf32, #tpu.memory_space<vmem>>, vector<1x1x8x64xf32>
    %123 = vector.shape_cast %122 : vector<1x1x8x64xf32> to vector<8x64xf32>
    %cst_99 = arith.constant dense<0.000000e+00> : vector<1x8xf32>
    %124 = tpu.matmul %119, %121, %cst_99 {dimension_numbers = #tpu.dot_dimension_numbers<[1], [1], [0], [0], [0, 0, 1, 0], [], []>} : vector<1x64xf32>, vector<8x64xf32>, vector<1x8xf32> -> vector<1x8xf32>
    %cst_100 = arith.constant dense<0xFF800000> : vector<1xf32>
    %125 = vector.multi_reduction <maximumf>, %124, %cst_100 [1] : vector<1x8xf32> to vector<1xf32>
    %126 = vector.shape_cast %125 : vector<1xf32> to vector<1x1xf32>
    %127 = vector.broadcast %126 : vector<1x1xf32> to vector<1x8xf32>
    %128 = arith.subf %124, %127 : vector<1x8xf32>
    %129 = math.exp %128 : vector<1x8xf32>
    %cst_101 = arith.constant dense<0.000000e+00> : vector<1xf32>
    %130 = vector.multi_reduction <add>, %129, %cst_101 [1] : vector<1x8xf32> to vector<1xf32>
    %131 = vector.shape_cast %130 : vector<1xf32> to vector<1x1xf32>
    %132 = tpu.reciprocal %131 {approx = true} : vector<1x1xf32> -> vector<1x1xf32>
    %133 = vector.broadcast %132 : vector<1x1xf32> to vector<1x8xf32>
    %134 = arith.mulf %129, %133 : vector<1x8xf32>
    %cst_102 = arith.constant dense<0.000000e+00> : vector<1x64xf32>
    %135 = tpu.matmul %134, %123, %cst_102 {dimension_numbers = #tpu.dot_dimension_numbers<[1], [0], [0], [1], [0, 0, 1, 1], [], []>} : vector<1x8xf32>, vector<8x64xf32>, vector<1x64xf32> -> vector<1x64xf32>
    %c1_103 = arith.constant 1 : index
    %c0_104 = arith.constant 0 : index
    %136 = vector.load %arg31[%c1_103, %c0_104] : memref<2x128xf32, #tpu.memory_space<vmem>>, vector<1x64xf32>
    tpu.vector_store %arg31[%c1_103, %c0_104], %135 {strides = array<i32>} : memref<2x128xf32, #tpu.memory_space<vmem>>, vector<1x64xf32>,
    %137 = vector.extract_strided_slice %38 {offsets = [1, 64], sizes = [1, 64], strides = [1, 1]} : vector<2x128xf32> to vector<1x64xf32>
    %c0_105 = arith.constant 0 : index
    %c3_106 = arith.constant 3 : index
    %c0_107 = arith.constant 0 : index
    %c0_108 = arith.constant 0 : index
    %138 = vector.load %arg28[%c0_105, %c3_106, %c0_107, %c0_108] : memref<1x4x8x64xf32, #tpu.memory_space<vmem>>, vector<1x1x8x64xf32>
    %139 = vector.shape_cast %138 : vector<1x1x8x64xf32> to vector<8x64xf32>
    %c0_109 = arith.constant 0 : index
    %c3_110 = arith.constant 3 : index
    %c0_111 = arith.constant 0 : index
    %c0_112 = arith.constant 0 : index
    %140 = vector.load %arg29[%c0_109, %c3_110, %c0_111, %c0_112] : memref<1x4x8x64xf32, #tpu.memory_space<vmem>>, vector<1x1x8x64xf32>
    %141 = vector.shape_cast %140 : vector<1x1x8x64xf32> to vector<8x64xf32>
    %cst_113 = arith.constant dense<0.000000e+00> : vector<1x8xf32>
    %142 = tpu.matmul %137, %139, %cst_113 {dimension_numbers = #tpu.dot_dimension_numbers<[1], [1], [0], [0], [0, 0, 1, 0], [], []>} : vector<1x64xf32>, vector<8x64xf32>, vector<1x8xf32> -> vector<1x8xf32>
    %cst_114 = arith.constant dense<0xFF800000> : vector<1xf32>
    %143 = vector.multi_reduction <maximumf>, %142, %cst_114 [1] : vector<1x8xf32> to vector<1xf32>
    %144 = vector.shape_cast %143 : vector<1xf32> to vector<1x1xf32>
    %145 = vector.broadcast %144 : vector<1x1xf32> to vector<1x8xf32>
    %146 = arith.subf %142, %145 : vector<1x8xf32>
    %147 = math.exp %146 : vector<1x8xf32>
    %cst_115 = arith.constant dense<0.000000e+00> : vector<1xf32>
    %148 = vector.multi_reduction <add>, %147, %cst_115 [1] : vector<1x8xf32> to vector<1xf32>
    %149 = vector.shape_cast %148 : vector<1xf32> to vector<1x1xf32>
    %150 = tpu.reciprocal %149 {approx = true} : vector<1x1xf32> -> vector<1x1xf32>
    %151 = vector.broadcast %150 : vector<1x1xf32> to vector<1x8xf32>
    %152 = arith.mulf %147, %151 : vector<1x8xf32>
    %cst_116 = arith.constant dense<0.000000e+00> : vector<1x64xf32>
    %153 = tpu.matmul %152, %141, %cst_116 {dimension_numbers = #tpu.dot_dimension_numbers<[1], [0], [0], [1], [0, 0, 1, 1], [], []>} : vector<1x8xf32>, vector<8x64xf32>, vector<1x64xf32> -> vector<1x64xf32>
    %c1_117 = arith.constant 1 : index
    %c64_118 = arith.constant 64 : index
    %154 = vector.load %arg31[%c1_117, %c64_118] : memref<2x128xf32, #tpu.memory_space<vmem>>, vector<1x64xf32>
    tpu.vector_store %arg31[%c1_117, %c64_118], %153 {strides = array<i32>} : memref<2x128xf32, #tpu.memory_space<vmem>>, vector<1x64xf32>,
    %c0_119 = arith.constant 0 : index
    %c0_120 = arith.constant 0 : index
    %155 = vector.load %arg31[%c0_119, %c0_120] : memref<2x128xf32, #tpu.memory_space<vmem>>, vector<2x128xf32>
    %c0_121 = arith.constant 0 : index
    %c0_122 = arith.constant 0 : index
    %c0_123 = arith.constant 0 : index
    %156 = vector.load %arg10[%c0_121, %c0_122, %c0_123] : memref<1x128x128xbf16, #tpu.memory_space<vmem>>, vector<1x128x128xbf16>
    %157 = vector.shape_cast %156 : vector<1x128x128xbf16> to vector<128x128xbf16>
    %158 = arith.truncf %155 : vector<2x128xf32> to vector<2x128xbf16>
    %cst_124 = arith.constant dense<0.000000e+00> : vector<2x128xf32>
    %159 = tpu.matmul %158, %157, %cst_124 {dimension_numbers = #tpu.dot_dimension_numbers<[1], [0], [0], [1], [0, 0, 1, 1], [], []>} : vector<2x128xbf16>, vector<128x128xbf16>, vector<2x128xf32> -> vector<2x128xf32>
    %160 = arith.addf %3, %159 : vector<2x128xf32>
    %c0_125 = arith.constant 0 : index
    %c0_126 = arith.constant 0 : index
    %c0_127 = arith.constant 0 : index
    %161 = vector.load %arg11[%c0_125, %c0_126, %c0_127] : memref<1x1x128xf32, #tpu.memory_space<vmem>>, vector<1x1x128xf32>
    %162 = vector.shape_cast %161 : vector<1x1x128xf32> to vector<1x128xf32>
    %163 = vector.broadcast %162 : vector<1x128xf32> to vector<2x128xf32>
    %164 = arith.addf %160, %163 : vector<2x128xf32>
    %c0_128 = arith.constant 0 : index
    %c0_129 = arith.constant 0 : index
    %c0_130 = arith.constant 0 : index
    %165 = vector.load %arg12[%c0_128, %c0_129, %c0_130] : memref<1x1x128xf32, #tpu.memory_space<vmem>>, vector<1x1x128xf32>
    %166 = vector.shape_cast %165 : vector<1x1x128xf32> to vector<1x128xf32>
    %c0_131 = arith.constant 0 : index
    %c0_132 = arith.constant 0 : index
    %c0_133 = arith.constant 0 : index
    %167 = vector.load %arg13[%c0_131, %c0_132, %c0_133] : memref<1x1x128xf32, #tpu.memory_space<vmem>>, vector<1x1x128xf32>
    %168 = vector.shape_cast %167 : vector<1x1x128xf32> to vector<1x128xf32>
    %cst_134 = arith.constant dense<0.000000e+00> : vector<2xf32>
    %169 = vector.multi_reduction <add>, %164, %cst_134 [1] : vector<2x128xf32> to vector<2xf32>
    %170 = vector.shape_cast %169 : vector<2xf32> to vector<2x1xf32>
    %cst_135 = arith.constant 1.280000e+02 : f32
    %171 = vector.broadcast %cst_135 : f32 to vector<2x1xf32>
    %172 = arith.divf %170, %171 : vector<2x1xf32>
    %173 = vector.broadcast %172 : vector<2x1xf32> to vector<2x128xf32>
    %174 = arith.subf %164, %173 : vector<2x128xf32>
    %175 = arith.mulf %174, %174 : vector<2x128xf32>
    %cst_136 = arith.constant dense<0.000000e+00> : vector<2xf32>
    %176 = vector.multi_reduction <add>, %175, %cst_136 [1] : vector<2x128xf32> to vector<2xf32>
    %177 = vector.shape_cast %176 : vector<2xf32> to vector<2x1xf32>
    %cst_137 = arith.constant 1.280000e+02 : f32
    %178 = vector.broadcast %cst_137 : f32 to vector<2x1xf32>
    %179 = arith.divf %177, %178 : vector<2x1xf32>
    %cst_138 = arith.constant 9.99999974E-6 : f32
    %180 = vector.broadcast %cst_138 : f32 to vector<2x1xf32>
    %181 = arith.addf %179, %180 : vector<2x1xf32>
    %182 = math.rsqrt %181 : vector<2x1xf32>
    %183 = vector.broadcast %182 : vector<2x1xf32> to vector<2x128xf32>
    %184 = arith.mulf %174, %183 : vector<2x128xf32>
    %185 = vector.broadcast %166 : vector<1x128xf32> to vector<2x128xf32>
    %186 = arith.mulf %184, %185 : vector<2x128xf32>
    %187 = vector.broadcast %168 : vector<1x128xf32> to vector<2x128xf32>
    %188 = arith.addf %186, %187 : vector<2x128xf32>
    %c0_139 = arith.constant 0 : index
    %c0_140 = arith.constant 0 : index
    %c0_141 = arith.constant 0 : index
    %189 = vector.load %arg14[%c0_139, %c0_140, %c0_141] : memref<1x128x128xbf16, #tpu.memory_space<vmem>>, vector<1x128x128xbf16>
    %190 = vector.shape_cast %189 : vector<1x128x128xbf16> to vector<128x128xbf16>
    %191 = arith.truncf %188 : vector<2x128xf32> to vector<2x128xbf16>
    %cst_142 = arith.constant dense<0.000000e+00> : vector<2x128xf32>
    %192 = tpu.matmul %191, %190, %cst_142 {dimension_numbers = #tpu.dot_dimension_numbers<[1], [0], [0], [1], [0, 0, 1, 1], [], []>} : vector<2x128xbf16>, vector<128x128xbf16>, vector<2x128xf32> -> vector<2x128xf32>
    %c0_143 = arith.constant 0 : index
    %c0_144 = arith.constant 0 : index
    %c0_145 = arith.constant 0 : index
    %193 = vector.load %arg15[%c0_143, %c0_144, %c0_145] : memref<1x1x128xf32, #tpu.memory_space<vmem>>, vector<1x1x128xf32>
    %194 = vector.shape_cast %193 : vector<1x1x128xf32> to vector<1x128xf32>
    %195 = vector.broadcast %194 : vector<1x128xf32> to vector<2x128xf32>
    %196 = arith.addf %192, %195 : vector<2x128xf32>
    %cst_146 = arith.constant 1.250000e-01 : f32
    %197 = vector.broadcast %cst_146 : f32 to vector<2x128xf32>
    %198 = arith.mulf %196, %197 : vector<2x128xf32>
    %199 = vector.extract_strided_slice %198 {offsets = [0, 0], sizes = [1, 64], strides = [1, 1]} : vector<2x128xf32> to vector<1x64xf32>
    %c0_147 = arith.constant 0 : index
    %c0_148 = arith.constant 0 : index
    %c0_149 = arith.constant 0 : index
    %c0_150 = arith.constant 0 : index
    %200 = vector.load %arg4[%c0_147, %c0_148, %c0_149, %c0_150] : memref<1x4x16x64xf32, #tpu.memory_space<vmem>>, vector<1x1x16x64xf32>
    %201 = vector.shape_cast %200 : vector<1x1x16x64xf32> to vector<16x64xf32>
    %c0_151 = arith.constant 0 : index
    %c0_152 = arith.constant 0 : index
    %c0_153 = arith.constant 0 : index
    %c0_154 = arith.constant 0 : index
    %202 = vector.load %arg5[%c0_151, %c0_152, %c0_153, %c0_154] : memref<1x4x16x64xf32, #tpu.memory_space<vmem>>, vector<1x1x16x64xf32>
    %203 = vector.shape_cast %202 : vector<1x1x16x64xf32> to vector<16x64xf32>
    %cst_155 = arith.constant dense<0.000000e+00> : vector<1x16xf32>
    %204 = tpu.matmul %199, %201, %cst_155 {dimension_numbers = #tpu.dot_dimension_numbers<[1], [1], [0], [0], [0, 0, 1, 0], [], []>} : vector<1x64xf32>, vector<16x64xf32>, vector<1x16xf32> -> vector<1x16xf32>
    %cst_156 = arith.constant dense<0xFF800000> : vector<1xf32>
    %205 = vector.multi_reduction <maximumf>, %204, %cst_156 [1] : vector<1x16xf32> to vector<1xf32>
    %206 = vector.shape_cast %205 : vector<1xf32> to vector<1x1xf32>
    %207 = vector.broadcast %206 : vector<1x1xf32> to vector<1x16xf32>
    %208 = arith.subf %204, %207 : vector<1x16xf32>
    %209 = math.exp %208 : vector<1x16xf32>
    %cst_157 = arith.constant dense<0.000000e+00> : vector<1xf32>
    %210 = vector.multi_reduction <add>, %209, %cst_157 [1] : vector<1x16xf32> to vector<1xf32>
    %211 = vector.shape_cast %210 : vector<1xf32> to vector<1x1xf32>
    %212 = tpu.reciprocal %211 {approx = true} : vector<1x1xf32> -> vector<1x1xf32>
    %213 = vector.broadcast %212 : vector<1x1xf32> to vector<1x16xf32>
    %214 = arith.mulf %209, %213 : vector<1x16xf32>
    %cst_158 = arith.constant dense<0.000000e+00> : vector<1x64xf32>
    %215 = tpu.matmul %214, %203, %cst_158 {dimension_numbers = #tpu.dot_dimension_numbers<[1], [0], [0], [1], [0, 0, 1, 1], [], []>} : vector<1x16xf32>, vector<16x64xf32>, vector<1x64xf32> -> vector<1x64xf32>
    %c0_159 = arith.constant 0 : index
    %c0_160 = arith.constant 0 : index
    %216 = vector.load %arg31[%c0_159, %c0_160] : memref<2x128xf32, #tpu.memory_space<vmem>>, vector<1x64xf32>
    tpu.vector_store %arg31[%c0_159, %c0_160], %215 {strides = array<i32>} : memref<2x128xf32, #tpu.memory_space<vmem>>, vector<1x64xf32>,
    %217 = vector.extract_strided_slice %198 {offsets = [0, 64], sizes = [1, 64], strides = [1, 1]} : vector<2x128xf32> to vector<1x64xf32>
    %c0_161 = arith.constant 0 : index
    %c1_162 = arith.constant 1 : index
    %c0_163 = arith.constant 0 : index
    %c0_164 = arith.constant 0 : index
    %218 = vector.load %arg4[%c0_161, %c1_162, %c0_163, %c0_164] : memref<1x4x16x64xf32, #tpu.memory_space<vmem>>, vector<1x1x16x64xf32>
    %219 = vector.shape_cast %218 : vector<1x1x16x64xf32> to vector<16x64xf32>
    %c0_165 = arith.constant 0 : index
    %c1_166 = arith.constant 1 : index
    %c0_167 = arith.constant 0 : index
    %c0_168 = arith.constant 0 : index
    %220 = vector.load %arg5[%c0_165, %c1_166, %c0_167, %c0_168] : memref<1x4x16x64xf32, #tpu.memory_space<vmem>>, vector<1x1x16x64xf32>
    %221 = vector.shape_cast %220 : vector<1x1x16x64xf32> to vector<16x64xf32>
    %cst_169 = arith.constant dense<0.000000e+00> : vector<1x16xf32>
    %222 = tpu.matmul %217, %219, %cst_169 {dimension_numbers = #tpu.dot_dimension_numbers<[1], [1], [0], [0], [0, 0, 1, 0], [], []>} : vector<1x64xf32>, vector<16x64xf32>, vector<1x16xf32> -> vector<1x16xf32>
    %cst_170 = arith.constant dense<0xFF800000> : vector<1xf32>
    %223 = vector.multi_reduction <maximumf>, %222, %cst_170 [1] : vector<1x16xf32> to vector<1xf32>
    %224 = vector.shape_cast %223 : vector<1xf32> to vector<1x1xf32>
    %225 = vector.broadcast %224 : vector<1x1xf32> to vector<1x16xf32>
    %226 = arith.subf %222, %225 : vector<1x16xf32>
    %227 = math.exp %226 : vector<1x16xf32>
    %cst_171 = arith.constant dense<0.000000e+00> : vector<1xf32>
    %228 = vector.multi_reduction <add>, %227, %cst_171 [1] : vector<1x16xf32> to vector<1xf32>
    %229 = vector.shape_cast %228 : vector<1xf32> to vector<1x1xf32>
    %230 = tpu.reciprocal %229 {approx = true} : vector<1x1xf32> -> vector<1x1xf32>
    %231 = vector.broadcast %230 : vector<1x1xf32> to vector<1x16xf32>
    %232 = arith.mulf %227, %231 : vector<1x16xf32>
    %cst_172 = arith.constant dense<0.000000e+00> : vector<1x64xf32>
    %233 = tpu.matmul %232, %221, %cst_172 {dimension_numbers = #tpu.dot_dimension_numbers<[1], [0], [0], [1], [0, 0, 1, 1], [], []>} : vector<1x16xf32>, vector<16x64xf32>, vector<1x64xf32> -> vector<1x64xf32>
    %c0_173 = arith.constant 0 : index
    %c64_174 = arith.constant 64 : index
    %234 = vector.load %arg31[%c0_173, %c64_174] : memref<2x128xf32, #tpu.memory_space<vmem>>, vector<1x64xf32>
    tpu.vector_store %arg31[%c0_173, %c64_174], %233 {strides = array<i32>} : memref<2x128xf32, #tpu.memory_space<vmem>>, vector<1x64xf32>,
    %235 = vector.extract_strided_slice %198 {offsets = [1, 0], sizes = [1, 64], strides = [1, 1]} : vector<2x128xf32> to vector<1x64xf32>
    %c0_175 = arith.constant 0 : index
    %c2_176 = arith.constant 2 : index
    %c0_177 = arith.constant 0 : index
    %c0_178 = arith.constant 0 : index
    %236 = vector.load %arg4[%c0_175, %c2_176, %c0_177, %c0_178] : memref<1x4x16x64xf32, #tpu.memory_space<vmem>>, vector<1x1x16x64xf32>
    %237 = vector.shape_cast %236 : vector<1x1x16x64xf32> to vector<16x64xf32>
    %c0_179 = arith.constant 0 : index
    %c2_180 = arith.constant 2 : index
    %c0_181 = arith.constant 0 : index
    %c0_182 = arith.constant 0 : index
    %238 = vector.load %arg5[%c0_179, %c2_180, %c0_181, %c0_182] : memref<1x4x16x64xf32, #tpu.memory_space<vmem>>, vector<1x1x16x64xf32>
    %239 = vector.shape_cast %238 : vector<1x1x16x64xf32> to vector<16x64xf32>
    %cst_183 = arith.constant dense<0.000000e+00> : vector<1x16xf32>
    %240 = tpu.matmul %235, %237, %cst_183 {dimension_numbers = #tpu.dot_dimension_numbers<[1], [1], [0], [0], [0, 0, 1, 0], [], []>} : vector<1x64xf32>, vector<16x64xf32>, vector<1x16xf32> -> vector<1x16xf32>
    %cst_184 = arith.constant dense<0xFF800000> : vector<1xf32>
    %241 = vector.multi_reduction <maximumf>, %240, %cst_184 [1] : vector<1x16xf32> to vector<1xf32>
    %242 = vector.shape_cast %241 : vector<1xf32> to vector<1x1xf32>
    %243 = vector.broadcast %242 : vector<1x1xf32> to vector<1x16xf32>
    %244 = arith.subf %240, %243 : vector<1x16xf32>
    %245 = math.exp %244 : vector<1x16xf32>
    %cst_185 = arith.constant dense<0.000000e+00> : vector<1xf32>
    %246 = vector.multi_reduction <add>, %245, %cst_185 [1] : vector<1x16xf32> to vector<1xf32>
    %247 = vector.shape_cast %246 : vector<1xf32> to vector<1x1xf32>
    %248 = tpu.reciprocal %247 {approx = true} : vector<1x1xf32> -> vector<1x1xf32>
    %249 = vector.broadcast %248 : vector<1x1xf32> to vector<1x16xf32>
    %250 = arith.mulf %245, %249 : vector<1x16xf32>
    %cst_186 = arith.constant dense<0.000000e+00> : vector<1x64xf32>
    %251 = tpu.matmul %250, %239, %cst_186 {dimension_numbers = #tpu.dot_dimension_numbers<[1], [0], [0], [1], [0, 0, 1, 1], [], []>} : vector<1x16xf32>, vector<16x64xf32>, vector<1x64xf32> -> vector<1x64xf32>
    %c1_187 = arith.constant 1 : index
    %c0_188 = arith.constant 0 : index
    %252 = vector.load %arg31[%c1_187, %c0_188] : memref<2x128xf32, #tpu.memory_space<vmem>>, vector<1x64xf32>
    tpu.vector_store %arg31[%c1_187, %c0_188], %251 {strides = array<i32>} : memref<2x128xf32, #tpu.memory_space<vmem>>, vector<1x64xf32>,
    %253 = vector.extract_strided_slice %198 {offsets = [1, 64], sizes = [1, 64], strides = [1, 1]} : vector<2x128xf32> to vector<1x64xf32>
    %c0_189 = arith.constant 0 : index
    %c3_190 = arith.constant 3 : index
    %c0_191 = arith.constant 0 : index
    %c0_192 = arith.constant 0 : index
    %254 = vector.load %arg4[%c0_189, %c3_190, %c0_191, %c0_192] : memref<1x4x16x64xf32, #tpu.memory_space<vmem>>, vector<1x1x16x64xf32>
    %255 = vector.shape_cast %254 : vector<1x1x16x64xf32> to vector<16x64xf32>
    %c0_193 = arith.constant 0 : index
    %c3_194 = arith.constant 3 : index
    %c0_195 = arith.constant 0 : index
    %c0_196 = arith.constant 0 : index
    %256 = vector.load %arg5[%c0_193, %c3_194, %c0_195, %c0_196] : memref<1x4x16x64xf32, #tpu.memory_space<vmem>>, vector<1x1x16x64xf32>
    %257 = vector.shape_cast %256 : vector<1x1x16x64xf32> to vector<16x64xf32>
    %cst_197 = arith.constant dense<0.000000e+00> : vector<1x16xf32>
    %258 = tpu.matmul %253, %255, %cst_197 {dimension_numbers = #tpu.dot_dimension_numbers<[1], [1], [0], [0], [0, 0, 1, 0], [], []>} : vector<1x64xf32>, vector<16x64xf32>, vector<1x16xf32> -> vector<1x16xf32>
    %cst_198 = arith.constant dense<0xFF800000> : vector<1xf32>
    %259 = vector.multi_reduction <maximumf>, %258, %cst_198 [1] : vector<1x16xf32> to vector<1xf32>
    %260 = vector.shape_cast %259 : vector<1xf32> to vector<1x1xf32>
    %261 = vector.broadcast %260 : vector<1x1xf32> to vector<1x16xf32>
    %262 = arith.subf %258, %261 : vector<1x16xf32>
    %263 = math.exp %262 : vector<1x16xf32>
    %cst_199 = arith.constant dense<0.000000e+00> : vector<1xf32>
    %264 = vector.multi_reduction <add>, %263, %cst_199 [1] : vector<1x16xf32> to vector<1xf32>
    %265 = vector.shape_cast %264 : vector<1xf32> to vector<1x1xf32>
    %266 = tpu.reciprocal %265 {approx = true} : vector<1x1xf32> -> vector<1x1xf32>
    %267 = vector.broadcast %266 : vector<1x1xf32> to vector<1x16xf32>
    %268 = arith.mulf %263, %267 : vector<1x16xf32>
    %cst_200 = arith.constant dense<0.000000e+00> : vector<1x64xf32>
    %269 = tpu.matmul %268, %257, %cst_200 {dimension_numbers = #tpu.dot_dimension_numbers<[1], [0], [0], [1], [0, 0, 1, 1], [], []>} : vector<1x16xf32>, vector<16x64xf32>, vector<1x64xf32> -> vector<1x64xf32>
    %c1_201 = arith.constant 1 : index
    %c64_202 = arith.constant 64 : index
    %270 = vector.load %arg31[%c1_201, %c64_202] : memref<2x128xf32, #tpu.memory_space<vmem>>, vector<1x64xf32>
    tpu.vector_store %arg31[%c1_201, %c64_202], %269 {strides = array<i32>} : memref<2x128xf32, #tpu.memory_space<vmem>>, vector<1x64xf32>,
    %c0_203 = arith.constant 0 : index
    %c0_204 = arith.constant 0 : index
    %271 = vector.load %arg31[%c0_203, %c0_204] : memref<2x128xf32, #tpu.memory_space<vmem>>, vector<2x128xf32>
    %c0_205 = arith.constant 0 : index
    %c0_206 = arith.constant 0 : index
    %c0_207 = arith.constant 0 : index
    %272 = vector.load %arg16[%c0_205, %c0_206, %c0_207] : memref<1x128x128xbf16, #tpu.memory_space<vmem>>, vector<1x128x128xbf16>
    %273 = vector.shape_cast %272 : vector<1x128x128xbf16> to vector<128x128xbf16>
    %274 = arith.truncf %271 : vector<2x128xf32> to vector<2x128xbf16>
    %cst_208 = arith.constant dense<0.000000e+00> : vector<2x128xf32>
    %275 = tpu.matmul %274, %273, %cst_208 {dimension_numbers = #tpu.dot_dimension_numbers<[1], [0], [0], [1], [0, 0, 1, 1], [], []>} : vector<2x128xbf16>, vector<128x128xbf16>, vector<2x128xf32> -> vector<2x128xf32>
    %276 = arith.addf %164, %275 : vector<2x128xf32>
    %c0_209 = arith.constant 0 : index
    %c0_210 = arith.constant 0 : index
    %c0_211 = arith.constant 0 : index
    %277 = vector.load %arg17[%c0_209, %c0_210, %c0_211] : memref<1x1x128xf32, #tpu.memory_space<vmem>>, vector<1x1x128xf32>
    %278 = vector.shape_cast %277 : vector<1x1x128xf32> to vector<1x128xf32>
    %279 = vector.broadcast %278 : vector<1x128xf32> to vector<2x128xf32>
    %280 = arith.addf %276, %279 : vector<2x128xf32>
    %c0_212 = arith.constant 0 : index
    %c0_213 = arith.constant 0 : index
    %c0_214 = arith.constant 0 : index
    %281 = vector.load %arg18[%c0_212, %c0_213, %c0_214] : memref<1x1x128xf32, #tpu.memory_space<vmem>>, vector<1x1x128xf32>
    %282 = vector.shape_cast %281 : vector<1x1x128xf32> to vector<1x128xf32>
    %c0_215 = arith.constant 0 : index
    %c0_216 = arith.constant 0 : index
    %c0_217 = arith.constant 0 : index
    %283 = vector.load %arg19[%c0_215, %c0_216, %c0_217] : memref<1x1x128xf32, #tpu.memory_space<vmem>>, vector<1x1x128xf32>
    %284 = vector.shape_cast %283 : vector<1x1x128xf32> to vector<1x128xf32>
    %cst_218 = arith.constant dense<0.000000e+00> : vector<2xf32>
    %285 = vector.multi_reduction <add>, %280, %cst_218 [1] : vector<2x128xf32> to vector<2xf32>
    %286 = vector.shape_cast %285 : vector<2xf32> to vector<2x1xf32>
    %cst_219 = arith.constant 1.280000e+02 : f32
    %287 = vector.broadcast %cst_219 : f32 to vector<2x1xf32>
    %288 = arith.divf %286, %287 : vector<2x1xf32>
    %289 = vector.broadcast %288 : vector<2x1xf32> to vector<2x128xf32>
    %290 = arith.subf %280, %289 : vector<2x128xf32>
    %291 = arith.mulf %290, %290 : vector<2x128xf32>
    %cst_220 = arith.constant dense<0.000000e+00> : vector<2xf32>
    %292 = vector.multi_reduction <add>, %291, %cst_220 [1] : vector<2x128xf32> to vector<2xf32>
    %293 = vector.shape_cast %292 : vector<2xf32> to vector<2x1xf32>
    %cst_221 = arith.constant 1.280000e+02 : f32
    %294 = vector.broadcast %cst_221 : f32 to vector<2x1xf32>
    %295 = arith.divf %293, %294 : vector<2x1xf32>
    %cst_222 = arith.constant 9.99999974E-6 : f32
    %296 = vector.broadcast %cst_222 : f32 to vector<2x1xf32>
    %297 = arith.addf %295, %296 : vector<2x1xf32>
    %298 = math.rsqrt %297 : vector<2x1xf32>
    %299 = vector.broadcast %298 : vector<2x1xf32> to vector<2x128xf32>
    %300 = arith.mulf %290, %299 : vector<2x128xf32>
    %301 = vector.broadcast %282 : vector<1x128xf32> to vector<2x128xf32>
    %302 = arith.mulf %300, %301 : vector<2x128xf32>
    %303 = vector.broadcast %284 : vector<1x128xf32> to vector<2x128xf32>
    %304 = arith.addf %302, %303 : vector<2x128xf32>
    %c0_223 = arith.constant 0 : index
    %c0_224 = arith.constant 0 : index
    %c0_225 = arith.constant 0 : index
    %305 = vector.load %arg20[%c0_223, %c0_224, %c0_225] : memref<1x128x256xbf16, #tpu.memory_space<vmem>>, vector<1x128x256xbf16>
    %306 = vector.shape_cast %305 : vector<1x128x256xbf16> to vector<128x256xbf16>
    %307 = arith.truncf %304 : vector<2x128xf32> to vector<2x128xbf16>
    %cst_226 = arith.constant dense<0.000000e+00> : vector<2x256xf32>
    %308 = tpu.matmul %307, %306, %cst_226 {dimension_numbers = #tpu.dot_dimension_numbers<[1], [0], [0], [1], [0, 0, 1, 1], [], []>} : vector<2x128xbf16>, vector<128x256xbf16>, vector<2x256xf32> -> vector<2x256xf32>
    %c0_227 = arith.constant 0 : index
    %c0_228 = arith.constant 0 : index
    %c0_229 = arith.constant 0 : index
    %309 = vector.load %arg21[%c0_227, %c0_228, %c0_229] : memref<1x1x256xf32, #tpu.memory_space<vmem>>, vector<1x1x256xf32>
    %310 = vector.shape_cast %309 : vector<1x1x256xf32> to vector<1x256xf32>
    %311 = vector.broadcast %310 : vector<1x256xf32> to vector<2x256xf32>
    %312 = arith.addf %308, %311 : vector<2x256xf32>
    %cst_230 = arith.constant 5.000000e-01 : f32
    %313 = vector.broadcast %cst_230 : f32 to vector<2x256xf32>
    %314 = arith.mulf %313, %312 : vector<2x256xf32>
    %cst_231 = arith.constant 0.707106769 : f32
    %315 = vector.broadcast %cst_231 : f32 to vector<2x256xf32>
    %316 = arith.mulf %312, %315 : vector<2x256xf32>
    %cst_232 = arith.constant -4.000000e+00 : f32
    %cst_233 = arith.constant 4.000000e+00 : f32
    %317 = vector.broadcast %cst_232 : f32 to vector<2x256xf32>
    %318 = arith.maximumf %317, %316 : vector<2x256xf32>
    %319 = vector.broadcast %cst_233 : f32 to vector<2x256xf32>
    %320 = arith.minimumf %319, %318 : vector<2x256xf32>
    %321 = arith.mulf %320, %320 : vector<2x256xf32>
    %cst_234 = arith.constant -2.72614237E-10 : f32
    %322 = vector.broadcast %cst_234 : f32 to vector<2x256xf32>
    %323 = arith.mulf %322, %321 : vector<2x256xf32>
    %cst_235 = arith.constant 2.77068146E-8 : f32
    %324 = vector.broadcast %cst_235 : f32 to vector<2x256xf32>
    %325 = arith.addf %323, %324 : vector<2x256xf32>
    %326 = arith.mulf %325, %321 : vector<2x256xf32>
    %cst_236 = arith.constant -2.10102394E-6 : f32
    %327 = vector.broadcast %cst_236 : f32 to vector<2x256xf32>
    %328 = arith.addf %326, %327 : vector<2x256xf32>
    %329 = arith.mulf %328, %321 : vector<2x256xf32>
    %cst_237 = arith.constant -5.69250624E-5 : f32
    %330 = vector.broadcast %cst_237 : f32 to vector<2x256xf32>
    %331 = arith.addf %329, %330 : vector<2x256xf32>
    %332 = arith.mulf %331, %321 : vector<2x256xf32>
    %cst_238 = arith.constant -7.34990637E-4 : f32
    %333 = vector.broadcast %cst_238 : f32 to vector<2x256xf32>
    %334 = arith.addf %332, %333 : vector<2x256xf32>
    %335 = arith.mulf %334, %321 : vector<2x256xf32>
    %cst_239 = arith.constant -2.954600e-03 : f32
    %336 = vector.broadcast %cst_239 : f32 to vector<2x256xf32>
    %337 = arith.addf %335, %336 : vector<2x256xf32>
    %338 = arith.mulf %337, %321 : vector<2x256xf32>
    %cst_240 = arith.constant -0.0160960332 : f32
    %339 = vector.broadcast %cst_240 : f32 to vector<2x256xf32>
    %340 = arith.addf %338, %339 : vector<2x256xf32>
    %341 = arith.mulf %320, %340 : vector<2x256xf32>
    %cst_241 = arith.constant -1.45660715E-5 : f32
    %342 = vector.broadcast %cst_241 : f32 to vector<2x256xf32>
    %343 = arith.mulf %342, %321 : vector<2x256xf32>
    %cst_242 = arith.constant -2.13374049E-4 : f32
    %344 = vector.broadcast %cst_242 : f32 to vector<2x256xf32>
    %345 = arith.addf %343, %344 : vector<2x256xf32>
    %346 = arith.mulf %345, %321 : vector<2x256xf32>
    %cst_243 = arith.constant -0.00168282702 : f32
    %347 = vector.broadcast %cst_243 : f32 to vector<2x256xf32>
    %348 = arith.addf %346, %347 : vector<2x256xf32>
    %349 = arith.mulf %348, %321 : vector<2x256xf32>
    %cst_244 = arith.constant -0.00737332925 : f32
    %350 = vector.broadcast %cst_244 : f32 to vector<2x256xf32>
    %351 = arith.addf %349, %350 : vector<2x256xf32>
    %352 = arith.mulf %351, %321 : vector<2x256xf32>
    %cst_245 = arith.constant -0.0142647391 : f32
    %353 = vector.broadcast %cst_245 : f32 to vector<2x256xf32>
    %354 = arith.addf %352, %353 : vector<2x256xf32>
    %355 = arith.divf %341, %354 : vector<2x256xf32>
    %cst_246 = arith.constant 1.000000e+00 : f32
    %356 = vector.broadcast %cst_246 : f32 to vector<2x256xf32>
    %357 = arith.addf %356, %355 : vector<2x256xf32>
    %358 = arith.mulf %314, %357 : vector<2x256xf32>
    %c0_247 = arith.constant 0 : index
    %c0_248 = arith.constant 0 : index
    %c0_249 = arith.constant 0 : index
    %359 = vector.load %arg22[%c0_247, %c0_248, %c0_249] : memref<1x256x128xbf16, #tpu.memory_space<vmem>>, vector<1x256x128xbf16>
    %360 = vector.shape_cast %359 : vector<1x256x128xbf16> to vector<256x128xbf16>
    %361 = arith.truncf %358 : vector<2x256xf32> to vector<2x256xbf16>
    %cst_250 = arith.constant dense<0.000000e+00> : vector<2x128xf32>
    %362 = tpu.matmul %361, %360, %cst_250 {dimension_numbers = #tpu.dot_dimension_numbers<[1], [0], [0], [1], [0, 0, 1, 1], [], []>} : vector<2x256xbf16>, vector<256x128xbf16>, vector<2x128xf32> -> vector<2x128xf32>
    %363 = arith.addf %280, %362 : vector<2x128xf32>
    %c0_251 = arith.constant 0 : index
    %c0_252 = arith.constant 0 : index
    %c0_253 = arith.constant 0 : index
    %364 = vector.load %arg23[%c0_251, %c0_252, %c0_253] : memref<1x1x128xf32, #tpu.memory_space<vmem>>, vector<1x1x128xf32>
    %365 = vector.shape_cast %364 : vector<1x1x128xf32> to vector<1x128xf32>
    %366 = vector.broadcast %365 : vector<1x128xf32> to vector<2x128xf32>
    %367 = arith.addf %363, %366 : vector<2x128xf32>
    %c0_254 = arith.constant 0 : index
    %c0_255 = arith.constant 0 : index
    %368 = vector.load %arg30[%c0_254, %c0_255] : memref<2x128xf32, #tpu.memory_space<vmem>>, vector<2x128xf32>
    tpu.vector_store %arg30[%c0_254, %c0_255], %367 {strides = array<i32>} : memref<2x128xf32, #tpu.memory_space<vmem>>, vector<2x128xf32>,
    %c3_i32 = arith.constant 3 : i32
    %369 = arith.cmpi eq, %arg0, %c3_i32 : i32
    %370 = arith.extui %369 : i1 to i32
    %c0_i32_256 = arith.constant 0 : i32
    %371 = arith.cmpi ne, %370, %c0_i32_256 : i32
    scf.if %371 {
      %c0_257 = arith.constant 0 : index
      %c0_258 = arith.constant 0 : index
      %372 = vector.load %arg24[%c0_257, %c0_258] : memref<1x128xf32, #tpu.memory_space<vmem>>, vector<1x128xf32>
      %c0_259 = arith.constant 0 : index
      %c0_260 = arith.constant 0 : index
      %373 = vector.load %arg25[%c0_259, %c0_260] : memref<1x128xf32, #tpu.memory_space<vmem>>, vector<1x128xf32>
      %cst_261 = arith.constant dense<0.000000e+00> : vector<2xf32>
      %374 = vector.multi_reduction <add>, %367, %cst_261 [1] : vector<2x128xf32> to vector<2xf32>
      %375 = vector.shape_cast %374 : vector<2xf32> to vector<2x1xf32>
      %cst_262 = arith.constant 1.280000e+02 : f32
      %376 = vector.broadcast %cst_262 : f32 to vector<2x1xf32>
      %377 = arith.divf %375, %376 : vector<2x1xf32>
      %378 = vector.broadcast %377 : vector<2x1xf32> to vector<2x128xf32>
      %379 = arith.subf %367, %378 : vector<2x128xf32>
      %380 = arith.mulf %379, %379 : vector<2x128xf32>
      %cst_263 = arith.constant dense<0.000000e+00> : vector<2xf32>
      %381 = vector.multi_reduction <add>, %380, %cst_263 [1] : vector<2x128xf32> to vector<2xf32>
      %382 = vector.shape_cast %381 : vector<2xf32> to vector<2x1xf32>
      %cst_264 = arith.constant 1.280000e+02 : f32
      %383 = vector.broadcast %cst_264 : f32 to vector<2x1xf32>
      %384 = arith.divf %382, %383 : vector<2x1xf32>
      %cst_265 = arith.constant 9.99999974E-6 : f32
      %385 = vector.broadcast %cst_265 : f32 to vector<2x1xf32>
      %386 = arith.addf %384, %385 : vector<2x1xf32>
      %387 = math.rsqrt %386 : vector<2x1xf32>
      %388 = vector.broadcast %387 : vector<2x1xf32> to vector<2x128xf32>
      %389 = arith.mulf %379, %388 : vector<2x128xf32>
      %390 = vector.broadcast %372 : vector<1x128xf32> to vector<2x128xf32>
      %391 = arith.mulf %389, %390 : vector<2x128xf32>
      %392 = vector.broadcast %373 : vector<1x128xf32> to vector<2x128xf32>
      %393 = arith.addf %391, %392 : vector<2x128xf32>
      %394 = arith.truncf %393 : vector<2x128xf32> to vector<2x128xbf16>
      %c0_266 = arith.constant 0 : index
      %c0_267 = arith.constant 0 : index
      %395 = vector.load %arg26[%c0_266, %c0_267] : memref<384x128xbf16, #tpu.memory_space<vmem>>, vector<384x128xbf16>
      %cst_268 = arith.constant dense<0.000000e+00> : vector<2x384xf32>
      %396 = tpu.matmul %394, %395, %cst_268 {dimension_numbers = #tpu.dot_dimension_numbers<[1], [1], [0], [0], [0, 0, 1, 0], [], []>} : vector<2x128xbf16>, vector<384x128xbf16>, vector<2x384xf32> -> vector<2x384xf32>
      %c0_269 = arith.constant 0 : index
      %c0_270 = arith.constant 0 : index
      %397 = vector.load %arg27[%c0_269, %c0_270] : memref<2x384xf32, #tpu.memory_space<vmem>>, vector<2x384xf32>
      tpu.vector_store %arg27[%c0_269, %c0_270], %396 {strides = array<i32>} : memref<2x384xf32, #tpu.memory_space<vmem>>, vector<2x384xf32>,
    } else {
    }
    return
  }
  func.func @transform_0(%arg0: i32) -> (i32, i32) {
    %c0_i32 = arith.constant 0 : i32
    %c0_i32_0 = arith.constant 0 : i32
    %c0_i32_1 = arith.constant 0 : i32
    return %c0_i32, %c0_i32_0 : i32, i32
  }
  func.func @transform_1(%arg0: i32) -> (i32, i32, i32, i32) {
    %c0_i32 = arith.constant 0 : i32
    %c0_i32_0 = arith.constant 0 : i32
    %c0_i32_1 = arith.constant 0 : i32
    %c0_i32_2 = arith.constant 0 : i32
    return %arg0, %c0_i32, %c0_i32_0, %c0_i32_1 : i32, i32, i32, i32
  }
  func.func @transform_2(%arg0: i32) -> (i32, i32, i32, i32) {
    %c0_i32 = arith.constant 0 : i32
    %c0_i32_0 = arith.constant 0 : i32
    %c0_i32_1 = arith.constant 0 : i32
    %c0_i32_2 = arith.constant 0 : i32
    return %arg0, %c0_i32, %c0_i32_0, %c0_i32_1 : i32, i32, i32, i32
  }
  func.func @transform_3(%arg0: i32) -> (i32, i32, i32, i32) {
    %c0_i32 = arith.constant 0 : i32
    %c0_i32_0 = arith.constant 0 : i32
    %c0_i32_1 = arith.constant 0 : i32
    %c0_i32_2 = arith.constant 0 : i32
    return %arg0, %c0_i32, %c0_i32_0, %c0_i32_1 : i32, i32, i32, i32
  }
  func.func @transform_4(%arg0: i32) -> (i32, i32, i32, i32) {
    %c0_i32 = arith.constant 0 : i32
    %c0_i32_0 = arith.constant 0 : i32
    %c0_i32_1 = arith.constant 0 : i32
    %c0_i32_2 = arith.constant 0 : i32
    return %arg0, %c0_i32, %c0_i32_0, %c0_i32_1 : i32, i32, i32, i32
  }
  func.func @transform_5(%arg0: i32) -> (i32, i32, i32) {
    %c0_i32 = arith.constant 0 : i32
    %c0_i32_0 = arith.constant 0 : i32
    %c0_i32_1 = arith.constant 0 : i32
    return %arg0, %c0_i32, %c0_i32_0 : i32, i32, i32
  }
  func.func @transform_6(%arg0: i32) -> (i32, i32, i32) {
    %c0_i32 = arith.constant 0 : i32
    %c0_i32_0 = arith.constant 0 : i32
    %c0_i32_1 = arith.constant 0 : i32
    return %arg0, %c0_i32, %c0_i32_0 : i32, i32, i32
  }
  func.func @transform_7(%arg0: i32) -> (i32, i32, i32) {
    %c0_i32 = arith.constant 0 : i32
    %c0_i32_0 = arith.constant 0 : i32
    %c0_i32_1 = arith.constant 0 : i32
    return %arg0, %c0_i32, %c0_i32_0 : i32, i32, i32
  }
  func.func @transform_8(%arg0: i32) -> (i32, i32, i32) {
    %c0_i32 = arith.constant 0 : i32
    %c0_i32_0 = arith.constant 0 : i32
    %c0_i32_1 = arith.constant 0 : i32
    return %arg0, %c0_i32, %c0_i32_0 : i32, i32, i32
  }
  func.func @transform_9(%arg0: i32) -> (i32, i32, i32) {
    %c0_i32 = arith.constant 0 : i32
    %c0_i32_0 = arith.constant 0 : i32
    %c0_i32_1 = arith.constant 0 : i32
    return %arg0, %c0_i32, %c0_i32_0 : i32, i32, i32
  }
  func.func @transform_10(%arg0: i32) -> (i32, i32, i32) {
    %c0_i32 = arith.constant 0 : i32
    %c0_i32_0 = arith.constant 0 : i32
    %c0_i32_1 = arith.constant 0 : i32
    return %arg0, %c0_i32, %c0_i32_0 : i32, i32, i32
  }
  func.func @transform_11(%arg0: i32) -> (i32, i32, i32) {
    %c0_i32 = arith.constant 0 : i32
    %c0_i32_0 = arith.constant 0 : i32
    %c0_i32_1 = arith.constant 0 : i32
    return %arg0, %c0_i32, %c0_i32_0 : i32, i32, i32
  }
  func.func @transform_12(%arg0: i32) -> (i32, i32, i32) {
    %c0_i32 = arith.constant 0 : i32
    %c0_i32_0 = arith.constant 0 : i32
    %c0_i32_1 = arith.constant 0 : i32
    return %arg0, %c0_i32, %c0_i32_0 : i32, i32, i32
  }
  func.func @transform_13(%arg0: i32) -> (i32, i32, i32) {
    %c0_i32 = arith.constant 0 : i32
    %c0_i32_0 = arith.constant 0 : i32
    %c0_i32_1 = arith.constant 0 : i32
    return %arg0, %c0_i32, %c0_i32_0 : i32, i32, i32
  }
  func.func @transform_14(%arg0: i32) -> (i32, i32, i32) {
    %c0_i32 = arith.constant 0 : i32
    %c0_i32_0 = arith.constant 0 : i32
    %c0_i32_1 = arith.constant 0 : i32
    return %arg0, %c0_i32, %c0_i32_0 : i32, i32, i32
  }
  func.func @transform_15(%arg0: i32) -> (i32, i32, i32) {
    %c0_i32 = arith.constant 0 : i32
    %c0_i32_0 = arith.constant 0 : i32
    %c0_i32_1 = arith.constant 0 : i32
    return %arg0, %c0_i32, %c0_i32_0 : i32, i32, i32
  }
  func.func @transform_16(%arg0: i32) -> (i32, i32, i32) {
    %c0_i32 = arith.constant 0 : i32
    %c0_i32_0 = arith.constant 0 : i32
    %c0_i32_1 = arith.constant 0 : i32
    return %arg0, %c0_i32, %c0_i32_0 : i32, i32, i32
  }
  func.func @transform_17(%arg0: i32) -> (i32, i32, i32) {
    %c0_i32 = arith.constant 0 : i32
    %c0_i32_0 = arith.constant 0 : i32
    %c0_i32_1 = arith.constant 0 : i32
    return %arg0, %c0_i32, %c0_i32_0 : i32, i32, i32
  }
  func.func @transform_18(%arg0: i32) -> (i32, i32, i32) {
    %c0_i32 = arith.constant 0 : i32
    %c0_i32_0 = arith.constant 0 : i32
    %c0_i32_1 = arith.constant 0 : i32
    return %arg0, %c0_i32, %c0_i32_0 : i32, i32, i32
  }
  func.func @transform_19(%arg0: i32) -> (i32, i32, i32) {
    %c0_i32 = arith.constant 0 : i32
    %c0_i32_0 = arith.constant 0 : i32
    %c0_i32_1 = arith.constant 0 : i32
    return %arg0, %c0_i32, %c0_i32_0 : i32, i32, i32
  }
  func.func @transform_20(%arg0: i32) -> (i32, i32, i32) {
    %c0_i32 = arith.constant 0 : i32
    %c0_i32_0 = arith.constant 0 : i32
    %c0_i32_1 = arith.constant 0 : i32
    return %arg0, %c0_i32, %c0_i32_0 : i32, i32, i32
  }
  func.func @transform_21(%arg0: i32) -> (i32, i32, i32) {
    %c0_i32 = arith.constant 0 : i32
    %c0_i32_0 = arith.constant 0 : i32
    %c0_i32_1 = arith.constant 0 : i32
    return %arg0, %c0_i32, %c0_i32_0 : i32, i32, i32
  }
  func.func @transform_22(%arg0: i32) -> (i32, i32, i32) {
    %c0_i32 = arith.constant 0 : i32
    %c0_i32_0 = arith.constant 0 : i32
    %c0_i32_1 = arith.constant 0 : i32
    return %arg0, %c0_i32, %c0_i32_0 : i32, i32, i32
  }
  func.func @transform_23(%arg0: i32) -> (i32, i32) {
    %c0_i32 = arith.constant 0 : i32
    %c0_i32_0 = arith.constant 0 : i32
    %c0_i32_1 = arith.constant 0 : i32
    return %c0_i32, %c0_i32_0 : i32, i32
  }
  func.func @transform_24(%arg0: i32) -> (i32, i32) {
    %c0_i32 = arith.constant 0 : i32
    %c0_i32_0 = arith.constant 0 : i32
    %c0_i32_1 = arith.constant 0 : i32
    return %c0_i32, %c0_i32_0 : i32, i32
  }
  func.func @transform_25(%arg0: i32) -> (i32, i32) {
    %c0_i32 = arith.constant 0 : i32
    %c0_i32_0 = arith.constant 0 : i32
    %c0_i32_1 = arith.constant 0 : i32
    return %c0_i32, %c0_i32_0 : i32, i32
  }
  func.func @transform_26(%arg0: i32) -> (i32, i32) {
    %c0_i32 = arith.constant 0 : i32
    %c0_i32_0 = arith.constant 0 : i32
    %c0_i32_1 = arith.constant 0 : i32
    return %c0_i32, %c0_i32_0 : i32, i32
  }
  func.func @transform_27(%arg0: i32) -> (i32, i32, i32, i32) {
    %c0_i32 = arith.constant 0 : i32
    %c0_i32_0 = arith.constant 0 : i32
    %c0_i32_1 = arith.constant 0 : i32
    %c0_i32_2 = arith.constant 0 : i32
    return %arg0, %c0_i32, %c0_i32_0, %c0_i32_1 : i32, i32, i32, i32
  }
  func.func @transform_28(%arg0: i32) -> (i32, i32, i32, i32) {
    %c0_i32 = arith.constant 0 : i32
    %c0_i32_0 = arith.constant 0 : i32
    %c0_i32_1 = arith.constant 0 : i32
    %c0_i32_2 = arith.constant 0 : i32
    return %arg0, %c0_i32, %c0_i32_0, %c0_i32_1 : i32, i32, i32, i32
  }
}

</mosaic_0001>

<llo_original>
// kernel: whisper_decoder_with_past.1
$region0: #{whisper_decoder_with_past.1}
  #allocation0 [shape = 'u32[]', space=smem, size = 0x4, offset = 0x4, fixed_abs, tag = 'smem constant byte address 0x4 - core index']
  #allocation1 [shape = 'u32[72,128]{1,0:T(1,128)}', space=vmem, size = 0x9000, scoped, tag = 'internal scratch']
  #allocation2 [shape = 'f32[2,128]{1,0:T(2,128)}', space=vmem, size = 0x400, scoped, tag = 'scratch operand']
  #allocation3 [shape = 'f32[2,128]{1,0:T(2,128)}', space=vmem, size = 0x400, scoped, tag = 'scratch operand']
  %s0 = inlined_call_operand.vmem [shape: f32[2,128], index: 0, kind: input, shape index: {}]
  %s1 = inlined_call_operand.vmem [shape: f32[4,4,7,64], index: 1, kind: input, shape index: {}]
  %s2 = inlined_call_operand.vmem [shape: f32[4,4,7,64], index: 2, kind: input, shape index: {}]
  %s3 = inlined_call_operand.vmem [shape: f32[4,4,16,64], index: 3, kind: input, shape index: {}]
  %s4 = inlined_call_operand.vmem [shape: f32[4,4,16,64], index: 4, kind: input, shape index: {}]
  %s5 = inlined_call_operand.vmem [shape: f32[4,1,128], index: 5, kind: input, shape index: {}]
  %s6 = inlined_call_operand.vmem [shape: f32[4,1,128], index: 6, kind: input, shape index: {}]
  %s7 = inlined_call_operand.hbm [shape: bf16[4,128,384], index: 7, kind: input, shape index: {}]
  %s8 = inlined_call_operand.vmem [shape: f32[4,1,384], index: 8, kind: input, shape index: {}]
  %s9 = inlined_call_operand.vmem [shape: bf16[4,128,128], index: 9, kind: input, shape index: {}]
  %s10 = inlined_call_operand.vmem [shape: f32[4,1,128], index: 10, kind: input, shape index: {}]
  %s11 = inlined_call_operand.vmem [shape: f32[4,1,128], index: 11, kind: input, shape index: {}]
  %s12 = inlined_call_operand.vmem [shape: f32[4,1,128], index: 12, kind: input, shape index: {}]
  %s13 = inlined_call_operand.vmem [shape: bf16[4,128,128], index: 13, kind: input, shape index: {}]
  %s14 = inlined_call_operand.vmem [shape: f32[4,1,128], index: 14, kind: input, shape index: {}]
  %s15 = inlined_call_operand.hbm [shape: bf16[4,128,128], index: 15, kind: input, shape index: {}]
  %s16 = inlined_call_operand.vmem [shape: f32[4,1,128], index: 16, kind: input, shape index: {}]
  %s17 = inlined_call_operand.vmem [shape: f32[4,1,128], index: 17, kind: input, shape index: {}]
  %s18 = inlined_call_operand.vmem [shape: f32[4,1,128], index: 18, kind: input, shape index: {}]
  %s19 = inlined_call_operand.vmem [shape: bf16[4,128,256], index: 19, kind: input, shape index: {}]
  %s20 = inlined_call_operand.vmem [shape: f32[4,1,256], index: 20, kind: input, shape index: {}]
  %s21 = inlined_call_operand.hbm [shape: bf16[4,256,128], index: 21, kind: input, shape index: {}]
  %s22 = inlined_call_operand.vmem [shape: f32[4,1,128], index: 22, kind: input, shape index: {}]
  %s23 = inlined_call_operand.vmem [shape: f32[1,128], index: 23, kind: input, shape index: {}]
  %s24 = inlined_call_operand.vmem [shape: f32[1,128], index: 24, kind: input, shape index: {}]
  %s25 = inlined_call_operand.vmem [shape: bf16[384,128], index: 25, kind: input, shape index: {}]
  %s26 = inlined_call_operand.vmem [shape: f32[2,384], index: 26, kind: output, shape index: {0}]
  %s27 = inlined_call_operand.vmem [shape: f32[4,4,8,64], index: 27, kind: output, shape index: {1}]
  %s28 = inlined_call_operand.vmem [shape: f32[4,4,8,64], index: 28, kind: output, shape index: {2}]
  %29 = xla_tuple %s26, %s27, %s28
  %s30 = sld [smem:[#allocation0]]
  $region173: #{whisper_decoder_with_past.1} parent=0
    _
  %s32 = ssub.s32 1, %s30
  %s33 = scalar_select 0, %s32, %s30
  $region1: #{whisper_decoder_with_past.1} parent=0
    #allocation4 [shape = 'u8[196608]{0}', space=vmem, size = 0x30000, scoped, tag = 'input window, operand 7']
    #allocation5 [shape = 's32[2]{0}', space=sflag, size = 0x8, scoped, tag = 'scoped memory for whisper_decoder_with_past.1']
    #allocation6 [shape = 'u8[65536]{0}', space=vmem, size = 0x10000, scoped, tag = 'input window, operand 15']
    #allocation7 [shape = 's32[2]{0}', space=sflag, size = 0x8, scoped, tag = 'scoped memory for whisper_decoder_with_past.1']
    #allocation8 [shape = 'u8[131072]{0}', space=vmem, size = 0x20000, scoped, tag = 'input window, operand 21']
    %34 = vsyncpa [#allocation5], 0
    %s35 = scalar_lea.sflag [#allocation5], 1
    %36 = vsyncpa %s35, 0
    %37 = vsyncpa [#allocation7], 0
    %s38 = scalar_lea.sflag [#allocation7], 1
    %39 = vsyncpa %s38, 0
    loop: start=0, step=1, limit=6
    $region2: #{whisper_decoder_with_past.1} parent=1 // loop_pre_header
      _
    $region3: #{whisper_decoder_with_past.1} parent=1 // loop_header
      %s41 = sphi 0, %s45
      %p42 = scmp.ge.s32.totalorder %s41, 6
      %s49 = sphi 0, %s49
      %s51 = sphi 0, %s49
      %s52 = sphi 0, %s51
      %s66 = sphi 0, %s52
      %s72 = sphi 0, %s74
      %s75 = sphi 0, %s72
      %s76 = sphi 0, %s75
      %s92 = sphi 0, %s76
      %s98 = sphi 0, %s100
      %s101 = sphi 0, %s98
      %s102 = sphi 0, %s101
      %s118 = sphi 0, %s102
      %s124 = sphi 0, %s126
      %s127 = sphi 0, %s124
      %s128 = sphi 0, %s127
      %s144 = sphi 0, %s128
      %s150 = sphi 0, %s152
      %s153 = sphi 0, %s150
      %s154 = sphi 0, %s153
      %s170 = sphi 0, %s154
      %s176 = sphi 0, %s178
      %s179 = sphi 0, %s176
      %s180 = sphi 0, %s179
      %s196 = sphi 0, %s180
      %s202 = sphi 0, %s204
      %s205 = sphi 0, %s202
      %s206 = sphi 0, %s205
      %s222 = sphi 0, %s206
      %s228 = sphi 0, %s230
      %s231 = sphi 0, %s228
      %s232 = sphi 0, %s231
      %s248 = sphi 0, %s232
      %s254 = sphi 0, %s256
      %s257 = sphi 0, %s254
      %s258 = sphi 0, %s257
      %s274 = sphi 0, %s258
      %s280 = sphi 0, %s282
      %s283 = sphi 0, %s280
      %s284 = sphi 0, %s283
      %s300 = sphi 0, %s284
      %s306 = sphi 0, %s308
      %s309 = sphi 0, %s306
      %s310 = sphi 0, %s309
      %s326 = sphi 0, %s310
      %s332 = sphi 0, %s334
      %s335 = sphi 0, %s332
      %s336 = sphi 0, %s335
      %s352 = sphi 0, %s336
      %s358 = sphi 0, %s360
      %s361 = sphi 0, %s358
      %s362 = sphi 0, %s361
      %s378 = sphi 0, %s362
      %s384 = sphi 0, %s386
      %s387 = sphi 0, %s384
      %s388 = sphi 0, %s387
      %s404 = sphi 0, %s388
      %s410 = sphi 0, %s412
      %s413 = sphi 0, %s410
      %s414 = sphi 0, %s413
      %s430 = sphi 0, %s414
      %s436 = sphi 0, %s438
      %s439 = sphi 0, %s436
      %s440 = sphi 0, %s439
      %s456 = sphi 0, %s440
      %s462 = sphi 0, %s464
      %s465 = sphi 0, %s462
      %s466 = sphi 0, %s465
      %s482 = sphi 0, %s466
      %s488 = sphi 0, %s490
      %s491 = sphi 0, %s488
      %s492 = sphi 0, %s491
      %s508 = sphi 0, %s492
      %s514 = sphi 0, %s516
      %s517 = sphi 0, %s514
      %s518 = sphi 0, %s517
      %s534 = sphi 0, %s518
      %s540 = sphi 0, %s542
      %s543 = sphi 0, %s540
      %s544 = sphi 0, %s543
      %s560 = sphi 0, %s544
      %s566 = sphi 0, %s568
      %s569 = sphi 0, %s566
      %s570 = sphi 0, %s569
      %s586 = sphi 0, %s570
      %s592 = sphi 0, %s594
      %s595 = sphi 0, %s592
      %s596 = sphi 0, %s595
      %s612 = sphi 0, %s596
      %s618 = sphi 0, %s620
      %s621 = sphi 0, %s618
      %s622 = sphi 0, %s621
      %s638 = sphi 0, %s622
      %s642 = sphi 0, %s642
      %s644 = sphi 0, %s642
      %s645 = sphi 0, %s644
      %s659 = sphi 0, %s645
      %s663 = sphi 0, %s663
      %s665 = sphi 0, %s663
      %s666 = sphi 0, %s665
      %s680 = sphi 0, %s666
      %s684 = sphi 0, %s684
      %s686 = sphi 0, %s684
      %s687 = sphi 0, %s686
      %s701 = sphi 0, %s687
      %s705 = sphi 0, %s705
      %s707 = sphi 0, %s705
      %s708 = sphi 0, %s707
      %s722 = sphi 0, %s708
      %s728 = sphi 0, %s730
      %s731 = sphi 0, %s728
      %s732 = sphi 0, %s731
      %s748 = sphi 0, %s732
      %s754 = sphi 0, %s756
      %s757 = sphi 0, %s754
      %s758 = sphi 0, %s757
      %s774 = sphi 0, %s758
    $region4: #{whisper_decoder_with_past.1} parent=1 // loop_header_branch
      %44 = sbr.rel (%p42) target = $region8
    $region5: #{whisper_decoder_with_past.1} parent=1 // loop_body
      %s46 = ssub.s32 %s41, 1
      %s47 = ssub.s32 %s41, 2
      %s48 = sadd.s32 %s41, 1
      %s50 = sadd.s32 %s49, 1
      %p53 = scmp.eq.s32.totalorder %s41, 3
      %p54 = scmp.ne.s32.totalorder %s49, %s51
      %p55 = scmp.eq.s32.totalorder %s41, 0
      %p56 = por %p54, %p55
      %p57 = scmp.ne.s32.totalorder %s49, %s51
      %p58 = scmp.eq.s32.totalorder %s46, 3
      %p59 = por %p57, %p58
      %p60 = scmp.ne.s32.totalorder %s51, %s52
      %p61 = scmp.eq.s32.totalorder %s46, 0
      %p62 = por %p60, %p61
      %p63 = scmp.ne.s32.totalorder %s51, %s52
      %p64 = scmp.eq.s32.totalorder %s47, 3
      %p65 = por %p63, %p64
      %p67 = scmp.ne.s32.totalorder %s52, %s66
      %p68 = scmp.eq.s32.totalorder %s47, 0
      %p69 = por %p67, %p68
      %s70 = ssub.s32 %s41, %s48
      %p71 = scmp.eq.s32.totalorder %s70, 0
      %s73 = sadd.s32 %s72, 1
      %s74 = scalar_select %p71, %s72, %s73
      %p77 = pneg %p71
      %p78 = scmp.eq.s32.totalorder %s41, 3
      %p79 = por %p77, %p78
      %p80 = scmp.ne.s32.totalorder %s72, %s75
      %p81 = scmp.eq.s32.totalorder %s41, 0
      %p82 = por %p80, %p81
      %p83 = scmp.ne.s32.totalorder %s72, %s75
      %p84 = scmp.eq.s32.totalorder %s46, 3
      %p85 = por %p83, %p84
      %p86 = scmp.ne.s32.totalorder %s75, %s76
      %p87 = scmp.eq.s32.totalorder %s46, 0
      %p88 = por %p86, %p87
      %p89 = scmp.ne.s32.totalorder %s75, %s76
      %p90 = scmp.eq.s32.totalorder %s47, 3
      %p91 = por %p89, %p90
      %p93 = scmp.ne.s32.totalorder %s76, %s92
      %p94 = scmp.eq.s32.totalorder %s47, 0
      %p95 = por %p93, %p94
      %s96 = ssub.s32 %s41, %s48
      %p97 = scmp.eq.s32.totalorder %s96, 0
      %s99 = sadd.s32 %s98, 1
      %s100 = scalar_select %p97, %s98, %s99
      %p103 = pneg %p97
      %p104 = scmp.eq.s32.totalorder %s41, 3
      %p105 = por %p103, %p104
      %p106 = scmp.ne.s32.totalorder %s98, %s101
      %p107 = scmp.eq.s32.totalorder %s41, 0
      %p108 = por %p106, %p107
      %p109 = scmp.ne.s32.totalorder %s98, %s101
      %p110 = scmp.eq.s32.totalorder %s46, 3
      %p111 = por %p109, %p110
      %p112 = scmp.ne.s32.totalorder %s101, %s102
      %p113 = scmp.eq.s32.totalorder %s46, 0
      %p114 = por %p112, %p113
      %p115 = scmp.ne.s32.totalorder %s101, %s102
      %p116 = scmp.eq.s32.totalorder %s47, 3
      %p117 = por %p115, %p116
      %p119 = scmp.ne.s32.totalorder %s102, %s118
      %p120 = scmp.eq.s32.totalorder %s47, 0
      %p121 = por %p119, %p120
      %s122 = ssub.s32 %s41, %s48
      %p123 = scmp.eq.s32.totalorder %s122, 0
      %s125 = sadd.s32 %s124, 1
      %s126 = scalar_select %p123, %s124, %s125
      %p129 = pneg %p123
      %p130 = scmp.eq.s32.totalorder %s41, 3
      %p131 = por %p129, %p130
      %p132 = scmp.ne.s32.totalorder %s124, %s127
      %p133 = scmp.eq.s32.totalorder %s41, 0
      %p134 = por %p132, %p133
      %p135 = scmp.ne.s32.totalorder %s124, %s127
      %p136 = scmp.eq.s32.totalorder %s46, 3
      %p137 = por %p135, %p136
      %p138 = scmp.ne.s32.totalorder %s127, %s128
      %p139 = scmp.eq.s32.totalorder %s46, 0
      %p140 = por %p138, %p139
      %p141 = scmp.ne.s32.totalorder %s127, %s128
      %p142 = scmp.eq.s32.totalorder %s47, 3
      %p143 = por %p141, %p142
      %p145 = scmp.ne.s32.totalorder %s128, %s144
      %p146 = scmp.eq.s32.totalorder %s47, 0
      %p147 = por %p145, %p146
      %s148 = ssub.s32 %s41, %s48
      %p149 = scmp.eq.s32.totalorder %s148, 0
      %s151 = sadd.s32 %s150, 1
      %s152 = scalar_select %p149, %s150, %s151
      %p155 = pneg %p149
      %p156 = scmp.eq.s32.totalorder %s41, 3
      %p157 = por %p155, %p156
      %p158 = scmp.ne.s32.totalorder %s150, %s153
      %p159 = scmp.eq.s32.totalorder %s41, 0
      %p160 = por %p158, %p159
      %p161 = scmp.ne.s32.totalorder %s150, %s153
      %p162 = scmp.eq.s32.totalorder %s46, 3
      %p163 = por %p161, %p162
      %p164 = scmp.ne.s32.totalorder %s153, %s154
      %p165 = scmp.eq.s32.totalorder %s46, 0
      %p166 = por %p164, %p165
      %p167 = scmp.ne.s32.totalorder %s153, %s154
      %p168 = scmp.eq.s32.totalorder %s47, 3
      %p169 = por %p167, %p168
      %p171 = scmp.ne.s32.totalorder %s154, %s170
      %p172 = scmp.eq.s32.totalorder %s47, 0
      %p173 = por %p171, %p172
      %s174 = ssub.s32 %s41, %s48
      %p175 = scmp.eq.s32.totalorder %s174, 0
      %s177 = sadd.s32 %s176, 1
      %s178 = scalar_select %p175, %s176, %s177
      %p181 = pneg %p175
      %p182 = scmp.eq.s32.totalorder %s41, 3
      %p183 = por %p181, %p182
      %p184 = scmp.ne.s32.totalorder %s176, %s179
      %p185 = scmp.eq.s32.totalorder %s41, 0
      %p186 = por %p184, %p185
      %p187 = scmp.ne.s32.totalorder %s176, %s179
      %p188 = scmp.eq.s32.totalorder %s46, 3
      %p189 = por %p187, %p188
      %p190 = scmp.ne.s32.totalorder %s179, %s180
      %p191 = scmp.eq.s32.totalorder %s46, 0
      %p192 = por %p190, %p191
      %p193 = scmp.ne.s32.totalorder %s179, %s180
      %p194 = scmp.eq.s32.totalorder %s47, 3
      %p195 = por %p193, %p194
      %p197 = scmp.ne.s32.totalorder %s180, %s196
      %p198 = scmp.eq.s32.totalorder %s47, 0
      %p199 = por %p197, %p198
      %s200 = ssub.s32 %s41, %s48
      %p201 = scmp.eq.s32.totalorder %s200, 0
      %s203 = sadd.s32 %s202, 1
      %s204 = scalar_select %p201, %s202, %s203
      %p207 = pneg %p201
      %p208 = scmp.eq.s32.totalorder %s41, 3
      %p209 = por %p207, %p208
      %p210 = scmp.ne.s32.totalorder %s202, %s205
      %p211 = scmp.eq.s32.totalorder %s41, 0
      %p212 = por %p210, %p211
      %p213 = scmp.ne.s32.totalorder %s202, %s205
      %p214 = scmp.eq.s32.totalorder %s46, 3
      %p215 = por %p213, %p214
      %p216 = scmp.ne.s32.totalorder %s205, %s206
      %p217 = scmp.eq.s32.totalorder %s46, 0
      %p218 = por %p216, %p217
      %p219 = scmp.ne.s32.totalorder %s205, %s206
      %p220 = scmp.eq.s32.totalorder %s47, 3
      %p221 = por %p219, %p220
      %p223 = scmp.ne.s32.totalorder %s206, %s222
      %p224 = scmp.eq.s32.totalorder %s47, 0
      %p225 = por %p223, %p224
      %s226 = ssub.s32 %s41, %s48
      %p227 = scmp.eq.s32.totalorder %s226, 0
      %s229 = sadd.s32 %s228, 1
      %s230 = scalar_select %p227, %s228, %s229
      %p233 = pneg %p227
      %p234 = scmp.eq.s32.totalorder %s41, 3
      %p235 = por %p233, %p234
      %p236 = scmp.ne.s32.totalorder %s228, %s231
      %p237 = scmp.eq.s32.totalorder %s41, 0
      %p238 = por %p236, %p237
      %p239 = scmp.ne.s32.totalorder %s228, %s231
      %p240 = scmp.eq.s32.totalorder %s46, 3
      %p241 = por %p239, %p240
      %p242 = scmp.ne.s32.totalorder %s231, %s232
      %p243 = scmp.eq.s32.totalorder %s46, 0
      %p244 = por %p242, %p243
      %p245 = scmp.ne.s32.totalorder %s231, %s232
      %p246 = scmp.eq.s32.totalorder %s47, 3
      %p247 = por %p245, %p246
      %p249 = scmp.ne.s32.totalorder %s232, %s248
      %p250 = scmp.eq.s32.totalorder %s47, 0
      %p251 = por %p249, %p250
      %s252 = ssub.s32 %s41, %s48
      %p253 = scmp.eq.s32.totalorder %s252, 0
      %s255 = sadd.s32 %s254, 1
      %s256 = scalar_select %p253, %s254, %s255
      %p259 = pneg %p253
      %p260 = scmp.eq.s32.totalorder %s41, 3
      %p261 = por %p259, %p260
      %p262 = scmp.ne.s32.totalorder %s254, %s257
      %p263 = scmp.eq.s32.totalorder %s41, 0
      %p264 = por %p262, %p263
      %p265 = scmp.ne.s32.totalorder %s254, %s257
      %p266 = scmp.eq.s32.totalorder %s46, 3
      %p267 = por %p265, %p266
      %p268 = scmp.ne.s32.totalorder %s257, %s258
      %p269 = scmp.eq.s32.totalorder %s46, 0
      %p270 = por %p268, %p269
      %p271 = scmp.ne.s32.totalorder %s257, %s258
      %p272 = scmp.eq.s32.totalorder %s47, 3
      %p273 = por %p271, %p272
      %p275 = scmp.ne.s32.totalorder %s258, %s274
      %p276 = scmp.eq.s32.totalorder %s47, 0
      %p277 = por %p275, %p276
      %s278 = ssub.s32 %s41, %s48
      %p279 = scmp.eq.s32.totalorder %s278, 0
      %s281 = sadd.s32 %s280, 1
      %s282 = scalar_select %p279, %s280, %s281
      %p285 = pneg %p279
      %p286 = scmp.eq.s32.totalorder %s41, 3
      %p287 = por %p285, %p286
      %p288 = scmp.ne.s32.totalorder %s280, %s283
      %p289 = scmp.eq.s32.totalorder %s41, 0
      %p290 = por %p288, %p289
      %p291 = scmp.ne.s32.totalorder %s280, %s283
      %p292 = scmp.eq.s32.totalorder %s46, 3
      %p293 = por %p291, %p292
      %p294 = scmp.ne.s32.totalorder %s283, %s284
      %p295 = scmp.eq.s32.totalorder %s46, 0
      %p296 = por %p294, %p295
      %p297 = scmp.ne.s32.totalorder %s283, %s284
      %p298 = scmp.eq.s32.totalorder %s47, 3
      %p299 = por %p297, %p298
      %p301 = scmp.ne.s32.totalorder %s284, %s300
      %p302 = scmp.eq.s32.totalorder %s47, 0
      %p303 = por %p301, %p302
      %s304 = ssub.s32 %s41, %s48
      %p305 = scmp.eq.s32.totalorder %s304, 0
      %s307 = sadd.s32 %s306, 1
      %s308 = scalar_select %p305, %s306, %s307
      %p311 = pneg %p305
      %p312 = scmp.eq.s32.totalorder %s41, 3
      %p313 = por %p311, %p312
      %p314 = scmp.ne.s32.totalorder %s306, %s309
      %p315 = scmp.eq.s32.totalorder %s41, 0
      %p316 = por %p314, %p315
      %p317 = scmp.ne.s32.totalorder %s306, %s309
      %p318 = scmp.eq.s32.totalorder %s46, 3
      %p319 = por %p317, %p318
      %p320 = scmp.ne.s32.totalorder %s309, %s310
      %p321 = scmp.eq.s32.totalorder %s46, 0
      %p322 = por %p320, %p321
      %p323 = scmp.ne.s32.totalorder %s309, %s310
      %p324 = scmp.eq.s32.totalorder %s47, 3
      %p325 = por %p323, %p324
      %p327 = scmp.ne.s32.totalorder %s310, %s326
      %p328 = scmp.eq.s32.totalorder %s47, 0
      %p329 = por %p327, %p328
      %s330 = ssub.s32 %s41, %s48
      %p331 = scmp.eq.s32.totalorder %s330, 0
      %s333 = sadd.s32 %s332, 1
      %s334 = scalar_select %p331, %s332, %s333
      %p337 = pneg %p331
      %p338 = scmp.eq.s32.totalorder %s41, 3
      %p339 = por %p337, %p338
      %p340 = scmp.ne.s32.totalorder %s332, %s335
      %p341 = scmp.eq.s32.totalorder %s41, 0
      %p342 = por %p340, %p341
      %p343 = scmp.ne.s32.totalorder %s332, %s335
      %p344 = scmp.eq.s32.totalorder %s46, 3
      %p345 = por %p343, %p344
      %p346 = scmp.ne.s32.totalorder %s335, %s336
      %p347 = scmp.eq.s32.totalorder %s46, 0
      %p348 = por %p346, %p347
      %p349 = scmp.ne.s32.totalorder %s335, %s336
      %p350 = scmp.eq.s32.totalorder %s47, 3
      %p351 = por %p349, %p350
      %p353 = scmp.ne.s32.totalorder %s336, %s352
      %p354 = scmp.eq.s32.totalorder %s47, 0
      %p355 = por %p353, %p354
      %s356 = ssub.s32 %s41, %s48
      %p357 = scmp.eq.s32.totalorder %s356, 0
      %s359 = sadd.s32 %s358, 1
      %s360 = scalar_select %p357, %s358, %s359
      %p363 = pneg %p357
      %p364 = scmp.eq.s32.totalorder %s41, 3
      %p365 = por %p363, %p364
      %p366 = scmp.ne.s32.totalorder %s358, %s361
      %p367 = scmp.eq.s32.totalorder %s41, 0
      %p368 = por %p366, %p367
      %p369 = scmp.ne.s32.totalorder %s358, %s361
      %p370 = scmp.eq.s32.totalorder %s46, 3
      %p371 = por %p369, %p370
      %p372 = scmp.ne.s32.totalorder %s361, %s362
      %p373 = scmp.eq.s32.totalorder %s46, 0
      %p374 = por %p372, %p373
      %p375 = scmp.ne.s32.totalorder %s361, %s362
      %p376 = scmp.eq.s32.totalorder %s47, 3
      %p377 = por %p375, %p376
      %p379 = scmp.ne.s32.totalorder %s362, %s378
      %p380 = scmp.eq.s32.totalorder %s47, 0
      %p381 = por %p379, %p380
      %s382 = ssub.s32 %s41, %s48
      %p383 = scmp.eq.s32.totalorder %s382, 0
      %s385 = sadd.s32 %s384, 1
      %s386 = scalar_select %p383, %s384, %s385
      %p389 = pneg %p383
      %p390 = scmp.eq.s32.totalorder %s41, 3
      %p391 = por %p389, %p390
      %p392 = scmp.ne.s32.totalorder %s384, %s387
      %p393 = scmp.eq.s32.totalorder %s41, 0
      %p394 = por %p392, %p393
      %p395 = scmp.ne.s32.totalorder %s384, %s387
      %p396 = scmp.eq.s32.totalorder %s46, 3
      %p397 = por %p395, %p396
      %p398 = scmp.ne.s32.totalorder %s387, %s388
      %p399 = scmp.eq.s32.totalorder %s46, 0
      %p400 = por %p398, %p399
      %p401 = scmp.ne.s32.totalorder %s387, %s388
      %p402 = scmp.eq.s32.totalorder %s47, 3
      %p403 = por %p401, %p402
      %p405 = scmp.ne.s32.totalorder %s388, %s404
      %p406 = scmp.eq.s32.totalorder %s47, 0
      %p407 = por %p405, %p406
      %s408 = ssub.s32 %s41, %s48
      %p409 = scmp.eq.s32.totalorder %s408, 0
      %s411 = sadd.s32 %s410, 1
      %s412 = scalar_select %p409, %s410, %s411
      %p415 = pneg %p409
      %p416 = scmp.eq.s32.totalorder %s41, 3
      %p417 = por %p415, %p416
      %p418 = scmp.ne.s32.totalorder %s410, %s413
      %p419 = scmp.eq.s32.totalorder %s41, 0
      %p420 = por %p418, %p419
      %p421 = scmp.ne.s32.totalorder %s410, %s413
      %p422 = scmp.eq.s32.totalorder %s46, 3
      %p423 = por %p421, %p422
      %p424 = scmp.ne.s32.totalorder %s413, %s414
      %p425 = scmp.eq.s32.totalorder %s46, 0
      %p426 = por %p424, %p425
      %p427 = scmp.ne.s32.totalorder %s413, %s414
      %p428 = scmp.eq.s32.totalorder %s47, 3
      %p429 = por %p427, %p428
      %p431 = scmp.ne.s32.totalorder %s414, %s430
      %p432 = scmp.eq.s32.totalorder %s47, 0
      %p433 = por %p431, %p432
      %s434 = ssub.s32 %s41, %s48
      %p435 = scmp.eq.s32.totalorder %s434, 0
      %s437 = sadd.s32 %s436, 1
      %s438 = scalar_select %p435, %s436, %s437
      %p441 = pneg %p435
      %p442 = scmp.eq.s32.totalorder %s41, 3
      %p443 = por %p441, %p442
      %p444 = scmp.ne.s32.totalorder %s436, %s439
      %p445 = scmp.eq.s32.totalorder %s41, 0
      %p446 = por %p444, %p445
      %p447 = scmp.ne.s32.totalorder %s436, %s439
      %p448 = scmp.eq.s32.totalorder %s46, 3
      %p449 = por %p447, %p448
      %p450 = scmp.ne.s32.totalorder %s439, %s440
      %p451 = scmp.eq.s32.totalorder %s46, 0
      %p452 = por %p450, %p451
      %p453 = scmp.ne.s32.totalorder %s439, %s440
      %p454 = scmp.eq.s32.totalorder %s47, 3
      %p455 = por %p453, %p454
      %p457 = scmp.ne.s32.totalorder %s440, %s456
      %p458 = scmp.eq.s32.totalorder %s47, 0
      %p459 = por %p457, %p458
      %s460 = ssub.s32 %s41, %s48
      %p461 = scmp.eq.s32.totalorder %s460, 0
      %s463 = sadd.s32 %s462, 1
      %s464 = scalar_select %p461, %s462, %s463
      %p467 = pneg %p461
      %p468 = scmp.eq.s32.totalorder %s41, 3
      %p469 = por %p467, %p468
      %p470 = scmp.ne.s32.totalorder %s462, %s465
      %p471 = scmp.eq.s32.totalorder %s41, 0
      %p472 = por %p470, %p471
      %p473 = scmp.ne.s32.totalorder %s462, %s465
      %p474 = scmp.eq.s32.totalorder %s46, 3
      %p475 = por %p473, %p474
      %p476 = scmp.ne.s32.totalorder %s465, %s466
      %p477 = scmp.eq.s32.totalorder %s46, 0
      %p478 = por %p476, %p477
      %p479 = scmp.ne.s32.totalorder %s465, %s466
      %p480 = scmp.eq.s32.totalorder %s47, 3
      %p481 = por %p479, %p480
      %p483 = scmp.ne.s32.totalorder %s466, %s482
      %p484 = scmp.eq.s32.totalorder %s47, 0
      %p485 = por %p483, %p484
      %s486 = ssub.s32 %s41, %s48
      %p487 = scmp.eq.s32.totalorder %s486, 0
      %s489 = sadd.s32 %s488, 1
      %s490 = scalar_select %p487, %s488, %s489
      %p493 = pneg %p487
      %p494 = scmp.eq.s32.totalorder %s41, 3
      %p495 = por %p493, %p494
      %p496 = scmp.ne.s32.totalorder %s488, %s491
      %p497 = scmp.eq.s32.totalorder %s41, 0
      %p498 = por %p496, %p497
      %p499 = scmp.ne.s32.totalorder %s488, %s491
      %p500 = scmp.eq.s32.totalorder %s46, 3
      %p501 = por %p499, %p500
      %p502 = scmp.ne.s32.totalorder %s491, %s492
      %p503 = scmp.eq.s32.totalorder %s46, 0
      %p504 = por %p502, %p503
      %p505 = scmp.ne.s32.totalorder %s491, %s492
      %p506 = scmp.eq.s32.totalorder %s47, 3
      %p507 = por %p505, %p506
      %p509 = scmp.ne.s32.totalorder %s492, %s508
      %p510 = scmp.eq.s32.totalorder %s47, 0
      %p511 = por %p509, %p510
      %s512 = ssub.s32 %s41, %s48
      %p513 = scmp.eq.s32.totalorder %s512, 0
      %s515 = sadd.s32 %s514, 1
      %s516 = scalar_select %p513, %s514, %s515
      %p519 = pneg %p513
      %p520 = scmp.eq.s32.totalorder %s41, 3
      %p521 = por %p519, %p520
      %p522 = scmp.ne.s32.totalorder %s514, %s517
      %p523 = scmp.eq.s32.totalorder %s41, 0
      %p524 = por %p522, %p523
      %p525 = scmp.ne.s32.totalorder %s514, %s517
      %p526 = scmp.eq.s32.totalorder %s46, 3
      %p527 = por %p525, %p526
      %p528 = scmp.ne.s32.totalorder %s517, %s518
      %p529 = scmp.eq.s32.totalorder %s46, 0
      %p530 = por %p528, %p529
      %p531 = scmp.ne.s32.totalorder %s517, %s518
      %p532 = scmp.eq.s32.totalorder %s47, 3
      %p533 = por %p531, %p532
      %p535 = scmp.ne.s32.totalorder %s518, %s534
      %p536 = scmp.eq.s32.totalorder %s47, 0
      %p537 = por %p535, %p536
      %s538 = ssub.s32 %s41, %s48
      %p539 = scmp.eq.s32.totalorder %s538, 0
      %s541 = sadd.s32 %s540, 1
      %s542 = scalar_select %p539, %s540, %s541
      %p545 = pneg %p539
      %p546 = scmp.eq.s32.totalorder %s41, 3
      %p547 = por %p545, %p546
      %p548 = scmp.ne.s32.totalorder %s540, %s543
      %p549 = scmp.eq.s32.totalorder %s41, 0
      %p550 = por %p548, %p549
      %p551 = scmp.ne.s32.totalorder %s540, %s543
      %p552 = scmp.eq.s32.totalorder %s46, 3
      %p553 = por %p551, %p552
      %p554 = scmp.ne.s32.totalorder %s543, %s544
      %p555 = scmp.eq.s32.totalorder %s46, 0
      %p556 = por %p554, %p555
      %p557 = scmp.ne.s32.totalorder %s543, %s544
      %p558 = scmp.eq.s32.totalorder %s47, 3
      %p559 = por %p557, %p558
      %p561 = scmp.ne.s32.totalorder %s544, %s560
      %p562 = scmp.eq.s32.totalorder %s47, 0
      %p563 = por %p561, %p562
      %s564 = ssub.s32 %s41, %s48
      %p565 = scmp.eq.s32.totalorder %s564, 0
      %s567 = sadd.s32 %s566, 1
      %s568 = scalar_select %p565, %s566, %s567
      %p571 = pneg %p565
      %p572 = scmp.eq.s32.totalorder %s41, 3
      %p573 = por %p571, %p572
      %p574 = scmp.ne.s32.totalorder %s566, %s569
      %p575 = scmp.eq.s32.totalorder %s41, 0
      %p576 = por %p574, %p575
      %p577 = scmp.ne.s32.totalorder %s566, %s569
      %p578 = scmp.eq.s32.totalorder %s46, 3
      %p579 = por %p577, %p578
      %p580 = scmp.ne.s32.totalorder %s569, %s570
      %p581 = scmp.eq.s32.totalorder %s46, 0
      %p582 = por %p580, %p581
      %p583 = scmp.ne.s32.totalorder %s569, %s570
      %p584 = scmp.eq.s32.totalorder %s47, 3
      %p585 = por %p583, %p584
      %p587 = scmp.ne.s32.totalorder %s570, %s586
      %p588 = scmp.eq.s32.totalorder %s47, 0
      %p589 = por %p587, %p588
      %s590 = ssub.s32 %s41, %s48
      %p591 = scmp.eq.s32.totalorder %s590, 0
      %s593 = sadd.s32 %s592, 1
      %s594 = scalar_select %p591, %s592, %s593
      %p597 = pneg %p591
      %p598 = scmp.eq.s32.totalorder %s41, 3
      %p599 = por %p597, %p598
      %p600 = scmp.ne.s32.totalorder %s592, %s595
      %p601 = scmp.eq.s32.totalorder %s41, 0
      %p602 = por %p600, %p601
      %p603 = scmp.ne.s32.totalorder %s592, %s595
      %p604 = scmp.eq.s32.totalorder %s46, 3
      %p605 = por %p603, %p604
      %p606 = scmp.ne.s32.totalorder %s595, %s596
      %p607 = scmp.eq.s32.totalorder %s46, 0
      %p608 = por %p606, %p607
      %p609 = scmp.ne.s32.totalorder %s595, %s596
      %p610 = scmp.eq.s32.totalorder %s47, 3
      %p611 = por %p609, %p610
      %p613 = scmp.ne.s32.totalorder %s596, %s612
      %p614 = scmp.eq.s32.totalorder %s47, 0
      %p615 = por %p613, %p614
      %s616 = ssub.s32 %s41, %s48
      %p617 = scmp.eq.s32.totalorder %s616, 0
      %s619 = sadd.s32 %s618, 1
      %s620 = scalar_select %p617, %s618, %s619
      %p623 = pneg %p617
      %p624 = scmp.eq.s32.totalorder %s41, 3
      %p625 = por %p623, %p624
      %p626 = scmp.ne.s32.totalorder %s618, %s621
      %p627 = scmp.eq.s32.totalorder %s41, 0
      %p628 = por %p626, %p627
      %p629 = scmp.ne.s32.totalorder %s618, %s621
      %p630 = scmp.eq.s32.totalorder %s46, 3
      %p631 = por %p629, %p630
      %p632 = scmp.ne.s32.totalorder %s621, %s622
      %p633 = scmp.eq.s32.totalorder %s46, 0
      %p634 = por %p632, %p633
      %p635 = scmp.ne.s32.totalorder %s621, %s622
      %p636 = scmp.eq.s32.totalorder %s47, 3
      %p637 = por %p635, %p636
      %p639 = scmp.ne.s32.totalorder %s622, %s638
      %p640 = scmp.eq.s32.totalorder %s47, 0
      %p641 = por %p639, %p640
      %s643 = sadd.s32 %s642, 1
      %p646 = scmp.eq.s32.totalorder %s41, 3
      %p647 = scmp.ne.s32.totalorder %s642, %s644
      %p648 = scmp.eq.s32.totalorder %s41, 0
      %p649 = por %p647, %p648
      %p650 = scmp.ne.s32.totalorder %s642, %s644
      %p651 = scmp.eq.s32.totalorder %s46, 3
      %p652 = por %p650, %p651
      %p653 = scmp.ne.s32.totalorder %s644, %s645
      %p654 = scmp.eq.s32.totalorder %s46, 0
      %p655 = por %p653, %p654
      %p656 = scmp.ne.s32.totalorder %s644, %s645
      %p657 = scmp.eq.s32.totalorder %s47, 3
      %p658 = por %p656, %p657
      %p660 = scmp.ne.s32.totalorder %s645, %s659
      %p661 = scmp.eq.s32.totalorder %s47, 0
      %p662 = por %p660, %p661
      %s664 = sadd.s32 %s663, 1
      %p667 = scmp.eq.s32.totalorder %s41, 3
      %p668 = scmp.ne.s32.totalorder %s663, %s665
      %p669 = scmp.eq.s32.totalorder %s41, 0
      %p670 = por %p668, %p669
      %p671 = scmp.ne.s32.totalorder %s663, %s665
      %p672 = scmp.eq.s32.totalorder %s46, 3
      %p673 = por %p671, %p672
      %p674 = scmp.ne.s32.totalorder %s665, %s666
      %p675 = scmp.eq.s32.totalorder %s46, 0
      %p676 = por %p674, %p675
      %p677 = scmp.ne.s32.totalorder %s665, %s666
      %p678 = scmp.eq.s32.totalorder %s47, 3
      %p679 = por %p677, %p678
      %p681 = scmp.ne.s32.totalorder %s666, %s680
      %p682 = scmp.eq.s32.totalorder %s47, 0
      %p683 = por %p681, %p682
      %s685 = sadd.s32 %s684, 1
      %p688 = scmp.eq.s32.totalorder %s41, 3
      %p689 = scmp.ne.s32.totalorder %s684, %s686
      %p690 = scmp.eq.s32.totalorder %s41, 0
      %p691 = por %p689, %p690
      %p692 = scmp.ne.s32.totalorder %s684, %s686
      %p693 = scmp.eq.s32.totalorder %s46, 3
      %p694 = por %p692, %p693
      %p695 = scmp.ne.s32.totalorder %s686, %s687
      %p696 = scmp.eq.s32.totalorder %s46, 0
      %p697 = por %p695, %p696
      %p698 = scmp.ne.s32.totalorder %s686, %s687
      %p699 = scmp.eq.s32.totalorder %s47, 3
      %p700 = por %p698, %p699
      %p702 = scmp.ne.s32.totalorder %s687, %s701
      %p703 = scmp.eq.s32.totalorder %s47, 0
      %p704 = por %p702, %p703
      %s706 = sadd.s32 %s705, 1
      %p709 = scmp.eq.s32.totalorder %s41, 3
      %p710 = scmp.ne.s32.totalorder %s705, %s707
      %p711 = scmp.eq.s32.totalorder %s41, 0
      %p712 = por %p710, %p711
      %p713 = scmp.ne.s32.totalorder %s705, %s707
      %p714 = scmp.eq.s32.totalorder %s46, 3
      %p715 = por %p713, %p714
      %p716 = scmp.ne.s32.totalorder %s707, %s708
      %p717 = scmp.eq.s32.totalorder %s46, 0
      %p718 = por %p716, %p717
      %p719 = scmp.ne.s32.totalorder %s707, %s708
      %p720 = scmp.eq.s32.totalorder %s47, 3
      %p721 = por %p719, %p720
      %p723 = scmp.ne.s32.totalorder %s708, %s722
      %p724 = scmp.eq.s32.totalorder %s47, 0
      %p725 = por %p723, %p724
      %s726 = ssub.s32 %s41, %s48
      %p727 = scmp.eq.s32.totalorder %s726, 0
      %s729 = sadd.s32 %s728, 1
      %s730 = scalar_select %p727, %s728, %s729
      %p733 = pneg %p727
      %p734 = scmp.eq.s32.totalorder %s41, 3
      %p735 = por %p733, %p734
      %p736 = scmp.ne.s32.totalorder %s728, %s731
      %p737 = scmp.eq.s32.totalorder %s41, 0
      %p738 = por %p736, %p737
      %p739 = scmp.ne.s32.totalorder %s728, %s731
      %p740 = scmp.eq.s32.totalorder %s46, 3
      %p741 = por %p739, %p740
      %p742 = scmp.ne.s32.totalorder %s731, %s732
      %p743 = scmp.eq.s32.totalorder %s46, 0
      %p744 = por %p742, %p743
      %p745 = scmp.ne.s32.totalorder %s731, %s732
      %p746 = scmp.eq.s32.totalorder %s47, 3
      %p747 = por %p745, %p746
      %p749 = scmp.ne.s32.totalorder %s732, %s748
      %p750 = scmp.eq.s32.totalorder %s47, 0
      %p751 = por %p749, %p750
      %s752 = ssub.s32 %s41, %s48
      %p753 = scmp.eq.s32.totalorder %s752, 0
      %s755 = sadd.s32 %s754, 1
      %s756 = scalar_select %p753, %s754, %s755
      %p759 = pneg %p753
      %p760 = scmp.eq.s32.totalorder %s41, 3
      %p761 = por %p759, %p760
      %p762 = scmp.ne.s32.totalorder %s754, %s757
      %p763 = scmp.eq.s32.totalorder %s41, 0
      %p764 = por %p762, %p763
      %p765 = scmp.ne.s32.totalorder %s754, %s757
      %p766 = scmp.eq.s32.totalorder %s46, 3
      %p767 = por %p765, %p766
      %p768 = scmp.ne.s32.totalorder %s757, %s758
      %p769 = scmp.eq.s32.totalorder %s46, 0
      %p770 = por %p768, %p769
      %p771 = scmp.ne.s32.totalorder %s757, %s758
      %p772 = scmp.eq.s32.totalorder %s47, 3
      %p773 = por %p771, %p772
      %p775 = scmp.ne.s32.totalorder %s758, %s774
      %p776 = scmp.eq.s32.totalorder %s47, 0
      %p777 = por %p775, %p776
      %p778 = scmp.le.s32.totalorder 1, %s41
      %p779 = scmp.lt.s32.totalorder %s41, 5
      %p780 = pnand %p778, %p779
      %p781 = pneg %p780
      // Predicated region
      $region9: #{whisper_decoder_with_past.1} parent=5 // pred_check
        _
      $region10: #{whisper_decoder_with_past.1} parent=5 // pred_check_branch
        %783 = sbr.rel (%p780) target = $region12
      $region11: #{whisper_decoder_with_past.1} parent=5 // pred_region
        %s784 = ssub.s32 %s41, 1
        // Predicated region
        $region13: #{whisper_decoder_with_past.1} parent=11 // pred_check
          %p785 = pneg %p62
        $region14: #{whisper_decoder_with_past.1} parent=11 // pred_check_branch
          %787 = sbr.rel (%p785) target = $region16
        $region15: #{whisper_decoder_with_past.1} parent=11 // pred_region
          _
        $region16: #{whisper_decoder_with_past.1} parent=11 // pred_fallthru
          _
        // Predicated region
        $region17: #{whisper_decoder_with_past.1} parent=11 // pred_check
          %p788 = pneg %p655
        $region18: #{whisper_decoder_with_past.1} parent=11 // pred_check_branch
          %790 = sbr.rel (%p788) target = $region20
        $region19: #{whisper_decoder_with_past.1} parent=11 // pred_region
          _
        $region20: #{whisper_decoder_with_past.1} parent=11 // pred_fallthru
          _
        // Predicated region
        $region21: #{whisper_decoder_with_past.1} parent=11 // pred_check
          %p791 = pneg %p676
        $region22: #{whisper_decoder_with_past.1} parent=11 // pred_check_branch
          %793 = sbr.rel (%p791) target = $region24
        $region23: #{whisper_decoder_with_past.1} parent=11 // pred_region
          _
        $region24: #{whisper_decoder_with_past.1} parent=11 // pred_fallthru
          _
        // Predicated region
        $region25: #{whisper_decoder_with_past.1} parent=11 // pred_check
          %p794 = pneg %p697
        $region26: #{whisper_decoder_with_past.1} parent=11 // pred_check_branch
          %796 = sbr.rel (%p794) target = $region28
        $region27: #{whisper_decoder_with_past.1} parent=11 // pred_region
          _
        $region28: #{whisper_decoder_with_past.1} parent=11 // pred_fallthru
          _
      $region12: #{whisper_decoder_with_past.1} parent=5 // pred_fallthru
        _
      %p797 = scmp.lt.s32.totalorder %s41, 4
      // Predicated region
      $region29: #{whisper_decoder_with_past.1} parent=5 // pred_check
        %p798 = pneg %p797
      $region30: #{whisper_decoder_with_past.1} parent=5 // pred_check_branch
        %800 = sbr.rel (%p798) target = $region32
      $region31: #{whisper_decoder_with_past.1} parent=5 // pred_region
        // Predicated region
        $region33: #{whisper_decoder_with_past.1} parent=31 // pred_check
          %p801 = pneg %p82
        $region34: #{whisper_decoder_with_past.1} parent=31 // pred_check_branch
          %803 = sbr.rel (%p801) target = $region36
        $region35: #{whisper_decoder_with_past.1} parent=31 // pred_region
          %p804 = scmp.lt.s32.totalorder %s41, 3
          %s805 = scalar_select %p804, %s41, 3
          %s806 = smul.addr %s805, 4
          %s807 = smul.addr %s806, 8
          %s808 = scalar_lea.vmem %s1, %s807
        $region36: #{whisper_decoder_with_past.1} parent=31 // pred_fallthru
          _
        // Predicated region
        $region37: #{whisper_decoder_with_past.1} parent=31 // pred_check
          %p809 = pneg %p108
        $region38: #{whisper_decoder_with_past.1} parent=31 // pred_check_branch
          %811 = sbr.rel (%p809) target = $region40
        $region39: #{whisper_decoder_with_past.1} parent=31 // pred_region
          %p812 = scmp.lt.s32.totalorder %s41, 3
          %s813 = scalar_select %p812, %s41, 3
          %s814 = smul.addr %s813, 4
          %s815 = smul.addr %s814, 8
          %s816 = scalar_lea.vmem %s2, %s815
        $region40: #{whisper_decoder_with_past.1} parent=31 // pred_fallthru
          _
        // Predicated region
        $region41: #{whisper_decoder_with_past.1} parent=31 // pred_check
          %p817 = pneg %p134
        $region42: #{whisper_decoder_with_past.1} parent=31 // pred_check_branch
          %819 = sbr.rel (%p817) target = $region44
        $region43: #{whisper_decoder_with_past.1} parent=31 // pred_region
          %p820 = scmp.lt.s32.totalorder %s41, 3
          %s821 = scalar_select %p820, %s41, 3
          %s822 = smul.addr %s821, 8
          %s823 = smul.addr %s822, 8
          %s824 = scalar_lea.vmem %s3, %s823
        $region44: #{whisper_decoder_with_past.1} parent=31 // pred_fallthru
          _
        // Predicated region
        $region45: #{whisper_decoder_with_past.1} parent=31 // pred_check
          %p825 = pneg %p160
        $region46: #{whisper_decoder_with_past.1} parent=31 // pred_check_branch
          %827 = sbr.rel (%p825) target = $region48
        $region47: #{whisper_decoder_with_past.1} parent=31 // pred_region
          %p828 = scmp.lt.s32.totalorder %s41, 3
          %s829 = scalar_select %p828, %s41, 3
          %s830 = smul.addr %s829, 8
          %s831 = smul.addr %s830, 8
          %s832 = scalar_lea.vmem %s4, %s831
        $region48: #{whisper_decoder_with_past.1} parent=31 // pred_fallthru
          _
        // Predicated region
        $region49: #{whisper_decoder_with_past.1} parent=31 // pred_check
          %p833 = pneg %p186
        $region50: #{whisper_decoder_with_past.1} parent=31 // pred_check_branch
          %835 = sbr.rel (%p833) target = $region52
        $region51: #{whisper_decoder_with_past.1} parent=31 // pred_region
          %p836 = scmp.lt.s32.totalorder %s41, 3
          %s837 = scalar_select %p836, %s41, 3
          %s838 = scalar_lea.vmem %s5, %s837
        $region52: #{whisper_decoder_with_past.1} parent=31 // pred_fallthru
          _
        // Predicated region
        $region53: #{whisper_decoder_with_past.1} parent=31 // pred_check
          %p839 = pneg %p212
        $region54: #{whisper_decoder_with_past.1} parent=31 // pred_check_branch
          %841 = sbr.rel (%p839) target = $region56
        $region55: #{whisper_decoder_with_past.1} parent=31 // pred_region
          %p842 = scmp.lt.s32.totalorder %s41, 3
          %s843 = scalar_select %p842, %s41, 3
          %s844 = scalar_lea.vmem %s6, %s843
        $region56: #{whisper_decoder_with_past.1} parent=31 // pred_fallthru
          _
        // Predicated region
        $region57: #{whisper_decoder_with_past.1} parent=31 // pred_check
          %p845 = pneg %p238
        $region58: #{whisper_decoder_with_past.1} parent=31 // pred_check_branch
          %847 = sbr.rel (%p845) target = $region60
        $region59: #{whisper_decoder_with_past.1} parent=31 // pred_region
          %s848 = sand.u32 %s228, 1
          %s849 = scalar_lea.sflag [#allocation5], %s848
          %s850 = sand.u32 %s228, 1
          %s851 = smul.addr %s850, 192
          %s852 = scalar_lea.vmem [#allocation4], %s851
          %854 = vsyncadd %s849, 0
          %s855 = smul.addr %s41, 48
          %s856 = smul.addr %s855, 4
          %s857 = scalar_lea.hbm %s7, %s856
          %s858 = sshll.u32 %s857, 4
          %s859 = int_to_ptr.hbm [resolvable:$true] %s858
          %s860 = sshll.u32 %s852, 4
          %s861 = int_to_ptr.vmem [resolvable:$true] %s860
          %866 = dma.hbm_to_vmem [thread:$0]  %s859, 3072, %s861, %s849, 192, 192, 12
        $region60: #{whisper_decoder_with_past.1} parent=31 // pred_fallthru
          _
        // Predicated region
        $region61: #{whisper_decoder_with_past.1} parent=31 // pred_check
          %p867 = pneg %p264
        $region62: #{whisper_decoder_with_past.1} parent=31 // pred_check_branch
          %869 = sbr.rel (%p867) target = $region64
        $region63: #{whisper_decoder_with_past.1} parent=31 // pred_region
          %p870 = scmp.lt.s32.totalorder %s41, 3
          %s871 = scalar_select %p870, %s41, 3
          %s872 = smul.addr %s871, 3
          %s873 = scalar_lea.vmem %s8, %s872
        $region64: #{whisper_decoder_with_past.1} parent=31 // pred_fallthru
          _
        // Predicated region
        $region65: #{whisper_decoder_with_past.1} parent=31 // pred_check
          %p874 = pneg %p290
        $region66: #{whisper_decoder_with_past.1} parent=31 // pred_check_branch
          %876 = sbr.rel (%p874) target = $region68
        $region67: #{whisper_decoder_with_past.1} parent=31 // pred_region
          %p877 = scmp.lt.s32.totalorder %s41, 3
          %s878 = scalar_select %p877, %s41, 3
          %s879 = smul.addr %s878, 16
          %s880 = smul.addr %s879, 4
          %s881 = scalar_lea.vmem %s9, %s880
        $region68: #{whisper_decoder_with_past.1} parent=31 // pred_fallthru
          _
        // Predicated region
        $region69: #{whisper_decoder_with_past.1} parent=31 // pred_check
          %p882 = pneg %p316
        $region70: #{whisper_decoder_with_past.1} parent=31 // pred_check_branch
          %884 = sbr.rel (%p882) target = $region72
        $region71: #{whisper_decoder_with_past.1} parent=31 // pred_region
          %p885 = scmp.lt.s32.totalorder %s41, 3
          %s886 = scalar_select %p885, %s41, 3
          %s887 = scalar_lea.vmem %s10, %s886
        $region72: #{whisper_decoder_with_past.1} parent=31 // pred_fallthru
          _
        // Predicated region
        $region73: #{whisper_decoder_with_past.1} parent=31 // pred_check
          %p888 = pneg %p342
        $region74: #{whisper_decoder_with_past.1} parent=31 // pred_check_branch
          %890 = sbr.rel (%p888) target = $region76
        $region75: #{whisper_decoder_with_past.1} parent=31 // pred_region
          %p891 = scmp.lt.s32.totalorder %s41, 3
          %s892 = scalar_select %p891, %s41, 3
          %s893 = scalar_lea.vmem %s11, %s892
        $region76: #{whisper_decoder_with_past.1} parent=31 // pred_fallthru
          _
        // Predicated region
        $region77: #{whisper_decoder_with_past.1} parent=31 // pred_check
          %p894 = pneg %p368
        $region78: #{whisper_decoder_with_past.1} parent=31 // pred_check_branch
          %896 = sbr.rel (%p894) target = $region80
        $region79: #{whisper_decoder_with_past.1} parent=31 // pred_region
          %p897 = scmp.lt.s32.totalorder %s41, 3
          %s898 = scalar_select %p897, %s41, 3
          %s899 = scalar_lea.vmem %s12, %s898
        $region80: #{whisper_decoder_with_past.1} parent=31 // pred_fallthru
          _
        // Predicated region
        $region81: #{whisper_decoder_with_past.1} parent=31 // pred_check
          %p900 = pneg %p394
        $region82: #{whisper_decoder_with_past.1} parent=31 // pred_check_branch
          %902 = sbr.rel (%p900) target = $region84
        $region83: #{whisper_decoder_with_past.1} parent=31 // pred_region
          %p903 = scmp.lt.s32.totalorder %s41, 3
          %s904 = scalar_select %p903, %s41, 3
          %s905 = smul.addr %s904, 16
          %s906 = smul.addr %s905, 4
          %s907 = scalar_lea.vmem %s13, %s906
        $region84: #{whisper_decoder_with_past.1} parent=31 // pred_fallthru
          _
        // Predicated region
        $region85: #{whisper_decoder_with_past.1} parent=31 // pred_check
          %p908 = pneg %p420
        $region86: #{whisper_decoder_with_past.1} parent=31 // pred_check_branch
          %910 = sbr.rel (%p908) target = $region88
        $region87: #{whisper_decoder_with_past.1} parent=31 // pred_region
          %p911 = scmp.lt.s32.totalorder %s41, 3
          %s912 = scalar_select %p911, %s41, 3
          %s913 = scalar_lea.vmem %s14, %s912
        $region88: #{whisper_decoder_with_past.1} parent=31 // pred_fallthru
          _
        // Predicated region
        $region89: #{whisper_decoder_with_past.1} parent=31 // pred_check
          %p914 = pneg %p446
        $region90: #{whisper_decoder_with_past.1} parent=31 // pred_check_branch
          %916 = sbr.rel (%p914) target = $region92
        $region91: #{whisper_decoder_with_past.1} parent=31 // pred_region
          %s917 = sand.u32 %s41, 1
          %s918 = scalar_lea.sflag [#allocation7], %s917
          %s919 = sand.u32 %s436, 1
          %s920 = smul.addr %s919, 64
          %s921 = scalar_lea.vmem [#allocation6], %s920
          %923 = vsyncadd %s918, 0
          %s924 = smul.addr %s41, 16
          %s925 = smul.addr %s924, 4
          %s926 = scalar_lea.hbm %s15, %s925
          %s927 = sshll.u32 %s926, 4
          %s928 = int_to_ptr.hbm [resolvable:$true] %s927
          %s929 = sshll.u32 %s921, 4
          %s930 = int_to_ptr.vmem [resolvable:$true] %s929
          %935 = dma.hbm_to_vmem [thread:$0]  %s928, 1024, %s930, %s918, 64, 64, 4
        $region92: #{whisper_decoder_with_past.1} parent=31 // pred_fallthru
          _
        // Predicated region
        $region93: #{whisper_decoder_with_past.1} parent=31 // pred_check
          %p936 = pneg %p472
        $region94: #{whisper_decoder_with_past.1} parent=31 // pred_check_branch
          %938 = sbr.rel (%p936) target = $region96
        $region95: #{whisper_decoder_with_past.1} parent=31 // pred_region
          %p939 = scmp.lt.s32.totalorder %s41, 3
          %s940 = scalar_select %p939, %s41, 3
          %s941 = scalar_lea.vmem %s16, %s940
        $region96: #{whisper_decoder_with_past.1} parent=31 // pred_fallthru
          _
        // Predicated region
        $region97: #{whisper_decoder_with_past.1} parent=31 // pred_check
          %p942 = pneg %p498
        $region98: #{whisper_decoder_with_past.1} parent=31 // pred_check_branch
          %944 = sbr.rel (%p942) target = $region100
        $region99: #{whisper_decoder_with_past.1} parent=31 // pred_region
          %p945 = scmp.lt.s32.totalorder %s41, 3
          %s946 = scalar_select %p945, %s41, 3
          %s947 = scalar_lea.vmem %s17, %s946
        $region100: #{whisper_decoder_with_past.1} parent=31 // pred_fallthru
          _
        // Predicated region
        $region101: #{whisper_decoder_with_past.1} parent=31 // pred_check
          %p948 = pneg %p524
        $region102: #{whisper_decoder_with_past.1} parent=31 // pred_check_branch
          %950 = sbr.rel (%p948) target = $region104
        $region103: #{whisper_decoder_with_past.1} parent=31 // pred_region
          %p951 = scmp.lt.s32.totalorder %s41, 3
          %s952 = scalar_select %p951, %s41, 3
          %s953 = scalar_lea.vmem %s18, %s952
        $region104: #{whisper_decoder_with_past.1} parent=31 // pred_fallthru
          _
        // Predicated region
        $region105: #{whisper_decoder_with_past.1} parent=31 // pred_check
          %p954 = pneg %p550
        $region106: #{whisper_decoder_with_past.1} parent=31 // pred_check_branch
          %956 = sbr.rel (%p954) target = $region108
        $region107: #{whisper_decoder_with_past.1} parent=31 // pred_region
          %p957 = scmp.lt.s32.totalorder %s41, 3
          %s958 = scalar_select %p957, %s41, 3
          %s959 = smul.addr %s958, 32
          %s960 = smul.addr %s959, 4
          %s961 = scalar_lea.vmem %s19, %s960
        $region108: #{whisper_decoder_with_past.1} parent=31 // pred_fallthru
          _
        // Predicated region
        $region109: #{whisper_decoder_with_past.1} parent=31 // pred_check
          %p962 = pneg %p576
        $region110: #{whisper_decoder_with_past.1} parent=31 // pred_check_branch
          %964 = sbr.rel (%p962) target = $region112
        $region111: #{whisper_decoder_with_past.1} parent=31 // pred_region
          %p965 = scmp.lt.s32.totalorder %s41, 3
          %s966 = scalar_select %p965, %s41, 3
          %s967 = smul.addr %s966, 2
          %s968 = scalar_lea.vmem %s20, %s967
        $region112: #{whisper_decoder_with_past.1} parent=31 // pred_fallthru
          _
        // Predicated region
        $region113: #{whisper_decoder_with_past.1} parent=31 // pred_check
          %p969 = pneg %p602
        $region114: #{whisper_decoder_with_past.1} parent=31 // pred_check_branch
          %971 = sbr.rel (%p969) target = $region116
        $region115: #{whisper_decoder_with_past.1} parent=31 // pred_region
          %s972 = sand.u32 %s41, 1
          %s973 = scalar_lea.sflag [#allocation7], %s972
          %s974 = sand.u32 %s592, 1
          %s975 = smul.addr %s974, 128
          %s976 = scalar_lea.vmem [#allocation8], %s975
          %978 = vsyncadd %s973, 0
          %s979 = smul.addr %s41, 32
          %s980 = smul.addr %s979, 4
          %s981 = scalar_lea.hbm %s21, %s980
          %s982 = sshll.u32 %s981, 4
          %s983 = int_to_ptr.hbm [resolvable:$true] %s982
          %s984 = sshll.u32 %s976, 4
          %s985 = int_to_ptr.vmem [resolvable:$true] %s984
          %990 = dma.hbm_to_vmem [thread:$0]  %s983, 2048, %s985, %s973, 64, 64, 4
        $region116: #{whisper_decoder_with_past.1} parent=31 // pred_fallthru
          _
        // Predicated region
        $region117: #{whisper_decoder_with_past.1} parent=31 // pred_check
          %p991 = pneg %p628
        $region118: #{whisper_decoder_with_past.1} parent=31 // pred_check_branch
          %993 = sbr.rel (%p991) target = $region120
        $region119: #{whisper_decoder_with_past.1} parent=31 // pred_region
          %p994 = scmp.lt.s32.totalorder %s41, 3
          %s995 = scalar_select %p994, %s41, 3
          %s996 = scalar_lea.vmem %s22, %s995
        $region120: #{whisper_decoder_with_past.1} parent=31 // pred_fallthru
          _
      $region32: #{whisper_decoder_with_past.1} parent=5 // pred_fallthru
        _
      %p997 = scmp.le.s32.totalorder 1, %s41
      %p998 = scmp.lt.s32.totalorder %s41, 5
      %p999 = pnand %p997, %p998
      %p1000 = pneg %p999
      // Predicated region
      $region121: #{whisper_decoder_with_past.1} parent=5 // pred_check
        _
      $region122: #{whisper_decoder_with_past.1} parent=5 // pred_check_branch
        %1002 = sbr.rel (%p999) target = $region124
      $region123: #{whisper_decoder_with_past.1} parent=5 // pred_region
        %s1003 = ssub.s32 %s41, 1
        %s1004 = sand.u32 %s231, 1
        %s1005 = scalar_lea.sflag [#allocation5], %s1004
        %s1006 = sand.u32 %s231, 1
        %s1007 = smul.addr %s1006, 192
        %s1008 = scalar_lea.vmem [#allocation4], %s1007
        // Predicated region
        $region125: #{whisper_decoder_with_past.1} parent=123 // pred_check
          %p1009 = pneg %p244
        $region126: #{whisper_decoder_with_past.1} parent=123 // pred_check_branch
          %1011 = sbr.rel (%p1009) target = $region128
        $region127: #{whisper_decoder_with_past.1} parent=123 // pred_region
          %1013 = dma.done %s1005, 3072
        $region128: #{whisper_decoder_with_past.1} parent=123 // pred_fallthru
          _
        %s1014 = sand.u32 %s46, 1
        %s1015 = scalar_lea.sflag [#allocation7], %s1014
        %s1016 = sand.u32 %s439, 1
        %s1017 = smul.addr %s1016, 64
        %s1018 = scalar_lea.vmem [#allocation6], %s1017
        // Predicated region
        $region129: #{whisper_decoder_with_past.1} parent=123 // pred_check
          %p1019 = pneg %p452
        $region130: #{whisper_decoder_with_past.1} parent=123 // pred_check_branch
          %1021 = sbr.rel (%p1019) target = $region132
        $region131: #{whisper_decoder_with_past.1} parent=123 // pred_region
          %1023 = dma.done %s1015, 1024
        $region132: #{whisper_decoder_with_past.1} parent=123 // pred_fallthru
          _
        %s1024 = sand.u32 %s46, 1
        %s1025 = scalar_lea.sflag [#allocation7], %s1024
        %s1026 = sand.u32 %s595, 1
        %s1027 = smul.addr %s1026, 128
        %s1028 = scalar_lea.vmem [#allocation8], %s1027
        // Predicated region
        $region133: #{whisper_decoder_with_past.1} parent=123 // pred_check
          %p1029 = pneg %p608
        $region134: #{whisper_decoder_with_past.1} parent=123 // pred_check_branch
          %1031 = sbr.rel (%p1029) target = $region136
        $region135: #{whisper_decoder_with_past.1} parent=123 // pred_region
          %1033 = dma.done %s1025, 2048
        $region136: #{whisper_decoder_with_past.1} parent=123 // pred_fallthru
          _
        %p1034 = pneg %p62
        %p1035 = pneg %p59
        %p1036 = scmp.lt.s32.totalorder %s46, 3
        %s1037 = scalar_select %p1036, %s46, 3
        %s1038 = smul.addr %s1037, 4
        %s1039 = smul.addr %s1038, 8
        %s1040 = scalar_lea.vmem %s1, %s1039
        %p1041 = pneg %p88
        %p1042 = pneg %p85
        %p1043 = scmp.lt.s32.totalorder %s46, 3
        %s1044 = scalar_select %p1043, %s46, 3
        %s1045 = smul.addr %s1044, 4
        %s1046 = smul.addr %s1045, 8
        %s1047 = scalar_lea.vmem %s2, %s1046
        %p1048 = pneg %p114
        %p1049 = pneg %p111
        %p1050 = scmp.lt.s32.totalorder %s46, 3
        %s1051 = scalar_select %p1050, %s46, 3
        %s1052 = smul.addr %s1051, 8
        %s1053 = smul.addr %s1052, 8
        %s1054 = scalar_lea.vmem %s3, %s1053
        %p1055 = pneg %p140
        %p1056 = pneg %p137
        %p1057 = scmp.lt.s32.totalorder %s46, 3
        %s1058 = scalar_select %p1057, %s46, 3
        %s1059 = smul.addr %s1058, 8
        %s1060 = smul.addr %s1059, 8
        %s1061 = scalar_lea.vmem %s4, %s1060
        %p1062 = pneg %p166
        %p1063 = pneg %p163
        %p1064 = scmp.lt.s32.totalorder %s46, 3
        %s1065 = scalar_select %p1064, %s46, 3
        %s1066 = scalar_lea.vmem %s5, %s1065
        %p1067 = pneg %p192
        %p1068 = pneg %p189
        %p1069 = scmp.lt.s32.totalorder %s46, 3
        %s1070 = scalar_select %p1069, %s46, 3
        %s1071 = scalar_lea.vmem %s6, %s1070
        %p1072 = pneg %p218
        %p1073 = pneg %p215
        %s1074 = sand.u32 %s231, 1
        %s1075 = scalar_lea.sflag [#allocation5], %s1074
        %s1076 = sand.u32 %s231, 1
        %s1077 = smul.addr %s1076, 192
        %s1078 = scalar_lea.vmem [#allocation4], %s1077
        %p1079 = pneg %p244
        %p1080 = pneg %p241
        %p1081 = scmp.lt.s32.totalorder %s46, 3
        %s1082 = scalar_select %p1081, %s46, 3
        %s1083 = smul.addr %s1082, 3
        %s1084 = scalar_lea.vmem %s8, %s1083
        %p1085 = pneg %p270
        %p1086 = pneg %p267
        %p1087 = scmp.lt.s32.totalorder %s46, 3
        %s1088 = scalar_select %p1087, %s46, 3
        %s1089 = smul.addr %s1088, 16
        %s1090 = smul.addr %s1089, 4
        %s1091 = scalar_lea.vmem %s9, %s1090
        %p1092 = pneg %p296
        %p1093 = pneg %p293
        %p1094 = scmp.lt.s32.totalorder %s46, 3
        %s1095 = scalar_select %p1094, %s46, 3
        %s1096 = scalar_lea.vmem %s10, %s1095
        %p1097 = pneg %p322
        %p1098 = pneg %p319
        %p1099 = scmp.lt.s32.totalorder %s46, 3
        %s1100 = scalar_select %p1099, %s46, 3
        %s1101 = scalar_lea.vmem %s11, %s1100
        %p1102 = pneg %p348
        %p1103 = pneg %p345
        %p1104 = scmp.lt.s32.totalorder %s46, 3
        %s1105 = scalar_select %p1104, %s46, 3
        %s1106 = scalar_lea.vmem %s12, %s1105
        %p1107 = pneg %p374
        %p1108 = pneg %p371
        %p1109 = scmp.lt.s32.totalorder %s46, 3
        %s1110 = scalar_select %p1109, %s46, 3
        %s1111 = smul.addr %s1110, 16
        %s1112 = smul.addr %s1111, 4
        %s1113 = scalar_lea.vmem %s13, %s1112
        %p1114 = pneg %p400
        %p1115 = pneg %p397
        %p1116 = scmp.lt.s32.totalorder %s46, 3
        %s1117 = scalar_select %p1116, %s46, 3
        %s1118 = scalar_lea.vmem %s14, %s1117
        %p1119 = pneg %p426
        %p1120 = pneg %p423
        %s1121 = sand.u32 %s46, 1
        %s1122 = scalar_lea.sflag [#allocation7], %s1121
        %s1123 = sand.u32 %s439, 1
        %s1124 = smul.addr %s1123, 64
        %s1125 = scalar_lea.vmem [#allocation6], %s1124
        %p1126 = pneg %p452
        %p1127 = pneg %p449
        %p1128 = scmp.lt.s32.totalorder %s46, 3
        %s1129 = scalar_select %p1128, %s46, 3
        %s1130 = scalar_lea.vmem %s16, %s1129
        %p1131 = pneg %p478
        %p1132 = pneg %p475
        %p1133 = scmp.lt.s32.totalorder %s46, 3
        %s1134 = scalar_select %p1133, %s46, 3
        %s1135 = scalar_lea.vmem %s17, %s1134
        %p1136 = pneg %p504
        %p1137 = pneg %p501
        %p1138 = scmp.lt.s32.totalorder %s46, 3
        %s1139 = scalar_select %p1138, %s46, 3
        %s1140 = scalar_lea.vmem %s18, %s1139
        %p1141 = pneg %p530
        %p1142 = pneg %p527
        %p1143 = scmp.lt.s32.totalorder %s46, 3
        %s1144 = scalar_select %p1143, %s46, 3
        %s1145 = smul.addr %s1144, 32
        %s1146 = smul.addr %s1145, 4
        %s1147 = scalar_lea.vmem %s19, %s1146
        %p1148 = pneg %p556
        %p1149 = pneg %p553
        %p1150 = scmp.lt.s32.totalorder %s46, 3
        %s1151 = scalar_select %p1150, %s46, 3
        %s1152 = smul.addr %s1151, 2
        %s1153 = scalar_lea.vmem %s20, %s1152
        %p1154 = pneg %p582
        %p1155 = pneg %p579
        %s1156 = sand.u32 %s46, 1
        %s1157 = scalar_lea.sflag [#allocation7], %s1156
        %s1158 = sand.u32 %s595, 1
        %s1159 = smul.addr %s1158, 128
        %s1160 = scalar_lea.vmem [#allocation8], %s1159
        %p1161 = pneg %p608
        %p1162 = pneg %p605
        %p1163 = scmp.lt.s32.totalorder %s46, 3
        %s1164 = scalar_select %p1163, %s46, 3
        %s1165 = scalar_lea.vmem %s22, %s1164
        %p1166 = pneg %p634
        %p1167 = pneg %p631
        %p1168 = pneg %p655
        %p1169 = pneg %p652
        %p1170 = pneg %p676
        %p1171 = pneg %p673
        %p1172 = pneg %p697
        %p1173 = pneg %p694
        %p1174 = pneg %p718
        %p1175 = pneg %p715
        %p1176 = pneg %p744
        %p1177 = pneg %p741
        %p1178 = scmp.lt.s32.totalorder %s46, 3
        %s1179 = scalar_select %p1178, %s46, 3
        %s1180 = smul.addr %s1179, 4
        %s1181 = smul.addr %s1180, 8
        %s1182 = scalar_lea.vmem %s27, %s1181
        %p1183 = pneg %p770
        %p1184 = pneg %p767
        %p1185 = scmp.lt.s32.totalorder %s46, 3
        %s1186 = scalar_select %p1185, %s46, 3
        %s1187 = smul.addr %s1186, 4
        %s1188 = smul.addr %s1187, 8
        %s1189 = scalar_lea.vmem %s28, %s1188
        %p1190 = scmp.lt.s32.totalorder %s46, 3
        %s1191 = scalar_select %p1190, %s46, 3
        %s1192 = smul.addr %s1191, 4
        %s1193 = smul.addr %s1192, 8
        %s1194 = scalar_lea.vmem %s1, %s1193
        %p1195 = scmp.lt.s32.totalorder %s46, 3
        %s1196 = scalar_select %p1195, %s46, 3
        %s1197 = smul.addr %s1196, 4
        %s1198 = smul.addr %s1197, 8
        %s1199 = scalar_lea.vmem %s2, %s1198
        %p1200 = scmp.lt.s32.totalorder %s46, 3
        %s1201 = scalar_select %p1200, %s46, 3
        %s1202 = smul.addr %s1201, 8
        %s1203 = smul.addr %s1202, 8
        %s1204 = scalar_lea.vmem %s3, %s1203
        %p1205 = scmp.lt.s32.totalorder %s46, 3
        %s1206 = scalar_select %p1205, %s46, 3
        %s1207 = smul.addr %s1206, 8
        %s1208 = smul.addr %s1207, 8
        %s1209 = scalar_lea.vmem %s4, %s1208
        %p1210 = scmp.lt.s32.totalorder %s46, 3
        %s1211 = scalar_select %p1210, %s46, 3
        %s1212 = scalar_lea.vmem %s5, %s1211
        %p1213 = scmp.lt.s32.totalorder %s46, 3
        %s1214 = scalar_select %p1213, %s46, 3
        %s1215 = scalar_lea.vmem %s6, %s1214
        %p1216 = scmp.lt.s32.totalorder %s46, 3
        %s1217 = scalar_select %p1216, %s46, 3
        %s1218 = smul.addr %s1217, 3
        %s1219 = scalar_lea.vmem %s8, %s1218
        %p1220 = scmp.lt.s32.totalorder %s46, 3
        %s1221 = scalar_select %p1220, %s46, 3
        %s1222 = smul.addr %s1221, 16
        %s1223 = smul.addr %s1222, 4
        %s1224 = scalar_lea.vmem %s9, %s1223
        %p1225 = scmp.lt.s32.totalorder %s46, 3
        %s1226 = scalar_select %p1225, %s46, 3
        %s1227 = scalar_lea.vmem %s10, %s1226
        %p1228 = scmp.lt.s32.totalorder %s46, 3
        %s1229 = scalar_select %p1228, %s46, 3
        %s1230 = scalar_lea.vmem %s11, %s1229
        %p1231 = scmp.lt.s32.totalorder %s46, 3
        %s1232 = scalar_select %p1231, %s46, 3
        %s1233 = scalar_lea.vmem %s12, %s1232
        %p1234 = scmp.lt.s32.totalorder %s46, 3
        %s1235 = scalar_select %p1234, %s46, 3
        %s1236 = smul.addr %s1235, 16
        %s1237 = smul.addr %s1236, 4
        %s1238 = scalar_lea.vmem %s13, %s1237
        %p1239 = scmp.lt.s32.totalorder %s46, 3
        %s1240 = scalar_select %p1239, %s46, 3
        %s1241 = scalar_lea.vmem %s14, %s1240
        %p1242 = scmp.lt.s32.totalorder %s46, 3
        %s1243 = scalar_select %p1242, %s46, 3
        %s1244 = scalar_lea.vmem %s16, %s1243
        %p1245 = scmp.lt.s32.totalorder %s46, 3
        %s1246 = scalar_select %p1245, %s46, 3
        %s1247 = scalar_lea.vmem %s17, %s1246
        %p1248 = scmp.lt.s32.totalorder %s46, 3
        %s1249 = scalar_select %p1248, %s46, 3
        %s1250 = scalar_lea.vmem %s18, %s1249
        %p1251 = scmp.lt.s32.totalorder %s46, 3
        %s1252 = scalar_select %p1251, %s46, 3
        %s1253 = smul.addr %s1252, 32
        %s1254 = smul.addr %s1253, 4
        %s1255 = scalar_lea.vmem %s19, %s1254
        %p1256 = scmp.lt.s32.totalorder %s46, 3
        %s1257 = scalar_select %p1256, %s46, 3
        %s1258 = smul.addr %s1257, 2
        %s1259 = scalar_lea.vmem %s20, %s1258
        %p1260 = scmp.lt.s32.totalorder %s46, 3
        %s1261 = scalar_select %p1260, %s46, 3
        %s1262 = scalar_lea.vmem %s22, %s1261
        %p1263 = scmp.lt.s32.totalorder %s46, 3
        %s1264 = scalar_select %p1263, %s46, 3
        %s1265 = smul.addr %s1264, 4
        %s1266 = smul.addr %s1265, 8
        %s1267 = scalar_lea.vmem %s27, %s1266
        %p1268 = scmp.lt.s32.totalorder %s46, 3
        %s1269 = scalar_select %p1268, %s46, 3
        %s1270 = smul.addr %s1269, 4
        %s1271 = smul.addr %s1270, 8
        %s1272 = scalar_lea.vmem %s28, %s1271
        %p1273 = scmp.eq.s32.totalorder %s46, 0
        // Predicated region
        $region137: #{whisper_decoder_with_past.1} parent=123 // pred_check
          %p1274 = pneg %p1273
        $region138: #{whisper_decoder_with_past.1} parent=123 // pred_check_branch
          %1276 = sbr.rel (%p1274) target = $region140
        $region139: #{whisper_decoder_with_past.1} parent=123 // pred_region
          %v1277 = vld [vmem:[%s0] sm:$0x3]
          %1278 = vst [vmem:[#allocation2] sm:$0x3] %v1277
        $region140: #{whisper_decoder_with_past.1} parent=123 // pred_fallthru
          _
        %v1279 = vld [vmem:[#allocation2] sm:$0x3]
        %v1280 = vld [vmem:[%s1212] sm:$0x1]
        %v1281 = vld [vmem:[%s1215] sm:$0x1]
        %vm1282 = vcmask 1041408
        %v1283 = vsel %vm1282, %v1279, 0.0
        %1284 = vadd.xlane.f32.xlu0 %v1283
        %v1285 = vpop.xlane.xlu0 %1284
        %v1286 = vrcp.pop 128.0
        %v1287 = vmul.f32 128.0, %v1286
        %v1288 = vsub.f32 1.0, %v1287
        %v1289 = vmul.f32 %v1286, %v1288
        %v1290 = vadd.f32 %v1286, %v1289
        %vm1291 = vweird.f32 %v1286
        %v1292 = vsel %vm1291, %v1286, %v1290
        %v1293 = vmul.f32 %v1285, %v1292
        %v1294 = vsub.f32 %v1279, %v1293
        %v1295 = vmul.f32 %v1294, %v1294
        %v1296 = vsel %vm1282, %v1295, 0.0
        %1297 = vadd.xlane.f32.xlu0 %v1296
        %v1298 = vpop.xlane.xlu0 %1297
        %v1299 = vmul.f32 %v1298, %v1292
        %v1300 = vadd.f32 %v1299, 1e-05
        %v1301 = vrsqrt.pop %v1300
        %v1302 = vmul.f32 %v1301, %v1300
        %v1303 = vmul.f32 %v1302, %v1301
        %v1304 = vmul.f32 0.5, %v1303
        %v1305 = vsub.f32 1.5, %v1304
        %v1306 = vmul.f32 %v1301, %v1305
        %vm1307 = vweird.f32 %v1300
        %vm1308 = vweird.f32 %v1301
        %vm1309 = vmor %vm1307, %vm1308
        %v1310 = vsel %vm1309, %v1301, %v1306
        %v1311 = vmul.f32 %v1294, %v1310
        %v1313 = vperm.slane %v1280, 0
        %v1315 = vmul.f32 %v1311, %v1313
        %v1317 = vperm.slane %v1281, 0
        %v1319 = vadd.f32 %v1315, %v1317
        %v1320 = vld [vmem:[%s1008] sm:$0xff]
        %v1321 = vld [vmem:[%s1008 + $0x8] sm:$0xf]
        %v1322 = vld [vmem:[%s1008 + $0xc] sm:$0xff]
        %v1323 = vld [vmem:[%s1008 + $0x14] sm:$0xf]
        %v1324 = vld [vmem:[%s1008 + $0x18] sm:$0xff]
        %v1325 = vld [vmem:[%s1008 + $0x20] sm:$0xf]
        %v1326 = vld [vmem:[%s1008 + $0x24] sm:$0xff]
        %v1327 = vld [vmem:[%s1008 + $0x2c] sm:$0xf]
        %v1328 = vld [vmem:[%s1008 + $0x30] sm:$0xff]
        %v1329 = vld [vmem:[%s1008 + $0x38] sm:$0xf]
        %v1330 = vld [vmem:[%s1008 + $0x3c] sm:$0xff]
        %v1331 = vld [vmem:[%s1008 + $0x44] sm:$0xf]
        %v1332 = vld [vmem:[%s1008 + $0x48] sm:$0xff]
        %v1333 = vld [vmem:[%s1008 + $0x50] sm:$0xf]
        %v1334 = vld [vmem:[%s1008 + $0x54] sm:$0xff]
        %v1335 = vld [vmem:[%s1008 + $0x5c] sm:$0xf]
        %v1336 = vld [vmem:[%s1008 + $0x60] sm:$0xff]
        %v1337 = vld [vmem:[%s1008 + $0x68] sm:$0xf]
        %v1338 = vld [vmem:[%s1008 + $0x6c] sm:$0xff]
        %v1339 = vld [vmem:[%s1008 + $0x74] sm:$0xf]
        %v1340 = vld [vmem:[%s1008 + $0x78] sm:$0xff]
        %v1341 = vld [vmem:[%s1008 + $0x80] sm:$0xf]
        %v1342 = vld [vmem:[%s1008 + $0x84] sm:$0xff]
        %v1343 = vld [vmem:[%s1008 + $0x8c] sm:$0xf]
        %v1344 = vld [vmem:[%s1008 + $0x90] sm:$0xff]
        %v1345 = vld [vmem:[%s1008 + $0x98] sm:$0xf]
        %v1346 = vld [vmem:[%s1008 + $0x9c] sm:$0xff]
        %v1347 = vld [vmem:[%s1008 + $0xa4] sm:$0xf]
        %v1348 = vld [vmem:[%s1008 + $0xa8] sm:$0xff]
        %v1349 = vld [vmem:[%s1008 + $0xb0] sm:$0xf]
        %v1350 = vld [vmem:[%s1008 + $0xb4] sm:$0xff]
        %v1351 = vld [vmem:[%s1008 + $0xbc] sm:$0xf]
        %v1352 = vpack.c.bf16 %v1319, %v1319
        %v1353 = vld [vmem:[%s1219] sm:$0x7]
        %v1355 = vperm.slane %v1353, 0
        %v1356 = vperm.slane %v1353, 1
        %v1357 = vperm.slane %v1353, 2
        %v1393 = vunpack.c.l.b16 %v1320
        %v1394 = vunpack.c.h.b16 %v1320
        %v1395 = vunpack.c.l.b16 %v1321
        %v1396 = vunpack.c.l.b16 %v1322
        %v1397 = vunpack.c.h.b16 %v1322
        %v1398 = vunpack.c.l.b16 %v1323
        %v1399 = vunpack.c.l.b16 %v1324
        %v1400 = vunpack.c.h.b16 %v1324
        %v1401 = vunpack.c.l.b16 %v1325
        %v1402 = vunpack.c.l.b16 %v1326
        %v1403 = vunpack.c.h.b16 %v1326
        %v1404 = vunpack.c.l.b16 %v1327
        %v1405 = vunpack.c.l.b16 %v1328
        %v1406 = vunpack.c.h.b16 %v1328
        %v1407 = vunpack.c.l.b16 %v1329
        %v1408 = vunpack.c.l.b16 %v1330
        %v1409 = vunpack.c.h.b16 %v1330
        %v1410 = vunpack.c.l.b16 %v1331
        %v1411 = vunpack.c.l.b16 %v1332
        %v1412 = vunpack.c.h.b16 %v1332
        %v1413 = vunpack.c.l.b16 %v1333
        %v1414 = vunpack.c.l.b16 %v1334
        %v1415 = vunpack.c.h.b16 %v1334
        %v1416 = vunpack.c.l.b16 %v1335
        %v1417 = vunpack.c.l.b16 %v1336
        %v1418 = vunpack.c.h.b16 %v1336
        %v1419 = vunpack.c.l.b16 %v1337
        %v1420 = vunpack.c.l.b16 %v1338
        %v1421 = vunpack.c.h.b16 %v1338
        %v1422 = vunpack.c.l.b16 %v1339
        %v1423 = vunpack.c.l.b16 %v1340
        %v1424 = vunpack.c.h.b16 %v1340
        %v1425 = vunpack.c.l.b16 %v1341
        %v1426 = vunpack.c.l.b16 %v1342
        %v1427 = vunpack.c.h.b16 %v1342
        %v1428 = vunpack.c.l.b16 %v1343
        %v1429 = vunpack.c.l.b16 %v1344
        %v1430 = vunpack.c.h.b16 %v1344
        %v1431 = vunpack.c.l.b16 %v1345
        %v1432 = vunpack.c.l.b16 %v1346
        %v1433 = vunpack.c.h.b16 %v1346
        %v1434 = vunpack.c.l.b16 %v1347
        %v1435 = vunpack.c.l.b16 %v1348
        %v1436 = vunpack.c.h.b16 %v1348
        %v1437 = vunpack.c.l.b16 %v1349
        %v1438 = vunpack.c.l.b16 %v1350
        %v1439 = vunpack.c.h.b16 %v1350
        %v1440 = vunpack.c.l.b16 %v1351
        %v1441 = vpack.c.b16 %v1396, %v1393
        %v1442 = vpack.c.b16 %v1397, %v1394
        %v1443 = vpack.c.b16 %v1398, %v1395
        %v1444 = vpack.c.b16 %v1402, %v1399
        %v1445 = vpack.c.b16 %v1403, %v1400
        %v1446 = vpack.c.b16 %v1404, %v1401
        %v1447 = vpack.c.b16 %v1408, %v1405
        %v1448 = vpack.c.b16 %v1409, %v1406
        %v1449 = vpack.c.b16 %v1410, %v1407
        %v1450 = vpack.c.b16 %v1414, %v1411
        %v1451 = vpack.c.b16 %v1415, %v1412
        %v1452 = vpack.c.b16 %v1416, %v1413
        %v1453 = vpack.c.b16 %v1420, %v1417
        %v1454 = vpack.c.b16 %v1421, %v1418
        %v1455 = vpack.c.b16 %v1422, %v1419
        %v1456 = vpack.c.b16 %v1426, %v1423
        %v1457 = vpack.c.b16 %v1427, %v1424
        %v1458 = vpack.c.b16 %v1428, %v1425
        %v1459 = vpack.c.b16 %v1432, %v1429
        %v1460 = vpack.c.b16 %v1433, %v1430
        %v1461 = vpack.c.b16 %v1434, %v1431
        %v1462 = vpack.c.b16 %v1438, %v1435
        %v1463 = vpack.c.b16 %v1439, %v1436
        %v1464 = vpack.c.b16 %v1440, %v1437
        %1489 = vmatpush.bf16.msra.mxu0 %v1462
        %1490 = vmatpush.bf16.msra.mxu0 %v1459
        %1491 = vmatpush.bf16.msra.mxu0 %v1456
        %1492 = vmatpush.bf16.msra.mxu0 %v1453
        %1493 = vmatpush.bf16.msra.mxu0 %v1450
        %1494 = vmatpush.bf16.msra.mxu0 %v1447
        %1495 = vmatpush.bf16.msra.mxu0 %v1444
        %1496 = vmatpush.bf16.msra.mxu0 %v1441
        %1497 = vmatmul.bf16.gmra.mxu0 %v1352
        %v1498 = vpop.f32.mrf.mxu0
        %v1499 = vadd.f32 %v1355, %v1498
        %v1500 = vpop.f32.mrf.mxu0
        %1501 = vdwg.mxu0
        %1502 = vmatpush.bf16.msra.mxu0 %v1463
        %1503 = vmatpush.bf16.msra.mxu0 %v1460
        %1504 = vmatpush.bf16.msra.mxu0 %v1457
        %1505 = vmatpush.bf16.msra.mxu0 %v1454
        %1506 = vmatpush.bf16.msra.mxu0 %v1451
        %1507 = vmatpush.bf16.msra.mxu0 %v1448
        %1508 = vmatpush.bf16.msra.mxu0 %v1445
        %1509 = vmatpush.bf16.msra.mxu0 %v1442
        %1510 = vmatmul.bf16.gmra.mxu0 %v1352
        %v1511 = vpop.f32.mrf.mxu0
        %v1512 = vadd.f32 %v1356, %v1511
        %v1513 = vpop.f32.mrf.mxu0
        %1514 = vdwg.mxu0
        %1515 = vmatpush.bf16.msra.mxu0 %v1464
        %1516 = vmatpush.bf16.msra.mxu0 %v1461
        %1517 = vmatpush.bf16.msra.mxu0 %v1458
        %1518 = vmatpush.bf16.msra.mxu0 %v1455
        %1519 = vmatpush.bf16.msra.mxu0 %v1452
        %1520 = vmatpush.bf16.msra.mxu0 %v1449
        %1521 = vmatpush.bf16.msra.mxu0 %v1446
        %1522 = vmatpush.bf16.msra.mxu0 %v1443
        %1523 = vmatmul.bf16.gmra.mxu0 %v1352
        %v1524 = vpop.f32.mrf.mxu0
        %v1525 = vadd.f32 %v1357, %v1524
        %v1526 = vpop.f32.mrf.mxu0
        %1527 = vdwg.mxu0
        %v1528 = vmul.f32 %v1499, 0.125
        %v1529 = vld [vmem:[%s1194] sm:$0x7f]
        %v1530 = vld [vmem:[%s1194 + $0x8] sm:$0x7f]
        %v1531 = vld [vmem:[%s1194 + $0x10] sm:$0x7f]
        %v1532 = vld [vmem:[%s1194 + $0x18] sm:$0x7f]
        %vm1533 = vcmask 522240
        %1534 = vst.msk [vmem:[%s1267] sm:$0x7f] %vm1533, %v1529
        %1535 = vst.msk [vmem:[%s1267 + $0x8] sm:$0x7f] %vm1533, %v1530
        %1536 = vst.msk [vmem:[%s1267 + $0x10] sm:$0x7f] %vm1533, %v1531
        %1537 = vst.msk [vmem:[%s1267 + $0x18] sm:$0x7f] %vm1533, %v1532
        %v1538 = vld [vmem:[%s1199] sm:$0x7f]
        %v1539 = vld [vmem:[%s1199 + $0x8] sm:$0x7f]
        %v1540 = vld [vmem:[%s1199 + $0x10] sm:$0x7f]
        %v1541 = vld [vmem:[%s1199 + $0x18] sm:$0x7f]
        %1542 = vst.msk [vmem:[%s1272] sm:$0x7f] %vm1533, %v1538
        %1543 = vst.msk [vmem:[%s1272 + $0x8] sm:$0x7f] %vm1533, %v1539
        %1544 = vst.msk [vmem:[%s1272 + $0x10] sm:$0x7f] %vm1533, %v1540
        %1545 = vst.msk [vmem:[%s1272 + $0x18] sm:$0x7f] %vm1533, %v1541
        %vm1546 = vcmask 516096
        %1547 = vst.msk [vmem:[%s1267 + $0x7] sm:$0x1] %vm1546, %v1512
        %1548 = vst.msk [vmem:[%s1272 + $0x7] sm:$0x1] %vm1546, %v1525
        %1550 = vrot.lane.b32.xlu0 %v1512, 64
        %v1551 = vpop.permute.xlu0 %1550
        %s1553 = scalar_lea.vmem %s1267, 8
        %1554 = vst.msk [vmem:[%s1553 + $0x7] sm:$0x1] %vm1546, %v1551
        %1556 = vrot.lane.b32.xlu0 %v1525, 64
        %v1557 = vpop.permute.xlu0 %1556
        %s1559 = scalar_lea.vmem %s1272, 8
        %1560 = vst.msk [vmem:[%s1559 + $0x7] sm:$0x1] %vm1546, %v1557
        %s1561 = scalar_lea.vmem %s1267, 16
        %vm1562 = vcmask 517121
        %1563 = vst.msk [vmem:[%s1561 + $0x6] sm:$0x2] %vm1562, %v1512
        %s1564 = scalar_lea.vmem %s1272, 16
        %1565 = vst.msk [vmem:[%s1564 + $0x6] sm:$0x2] %vm1562, %v1525
        %s1566 = scalar_lea.vmem %s1267, 24
        %1567 = vst.msk [vmem:[%s1566 + $0x6] sm:$0x2] %vm1562, %v1551
        %s1568 = scalar_lea.vmem %s1272, 24
        %1569 = vst.msk [vmem:[%s1568 + $0x6] sm:$0x2] %vm1562, %v1557
        %v1570 = vld [vmem:[%s1267] sm:$0xff]
        %v1571 = vld [vmem:[%s1272] sm:$0xff]
        %vm1572 = vcmask 523264
        %v1574 = vsel %vm1572, %v1528, 0
        %v1577 = vsel %vm1572, %v1570, 0
        %1579 = vmatpush.xpose.msra.mxu0 0.0
        %1580 = vmatpush.xpose.msra.mxu0 0.0
        %1581 = vmatpush.xpose.msra.mxu0 0.0
        %1582 = vmatpush.xpose.msra.mxu0 0.0
        %1583 = vmatpush.xpose.msra.mxu0 0.0
        %1584 = vmatpush.xpose.msra.mxu0 0.0
        %1585 = vmatpush.xpose.msra.mxu0 0.0
        %1586 = vmatpush.xpose.msra.mxu0 0.0
        %1587 = vmatpush.xpose.msra.mxu0 0.0
        %1588 = vmatpush.xpose.msra.mxu0 0.0
        %1589 = vmatpush.xpose.msra.mxu0 0.0
        %1590 = vmatpush.xpose.msra.mxu0 0.0
        %1591 = vmatpush.xpose.msra.mxu0 0.0
        %1592 = vmatpush.xpose.msra.mxu0 0.0
        %1593 = vmatpush.xpose.msra.mxu0 0.0
        %1594 = vmatpush.xpose.msra.mxu0 %v1577
        %1595 = vmatmul.f32.gmra.mxu0 %v1574
        %v1596 = vpop.f32.mrf.mxu0
        %v1597 = vadd.f32 0.0, %v1596
        %1598 = vdwg.mxu0
        %vm1599 = vcmask 57344
        %v1600 = vsel %vm1599, %v1597, -inf
        %1601 = vmax.xlane.f32.xlu0 %v1600
        %v1602 = vpop.xlane.xlu0 %1601
        %v1603 = vsub.f32 %v1597, %v1602
        %v1604 = vmul.f32 %v1603, 1.442695
        %v1605 = vpow.pop %v1604
        %v1606 = vsel %vm1599, %v1605, 0.0
        %1607 = vadd.xlane.f32.xlu0 %v1606
        %v1608 = vpop.xlane.xlu0 %1607
        %v1609 = vrcp.pop %v1608
        %v1610 = vmul.f32 %v1605, %v1609
        %vm1611 = vcmask 64512
        %v1613 = vsel %vm1611, %v1610, 0
        %1615 = vmatpush.msra.mxu0 0.0
        %1616 = vmatpush.msra.mxu0 0.0
        %1617 = vmatpush.msra.mxu0 0.0
        %1618 = vmatpush.msra.mxu0 0.0
        %1619 = vmatpush.msra.mxu0 0.0
        %1620 = vmatpush.msra.mxu0 0.0
        %1621 = vmatpush.msra.mxu0 0.0
        %1622 = vmatpush.msra.mxu0 0.0
        %1623 = vmatpush.msra.mxu0 0.0
        %1624 = vmatpush.msra.mxu0 0.0
        %1625 = vmatpush.msra.mxu0 0.0
        %1626 = vmatpush.msra.mxu0 0.0
        %1627 = vmatpush.msra.mxu0 0.0
        %1628 = vmatpush.msra.mxu0 0.0
        %1629 = vmatpush.msra.mxu0 0.0
        %1630 = vmatpush.msra.mxu0 %v1571
        %1631 = vmatmul.f32.gmra.mxu0 %v1613
        %v1632 = vpop.f32.mrf.mxu0
        %v1633 = vadd.f32 0.0, %v1632
        %1634 = vdwg.mxu0
        %1635 = vst.msk [vmem:[#allocation3] sm:$0x1] %vm1546, %v1633
        %v1636 = vld [vmem:[%s1553] sm:$0xff]
        %v1637 = vld [vmem:[%s1559] sm:$0xff]
        %1638 = vrot.lane.b32.xlu0 %v1528, 64
        %v1639 = vpop.permute.xlu0 %1638
        %v1640 = vsel %vm1572, %v1639, 0
        %v1643 = vsel %vm1572, %v1636, 0
        %1645 = vmatpush.xpose.msra.mxu0 0.0
        %1646 = vmatpush.xpose.msra.mxu0 0.0
        %1647 = vmatpush.xpose.msra.mxu0 0.0
        %1648 = vmatpush.xpose.msra.mxu0 0.0
        %1649 = vmatpush.xpose.msra.mxu0 0.0
        %1650 = vmatpush.xpose.msra.mxu0 0.0
        %1651 = vmatpush.xpose.msra.mxu0 0.0
        %1652 = vmatpush.xpose.msra.mxu0 0.0
        %1653 = vmatpush.xpose.msra.mxu0 0.0
        %1654 = vmatpush.xpose.msra.mxu0 0.0
        %1655 = vmatpush.xpose.msra.mxu0 0.0
        %1656 = vmatpush.xpose.msra.mxu0 0.0
        %1657 = vmatpush.xpose.msra.mxu0 0.0
        %1658 = vmatpush.xpose.msra.mxu0 0.0
        %1659 = vmatpush.xpose.msra.mxu0 0.0
        %1660 = vmatpush.xpose.msra.mxu0 %v1643
        %1661 = vmatmul.f32.gmra.mxu0 %v1640
        %v1662 = vpop.f32.mrf.mxu0
        %v1663 = vadd.f32 0.0, %v1662
        %1664 = vdwg.mxu0
        %v1665 = vsel %vm1599, %v1663, -inf
        %1666 = vmax.xlane.f32.xlu0 %v1665
        %v1667 = vpop.xlane.xlu0 %1666
        %v1668 = vsub.f32 %v1663, %v1667
        %v1669 = vmul.f32 %v1668, 1.442695
        %v1670 = vpow.pop %v1669
        %v1671 = vsel %vm1599, %v1670, 0.0
        %1672 = vadd.xlane.f32.xlu0 %v1671
        %v1673 = vpop.xlane.xlu0 %1672
        %v1674 = vrcp.pop %v1673
        %v1675 = vmul.f32 %v1670, %v1674
        %v1677 = vsel %vm1611, %v1675, 0
        %1679 = vmatpush.msra.mxu0 0.0
        %1680 = vmatpush.msra.mxu0 0.0
        %1681 = vmatpush.msra.mxu0 0.0
        %1682 = vmatpush.msra.mxu0 0.0
        %1683 = vmatpush.msra.mxu0 0.0
        %1684 = vmatpush.msra.mxu0 0.0
        %1685 = vmatpush.msra.mxu0 0.0
        %1686 = vmatpush.msra.mxu0 0.0
        %1687 = vmatpush.msra.mxu0 0.0
        %1688 = vmatpush.msra.mxu0 0.0
        %1689 = vmatpush.msra.mxu0 0.0
        %1690 = vmatpush.msra.mxu0 0.0
        %1691 = vmatpush.msra.mxu0 0.0
        %1692 = vmatpush.msra.mxu0 0.0
        %1693 = vmatpush.msra.mxu0 0.0
        %1694 = vmatpush.msra.mxu0 %v1637
        %1695 = vmatmul.f32.gmra.mxu0 %v1677
        %v1696 = vpop.f32.mrf.mxu0
        %v1697 = vadd.f32 0.0, %v1696
        %1698 = vdwg.mxu0
        %1700 = vrot.lane.b32.xlu0 %v1697, 64
        %v1701 = vpop.permute.xlu0 %1700
        %vm1703 = vcmask 1040896
        %1704 = vst.msk [vmem:[#allocation3] sm:$0x1] %vm1703, %v1701
        %v1705 = vld [vmem:[%s1561] sm:$0xff]
        %v1706 = vld [vmem:[%s1564] sm:$0xff]
        %v1707 = vrot.slane %v1528, 1
        %v1708 = vsel %vm1572, %v1707, 0
        %v1711 = vsel %vm1572, %v1705, 0
        %1713 = vmatpush.xpose.msra.mxu0 0.0
        %1714 = vmatpush.xpose.msra.mxu0 0.0
        %1715 = vmatpush.xpose.msra.mxu0 0.0
        %1716 = vmatpush.xpose.msra.mxu0 0.0
        %1717 = vmatpush.xpose.msra.mxu0 0.0
        %1718 = vmatpush.xpose.msra.mxu0 0.0
        %1719 = vmatpush.xpose.msra.mxu0 0.0
        %1720 = vmatpush.xpose.msra.mxu0 0.0
        %1721 = vmatpush.xpose.msra.mxu0 0.0
        %1722 = vmatpush.xpose.msra.mxu0 0.0
        %1723 = vmatpush.xpose.msra.mxu0 0.0
        %1724 = vmatpush.xpose.msra.mxu0 0.0
        %1725 = vmatpush.xpose.msra.mxu0 0.0
        %1726 = vmatpush.xpose.msra.mxu0 0.0
        %1727 = vmatpush.xpose.msra.mxu0 0.0
        %1728 = vmatpush.xpose.msra.mxu0 %v1711
        %1729 = vmatmul.f32.gmra.mxu0 %v1708
        %v1730 = vpop.f32.mrf.mxu0
        %v1731 = vadd.f32 0.0, %v1730
        %1732 = vdwg.mxu0
        %v1733 = vsel %vm1599, %v1731, -inf
        %1734 = vmax.xlane.f32.xlu0 %v1733
        %v1735 = vpop.xlane.xlu0 %1734
        %v1736 = vsub.f32 %v1731, %v1735
        %v1737 = vmul.f32 %v1736, 1.442695
        %v1738 = vpow.pop %v1737
        %v1739 = vsel %vm1599, %v1738, 0.0
        %1740 = vadd.xlane.f32.xlu0 %v1739
        %v1741 = vpop.xlane.xlu0 %1740
        %v1742 = vrcp.pop %v1741
        %v1743 = vmul.f32 %v1738, %v1742
        %v1745 = vsel %vm1611, %v1743, 0
        %1747 = vmatpush.msra.mxu0 0.0
        %1748 = vmatpush.msra.mxu0 0.0
        %1749 = vmatpush.msra.mxu0 0.0
        %1750 = vmatpush.msra.mxu0 0.0
        %1751 = vmatpush.msra.mxu0 0.0
        %1752 = vmatpush.msra.mxu0 0.0
        %1753 = vmatpush.msra.mxu0 0.0
        %1754 = vmatpush.msra.mxu0 0.0
        %1755 = vmatpush.msra.mxu0 0.0
        %1756 = vmatpush.msra.mxu0 0.0
        %1757 = vmatpush.msra.mxu0 0.0
        %1758 = vmatpush.msra.mxu0 0.0
        %1759 = vmatpush.msra.mxu0 0.0
        %1760 = vmatpush.msra.mxu0 0.0
        %1761 = vmatpush.msra.mxu0 0.0
        %1762 = vmatpush.msra.mxu0 %v1706
        %1763 = vmatmul.f32.gmra.mxu0 %v1745
        %v1764 = vpop.f32.mrf.mxu0
        %v1765 = vadd.f32 0.0, %v1764
        %1766 = vdwg.mxu0
        %1767 = vst.msk [vmem:[#allocation3 + $0x1] sm:$0x1] %vm1546, %v1765
        %v1768 = vld [vmem:[%s1566] sm:$0xff]
        %v1769 = vld [vmem:[%s1568] sm:$0xff]
        %1770 = vrot.lane.b32.xlu0 %v1707, 64
        %v1771 = vpop.permute.xlu0 %1770
        %v1772 = vsel %vm1572, %v1771, 0
        %v1775 = vsel %vm1572, %v1768, 0
        %1777 = vmatpush.xpose.msra.mxu0 0.0
        %1778 = vmatpush.xpose.msra.mxu0 0.0
        %1779 = vmatpush.xpose.msra.mxu0 0.0
        %1780 = vmatpush.xpose.msra.mxu0 0.0
        %1781 = vmatpush.xpose.msra.mxu0 0.0
        %1782 = vmatpush.xpose.msra.mxu0 0.0
        %1783 = vmatpush.xpose.msra.mxu0 0.0
        %1784 = vmatpush.xpose.msra.mxu0 0.0
        %1785 = vmatpush.xpose.msra.mxu0 0.0
        %1786 = vmatpush.xpose.msra.mxu0 0.0
        %1787 = vmatpush.xpose.msra.mxu0 0.0
        %1788 = vmatpush.xpose.msra.mxu0 0.0
        %1789 = vmatpush.xpose.msra.mxu0 0.0
        %1790 = vmatpush.xpose.msra.mxu0 0.0
        %1791 = vmatpush.xpose.msra.mxu0 0.0
        %1792 = vmatpush.xpose.msra.mxu0 %v1775
        %1793 = vmatmul.f32.gmra.mxu0 %v1772
        %v1794 = vpop.f32.mrf.mxu0
        %v1795 = vadd.f32 0.0, %v1794
        %1796 = vdwg.mxu0
        %v1797 = vsel %vm1599, %v1795, -inf
        %1798 = vmax.xlane.f32.xlu0 %v1797
        %v1799 = vpop.xlane.xlu0 %1798
        %v1800 = vsub.f32 %v1795, %v1799
        %v1801 = vmul.f32 %v1800, 1.442695
        %v1802 = vpow.pop %v1801
        %v1803 = vsel %vm1599, %v1802, 0.0
        %1804 = vadd.xlane.f32.xlu0 %v1803
        %v1805 = vpop.xlane.xlu0 %1804
        %v1806 = vrcp.pop %v1805
        %v1807 = vmul.f32 %v1802, %v1806
        %v1809 = vsel %vm1611, %v1807, 0
        %1811 = vmatpush.msra.mxu0 0.0
        %1812 = vmatpush.msra.mxu0 0.0
        %1813 = vmatpush.msra.mxu0 0.0
        %1814 = vmatpush.msra.mxu0 0.0
        %1815 = vmatpush.msra.mxu0 0.0
        %1816 = vmatpush.msra.mxu0 0.0
        %1817 = vmatpush.msra.mxu0 0.0
        %1818 = vmatpush.msra.mxu0 0.0
        %1819 = vmatpush.msra.mxu0 0.0
        %1820 = vmatpush.msra.mxu0 0.0
        %1821 = vmatpush.msra.mxu0 0.0
        %1822 = vmatpush.msra.mxu0 0.0
        %1823 = vmatpush.msra.mxu0 0.0
        %1824 = vmatpush.msra.mxu0 0.0
        %1825 = vmatpush.msra.mxu0 0.0
        %1826 = vmatpush.msra.mxu0 %v1769
        %1827 = vmatmul.f32.gmra.mxu0 %v1809
        %v1828 = vpop.f32.mrf.mxu0
        %v1829 = vadd.f32 0.0, %v1828
        %1830 = vdwg.mxu0
        %1832 = vrot.lane.b32.xlu0 %v1829, 64
        %v1833 = vpop.permute.xlu0 %1832
        %1835 = vst.msk [vmem:[#allocation3 + $0x1] sm:$0x1] %vm1703, %v1833
        %v1836 = vld [vmem:[#allocation3] sm:$0x3]
        %v1837 = vld [vmem:[%s1224] sm:$0xf]
        %v1838 = vld [vmem:[%s1224 + $0x4] sm:$0xf]
        %v1839 = vld [vmem:[%s1224 + $0x8] sm:$0xf]
        %v1840 = vld [vmem:[%s1224 + $0xc] sm:$0xf]
        %v1841 = vld [vmem:[%s1224 + $0x10] sm:$0xf]
        %v1842 = vld [vmem:[%s1224 + $0x14] sm:$0xf]
        %v1843 = vld [vmem:[%s1224 + $0x18] sm:$0xf]
        %v1844 = vld [vmem:[%s1224 + $0x1c] sm:$0xf]
        %v1845 = vld [vmem:[%s1224 + $0x20] sm:$0xf]
        %v1846 = vld [vmem:[%s1224 + $0x24] sm:$0xf]
        %v1847 = vld [vmem:[%s1224 + $0x28] sm:$0xf]
        %v1848 = vld [vmem:[%s1224 + $0x2c] sm:$0xf]
        %v1849 = vld [vmem:[%s1224 + $0x30] sm:$0xf]
        %v1850 = vld [vmem:[%s1224 + $0x34] sm:$0xf]
        %v1851 = vld [vmem:[%s1224 + $0x38] sm:$0xf]
        %v1852 = vld [vmem:[%s1224 + $0x3c] sm:$0xf]
        %v1853 = vpack.c.bf16 %v1836, %v1836
        %v1870 = vunpack.c.l.b16 %v1837
        %v1871 = vunpack.c.l.b16 %v1838
        %v1872 = vunpack.c.l.b16 %v1839
        %v1873 = vunpack.c.l.b16 %v1840
        %v1874 = vunpack.c.l.b16 %v1841
        %v1875 = vunpack.c.l.b16 %v1842
        %v1876 = vunpack.c.l.b16 %v1843
        %v1877 = vunpack.c.l.b16 %v1844
        %v1878 = vunpack.c.l.b16 %v1845
        %v1879 = vunpack.c.l.b16 %v1846
        %v1880 = vunpack.c.l.b16 %v1847
        %v1881 = vunpack.c.l.b16 %v1848
        %v1882 = vunpack.c.l.b16 %v1849
        %v1883 = vunpack.c.l.b16 %v1850
        %v1884 = vunpack.c.l.b16 %v1851
        %v1885 = vunpack.c.l.b16 %v1852
        %v1886 = vpack.c.b16 %v1871, %v1870
        %v1887 = vpack.c.b16 %v1873, %v1872
        %v1888 = vpack.c.b16 %v1875, %v1874
        %v1889 = vpack.c.b16 %v1877, %v1876
        %v1890 = vpack.c.b16 %v1879, %v1878
        %v1891 = vpack.c.b16 %v1881, %v1880
        %v1892 = vpack.c.b16 %v1883, %v1882
        %v1893 = vpack.c.b16 %v1885, %v1884
        %1902 = vmatpush.bf16.msra.mxu0 %v1893
        %1903 = vmatpush.bf16.msra.mxu0 %v1892
        %1904 = vmatpush.bf16.msra.mxu0 %v1891
        %1905 = vmatpush.bf16.msra.mxu0 %v1890
        %1906 = vmatpush.bf16.msra.mxu0 %v1889
        %1907 = vmatpush.bf16.msra.mxu0 %v1888
        %1908 = vmatpush.bf16.msra.mxu0 %v1887
        %1909 = vmatpush.bf16.msra.mxu0 %v1886
        %1910 = vmatmul.bf16.gmra.mxu0 %v1853
        %v1911 = vpop.f32.mrf.mxu0
        %v1912 = vadd.f32 0.0, %v1911
        %v1913 = vpop.f32.mrf.mxu0
        %1914 = vdwg.mxu0
        %v1915 = vadd.f32 %v1279, %v1912
        %v1916 = vld [vmem:[%s1227] sm:$0x1]
        %v1918 = vperm.slane %v1916, 0
        %v1920 = vadd.f32 %v1915, %v1918
        %v1921 = vld [vmem:[%s1230] sm:$0x1]
        %v1922 = vld [vmem:[%s1233] sm:$0x1]
        %v1923 = vsel %vm1282, %v1920, 0.0
        %1924 = vadd.xlane.f32.xlu0 %v1923
        %v1925 = vpop.xlane.xlu0 %1924
        %v1926 = vmul.f32 %v1925, %v1292
        %v1927 = vsub.f32 %v1920, %v1926
        %v1928 = vmul.f32 %v1927, %v1927
        %v1929 = vsel %vm1282, %v1928, 0.0
        %1930 = vadd.xlane.f32.xlu0 %v1929
        %v1931 = vpop.xlane.xlu0 %1930
        %v1932 = vmul.f32 %v1931, %v1292
        %v1933 = vadd.f32 %v1932, 1e-05
        %v1934 = vrsqrt.pop %v1933
        %v1935 = vmul.f32 %v1934, %v1933
        %v1936 = vmul.f32 %v1935, %v1934
        %v1937 = vmul.f32 0.5, %v1936
        %v1938 = vsub.f32 1.5, %v1937
        %v1939 = vmul.f32 %v1934, %v1938
        %vm1940 = vweird.f32 %v1933
        %vm1941 = vweird.f32 %v1934
        %vm1942 = vmor %vm1940, %vm1941
        %v1943 = vsel %vm1942, %v1934, %v1939
        %v1944 = vmul.f32 %v1927, %v1943
        %v1946 = vperm.slane %v1921, 0
        %v1948 = vmul.f32 %v1944, %v1946
        %v1950 = vperm.slane %v1922, 0
        %v1952 = vadd.f32 %v1948, %v1950
        %v1953 = vld [vmem:[%s1238] sm:$0xf]
        %v1954 = vld [vmem:[%s1238 + $0x4] sm:$0xf]
        %v1955 = vld [vmem:[%s1238 + $0x8] sm:$0xf]
        %v1956 = vld [vmem:[%s1238 + $0xc] sm:$0xf]
        %v1957 = vld [vmem:[%s1238 + $0x10] sm:$0xf]
        %v1958 = vld [vmem:[%s1238 + $0x14] sm:$0xf]
        %v1959 = vld [vmem:[%s1238 + $0x18] sm:$0xf]
        %v1960 = vld [vmem:[%s1238 + $0x1c] sm:$0xf]
        %v1961 = vld [vmem:[%s1238 + $0x20] sm:$0xf]
        %v1962 = vld [vmem:[%s1238 + $0x24] sm:$0xf]
        %v1963 = vld [vmem:[%s1238 + $0x28] sm:$0xf]
        %v1964 = vld [vmem:[%s1238 + $0x2c] sm:$0xf]
        %v1965 = vld [vmem:[%s1238 + $0x30] sm:$0xf]
        %v1966 = vld [vmem:[%s1238 + $0x34] sm:$0xf]
        %v1967 = vld [vmem:[%s1238 + $0x38] sm:$0xf]
        %v1968 = vld [vmem:[%s1238 + $0x3c] sm:$0xf]
        %v1969 = vpack.c.bf16 %v1952, %v1952
        %v1970 = vld [vmem:[%s1241] sm:$0x1]
        %v1972 = vperm.slane %v1970, 0
        %v1990 = vunpack.c.l.b16 %v1953
        %v1991 = vunpack.c.l.b16 %v1954
        %v1992 = vunpack.c.l.b16 %v1955
        %v1993 = vunpack.c.l.b16 %v1956
        %v1994 = vunpack.c.l.b16 %v1957
        %v1995 = vunpack.c.l.b16 %v1958
        %v1996 = vunpack.c.l.b16 %v1959
        %v1997 = vunpack.c.l.b16 %v1960
        %v1998 = vunpack.c.l.b16 %v1961
        %v1999 = vunpack.c.l.b16 %v1962
        %v2000 = vunpack.c.l.b16 %v1963
        %v2001 = vunpack.c.l.b16 %v1964
        %v2002 = vunpack.c.l.b16 %v1965
        %v2003 = vunpack.c.l.b16 %v1966
        %v2004 = vunpack.c.l.b16 %v1967
        %v2005 = vunpack.c.l.b16 %v1968
        %v2006 = vpack.c.b16 %v1991, %v1990
        %v2007 = vpack.c.b16 %v1993, %v1992
        %v2008 = vpack.c.b16 %v1995, %v1994
        %v2009 = vpack.c.b16 %v1997, %v1996
        %v2010 = vpack.c.b16 %v1999, %v1998
        %v2011 = vpack.c.b16 %v2001, %v2000
        %v2012 = vpack.c.b16 %v2003, %v2002
        %v2013 = vpack.c.b16 %v2005, %v2004
        %2022 = vmatpush.bf16.msra.mxu0 %v2013
        %2023 = vmatpush.bf16.msra.mxu0 %v2012
        %2024 = vmatpush.bf16.msra.mxu0 %v2011
        %2025 = vmatpush.bf16.msra.mxu0 %v2010
        %2026 = vmatpush.bf16.msra.mxu0 %v2009
        %2027 = vmatpush.bf16.msra.mxu0 %v2008
        %2028 = vmatpush.bf16.msra.mxu0 %v2007
        %2029 = vmatpush.bf16.msra.mxu0 %v2006
        %2030 = vmatmul.bf16.gmra.mxu0 %v1969
        %v2031 = vpop.f32.mrf.mxu0
        %v2032 = vadd.f32 %v1972, %v2031
        %v2033 = vpop.f32.mrf.mxu0
        %2034 = vdwg.mxu0
        %v2035 = vmul.f32 %v2032, 0.125
        %v2036 = vld [vmem:[%s1204] sm:$0xff]
        %v2037 = vld [vmem:[%s1204 + $0x8] sm:$0xff]
        %v2038 = vld [vmem:[%s1209] sm:$0xff]
        %v2039 = vld [vmem:[%s1209 + $0x8] sm:$0xff]
        %v2041 = vsel %vm1572, %v2035, 0
        %v2044 = vsel %vm1572, %v2036, 0
        %v2047 = vsel %vm1572, %v2037, 0
        %2049 = vmatpush.xpose.msra.mxu0 0.0
        %2050 = vmatpush.xpose.msra.mxu0 0.0
        %2051 = vmatpush.xpose.msra.mxu0 0.0
        %2052 = vmatpush.xpose.msra.mxu0 0.0
        %2053 = vmatpush.xpose.msra.mxu0 0.0
        %2054 = vmatpush.xpose.msra.mxu0 0.0
        %2055 = vmatpush.xpose.msra.mxu0 0.0
        %2056 = vmatpush.xpose.msra.mxu0 0.0
        %2057 = vmatpush.xpose.msra.mxu0 0.0
        %2058 = vmatpush.xpose.msra.mxu0 0.0
        %2059 = vmatpush.xpose.msra.mxu0 0.0
        %2060 = vmatpush.xpose.msra.mxu0 0.0
        %2061 = vmatpush.xpose.msra.mxu0 0.0
        %2062 = vmatpush.xpose.msra.mxu0 0.0
        %2063 = vmatpush.xpose.msra.mxu0 %v2047
        %2064 = vmatpush.xpose.msra.mxu0 %v2044
        %2065 = vmatmul.f32.gmra.mxu0 %v2041
        %v2066 = vpop.f32.mrf.mxu0
        %v2067 = vadd.f32 0.0, %v2066
        %2068 = vdwg.mxu0
        %vm2069 = vcmask 122880
        %v2070 = vsel %vm2069, %v2067, -inf
        %2071 = vmax.xlane.f32.xlu0 %v2070
        %v2072 = vpop.xlane.xlu0 %2071
        %v2073 = vsub.f32 %v2067, %v2072
        %v2074 = vmul.f32 %v2073, 1.442695
        %v2075 = vpow.pop %v2074
        %v2076 = vsel %vm2069, %v2075, 0.0
        %2077 = vadd.xlane.f32.xlu0 %v2076
        %v2078 = vpop.xlane.xlu0 %2077
        %v2079 = vrcp.pop %v2078
        %v2080 = vmul.f32 %v2075, %v2079
        %vm2081 = vcmask 130048
        %v2083 = vsel %vm2081, %v2080, 0
        %2085 = vmatpush.msra.mxu0 0.0
        %2086 = vmatpush.msra.mxu0 0.0
        %2087 = vmatpush.msra.mxu0 0.0
        %2088 = vmatpush.msra.mxu0 0.0
        %2089 = vmatpush.msra.mxu0 0.0
        %2090 = vmatpush.msra.mxu0 0.0
        %2091 = vmatpush.msra.mxu0 0.0
        %2092 = vmatpush.msra.mxu0 0.0
        %2093 = vmatpush.msra.mxu0 0.0
        %2094 = vmatpush.msra.mxu0 0.0
        %2095 = vmatpush.msra.mxu0 0.0
        %2096 = vmatpush.msra.mxu0 0.0
        %2097 = vmatpush.msra.mxu0 0.0
        %2098 = vmatpush.msra.mxu0 0.0
        %2099 = vmatpush.msra.mxu0 %v2039
        %2100 = vmatpush.msra.mxu0 %v2038
        %2101 = vmatmul.f32.gmra.mxu0 %v2083
        %v2102 = vpop.f32.mrf.mxu0
        %v2103 = vadd.f32 0.0, %v2102
        %2104 = vdwg.mxu0
        %2105 = vst.msk [vmem:[#allocation3] sm:$0x1] %vm1546, %v2103
        %s2106 = scalar_lea.vmem %s1204, 16
        %v2107 = vld [vmem:[%s2106] sm:$0xff]
        %v2108 = vld [vmem:[%s2106 + $0x8] sm:$0xff]
        %s2109 = scalar_lea.vmem %s1209, 16
        %v2110 = vld [vmem:[%s2109] sm:$0xff]
        %v2111 = vld [vmem:[%s2109 + $0x8] sm:$0xff]
        %2112 = vrot.lane.b32.xlu0 %v2035, 64
        %v2113 = vpop.permute.xlu0 %2112
        %v2114 = vsel %vm1572, %v2113, 0
        %v2117 = vsel %vm1572, %v2107, 0
        %v2120 = vsel %vm1572, %v2108, 0
        %2122 = vmatpush.xpose.msra.mxu0 0.0
        %2123 = vmatpush.xpose.msra.mxu0 0.0
        %2124 = vmatpush.xpose.msra.mxu0 0.0
        %2125 = vmatpush.xpose.msra.mxu0 0.0
        %2126 = vmatpush.xpose.msra.mxu0 0.0
        %2127 = vmatpush.xpose.msra.mxu0 0.0
        %2128 = vmatpush.xpose.msra.mxu0 0.0
        %2129 = vmatpush.xpose.msra.mxu0 0.0
        %2130 = vmatpush.xpose.msra.mxu0 0.0
        %2131 = vmatpush.xpose.msra.mxu0 0.0
        %2132 = vmatpush.xpose.msra.mxu0 0.0
        %2133 = vmatpush.xpose.msra.mxu0 0.0
        %2134 = vmatpush.xpose.msra.mxu0 0.0
        %2135 = vmatpush.xpose.msra.mxu0 0.0
        %2136 = vmatpush.xpose.msra.mxu0 %v2120
        %2137 = vmatpush.xpose.msra.mxu0 %v2117
        %2138 = vmatmul.f32.gmra.mxu0 %v2114
        %v2139 = vpop.f32.mrf.mxu0
        %v2140 = vadd.f32 0.0, %v2139
        %2141 = vdwg.mxu0
        %v2142 = vsel %vm2069, %v2140, -inf
        %2143 = vmax.xlane.f32.xlu0 %v2142
        %v2144 = vpop.xlane.xlu0 %2143
        %v2145 = vsub.f32 %v2140, %v2144
        %v2146 = vmul.f32 %v2145, 1.442695
        %v2147 = vpow.pop %v2146
        %v2148 = vsel %vm2069, %v2147, 0.0
        %2149 = vadd.xlane.f32.xlu0 %v2148
        %v2150 = vpop.xlane.xlu0 %2149
        %v2151 = vrcp.pop %v2150
        %v2152 = vmul.f32 %v2147, %v2151
        %v2154 = vsel %vm2081, %v2152, 0
        %2156 = vmatpush.msra.mxu0 0.0
        %2157 = vmatpush.msra.mxu0 0.0
        %2158 = vmatpush.msra.mxu0 0.0
        %2159 = vmatpush.msra.mxu0 0.0
        %2160 = vmatpush.msra.mxu0 0.0
        %2161 = vmatpush.msra.mxu0 0.0
        %2162 = vmatpush.msra.mxu0 0.0
        %2163 = vmatpush.msra.mxu0 0.0
        %2164 = vmatpush.msra.mxu0 0.0
        %2165 = vmatpush.msra.mxu0 0.0
        %2166 = vmatpush.msra.mxu0 0.0
        %2167 = vmatpush.msra.mxu0 0.0
        %2168 = vmatpush.msra.mxu0 0.0
        %2169 = vmatpush.msra.mxu0 0.0
        %2170 = vmatpush.msra.mxu0 %v2111
        %2171 = vmatpush.msra.mxu0 %v2110
        %2172 = vmatmul.f32.gmra.mxu0 %v2154
        %v2173 = vpop.f32.mrf.mxu0
        %v2174 = vadd.f32 0.0, %v2173
        %2175 = vdwg.mxu0
        %2177 = vrot.lane.b32.xlu0 %v2174, 64
        %v2178 = vpop.permute.xlu0 %2177
        %2180 = vst.msk [vmem:[#allocation3] sm:$0x1] %vm1703, %v2178
        %s2181 = scalar_lea.vmem %s1204, 32
        %v2182 = vld [vmem:[%s2181] sm:$0xff]
        %v2183 = vld [vmem:[%s2181 + $0x8] sm:$0xff]
        %s2184 = scalar_lea.vmem %s1209, 32
        %v2185 = vld [vmem:[%s2184] sm:$0xff]
        %v2186 = vld [vmem:[%s2184 + $0x8] sm:$0xff]
        %v2187 = vrot.slane %v2035, 1
        %v2188 = vsel %vm1572, %v2187, 0
        %v2191 = vsel %vm1572, %v2182, 0
        %v2194 = vsel %vm1572, %v2183, 0
        %2196 = vmatpush.xpose.msra.mxu0 0.0
        %2197 = vmatpush.xpose.msra.mxu0 0.0
        %2198 = vmatpush.xpose.msra.mxu0 0.0
        %2199 = vmatpush.xpose.msra.mxu0 0.0
        %2200 = vmatpush.xpose.msra.mxu0 0.0
        %2201 = vmatpush.xpose.msra.mxu0 0.0
        %2202 = vmatpush.xpose.msra.mxu0 0.0
        %2203 = vmatpush.xpose.msra.mxu0 0.0
        %2204 = vmatpush.xpose.msra.mxu0 0.0
        %2205 = vmatpush.xpose.msra.mxu0 0.0
        %2206 = vmatpush.xpose.msra.mxu0 0.0
        %2207 = vmatpush.xpose.msra.mxu0 0.0
        %2208 = vmatpush.xpose.msra.mxu0 0.0
        %2209 = vmatpush.xpose.msra.mxu0 0.0
        %2210 = vmatpush.xpose.msra.mxu0 %v2194
        %2211 = vmatpush.xpose.msra.mxu0 %v2191
        %2212 = vmatmul.f32.gmra.mxu0 %v2188
        %v2213 = vpop.f32.mrf.mxu0
        %v2214 = vadd.f32 0.0, %v2213
        %2215 = vdwg.mxu0
        %v2216 = vsel %vm2069, %v2214, -inf
        %2217 = vmax.xlane.f32.xlu0 %v2216
        %v2218 = vpop.xlane.xlu0 %2217
        %v2219 = vsub.f32 %v2214, %v2218
        %v2220 = vmul.f32 %v2219, 1.442695
        %v2221 = vpow.pop %v2220
        %v2222 = vsel %vm2069, %v2221, 0.0
        %2223 = vadd.xlane.f32.xlu0 %v2222
        %v2224 = vpop.xlane.xlu0 %2223
        %v2225 = vrcp.pop %v2224
        %v2226 = vmul.f32 %v2221, %v2225
        %v2228 = vsel %vm2081, %v2226, 0
        %2230 = vmatpush.msra.mxu0 0.0
        %2231 = vmatpush.msra.mxu0 0.0
        %2232 = vmatpush.msra.mxu0 0.0
        %2233 = vmatpush.msra.mxu0 0.0
        %2234 = vmatpush.msra.mxu0 0.0
        %2235 = vmatpush.msra.mxu0 0.0
        %2236 = vmatpush.msra.mxu0 0.0
        %2237 = vmatpush.msra.mxu0 0.0
        %2238 = vmatpush.msra.mxu0 0.0
        %2239 = vmatpush.msra.mxu0 0.0
        %2240 = vmatpush.msra.mxu0 0.0
        %2241 = vmatpush.msra.mxu0 0.0
        %2242 = vmatpush.msra.mxu0 0.0
        %2243 = vmatpush.msra.mxu0 0.0
        %2244 = vmatpush.msra.mxu0 %v2186
        %2245 = vmatpush.msra.mxu0 %v2185
        %2246 = vmatmul.f32.gmra.mxu0 %v2228
        %v2247 = vpop.f32.mrf.mxu0
        %v2248 = vadd.f32 0.0, %v2247
        %2249 = vdwg.mxu0
        %2250 = vst.msk [vmem:[#allocation3 + $0x1] sm:$0x1] %vm1546, %v2248
        %s2251 = scalar_lea.vmem %s1204, 48
        %v2252 = vld [vmem:[%s2251] sm:$0xff]
        %v2253 = vld [vmem:[%s2251 + $0x8] sm:$0xff]
        %s2254 = scalar_lea.vmem %s1209, 48
        %v2255 = vld [vmem:[%s2254] sm:$0xff]
        %v2256 = vld [vmem:[%s2254 + $0x8] sm:$0xff]
        %2257 = vrot.lane.b32.xlu0 %v2187, 64
        %v2258 = vpop.permute.xlu0 %2257
        %v2259 = vsel %vm1572, %v2258, 0
        %v2262 = vsel %vm1572, %v2252, 0
        %v2265 = vsel %vm1572, %v2253, 0
        %2267 = vmatpush.xpose.msra.mxu0 0.0
        %2268 = vmatpush.xpose.msra.mxu0 0.0
        %2269 = vmatpush.xpose.msra.mxu0 0.0
        %2270 = vmatpush.xpose.msra.mxu0 0.0
        %2271 = vmatpush.xpose.msra.mxu0 0.0
        %2272 = vmatpush.xpose.msra.mxu0 0.0
        %2273 = vmatpush.xpose.msra.mxu0 0.0
        %2274 = vmatpush.xpose.msra.mxu0 0.0
        %2275 = vmatpush.xpose.msra.mxu0 0.0
        %2276 = vmatpush.xpose.msra.mxu0 0.0
        %2277 = vmatpush.xpose.msra.mxu0 0.0
        %2278 = vmatpush.xpose.msra.mxu0 0.0
        %2279 = vmatpush.xpose.msra.mxu0 0.0
        %2280 = vmatpush.xpose.msra.mxu0 0.0
        %2281 = vmatpush.xpose.msra.mxu0 %v2265
        %2282 = vmatpush.xpose.msra.mxu0 %v2262
        %2283 = vmatmul.f32.gmra.mxu0 %v2259
        %v2284 = vpop.f32.mrf.mxu0
        %v2285 = vadd.f32 0.0, %v2284
        %2286 = vdwg.mxu0
        %v2287 = vsel %vm2069, %v2285, -inf
        %2288 = vmax.xlane.f32.xlu0 %v2287
        %v2289 = vpop.xlane.xlu0 %2288
        %v2290 = vsub.f32 %v2285, %v2289
        %v2291 = vmul.f32 %v2290, 1.442695
        %v2292 = vpow.pop %v2291
        %v2293 = vsel %vm2069, %v2292, 0.0
        %2294 = vadd.xlane.f32.xlu0 %v2293
        %v2295 = vpop.xlane.xlu0 %2294
        %v2296 = vrcp.pop %v2295
        %v2297 = vmul.f32 %v2292, %v2296
        %v2299 = vsel %vm2081, %v2297, 0
        %2301 = vmatpush.msra.mxu0 0.0
        %2302 = vmatpush.msra.mxu0 0.0
        %2303 = vmatpush.msra.mxu0 0.0
        %2304 = vmatpush.msra.mxu0 0.0
        %2305 = vmatpush.msra.mxu0 0.0
        %2306 = vmatpush.msra.mxu0 0.0
        %2307 = vmatpush.msra.mxu0 0.0
        %2308 = vmatpush.msra.mxu0 0.0
        %2309 = vmatpush.msra.mxu0 0.0
        %2310 = vmatpush.msra.mxu0 0.0
        %2311 = vmatpush.msra.mxu0 0.0
        %2312 = vmatpush.msra.mxu0 0.0
        %2313 = vmatpush.msra.mxu0 0.0
        %2314 = vmatpush.msra.mxu0 0.0
        %2315 = vmatpush.msra.mxu0 %v2256
        %2316 = vmatpush.msra.mxu0 %v2255
        %2317 = vmatmul.f32.gmra.mxu0 %v2299
        %v2318 = vpop.f32.mrf.mxu0
        %v2319 = vadd.f32 0.0, %v2318
        %2320 = vdwg.mxu0
        %2322 = vrot.lane.b32.xlu0 %v2319, 64
        %v2323 = vpop.permute.xlu0 %2322
        %2325 = vst.msk [vmem:[#allocation3 + $0x1] sm:$0x1] %vm1703, %v2323
        %v2326 = vld [vmem:[#allocation3] sm:$0x3]
        %v2327 = vld [vmem:[%s1018] sm:$0xf]
        %v2328 = vld [vmem:[%s1018 + $0x4] sm:$0xf]
        %v2329 = vld [vmem:[%s1018 + $0x8] sm:$0xf]
        %v2330 = vld [vmem:[%s1018 + $0xc] sm:$0xf]
        %v2331 = vld [vmem:[%s1018 + $0x10] sm:$0xf]
        %v2332 = vld [vmem:[%s1018 + $0x14] sm:$0xf]
        %v2333 = vld [vmem:[%s1018 + $0x18] sm:$0xf]
        %v2334 = vld [vmem:[%s1018 + $0x1c] sm:$0xf]
        %v2335 = vld [vmem:[%s1018 + $0x20] sm:$0xf]
        %v2336 = vld [vmem:[%s1018 + $0x24] sm:$0xf]
        %v2337 = vld [vmem:[%s1018 + $0x28] sm:$0xf]
        %v2338 = vld [vmem:[%s1018 + $0x2c] sm:$0xf]
        %v2339 = vld [vmem:[%s1018 + $0x30] sm:$0xf]
        %v2340 = vld [vmem:[%s1018 + $0x34] sm:$0xf]
        %v2341 = vld [vmem:[%s1018 + $0x38] sm:$0xf]
        %v2342 = vld [vmem:[%s1018 + $0x3c] sm:$0xf]
        %v2343 = vpack.c.bf16 %v2326, %v2326
        %v2360 = vunpack.c.l.b16 %v2327
        %v2361 = vunpack.c.l.b16 %v2328
        %v2362 = vunpack.c.l.b16 %v2329
        %v2363 = vunpack.c.l.b16 %v2330
        %v2364 = vunpack.c.l.b16 %v2331
        %v2365 = vunpack.c.l.b16 %v2332
        %v2366 = vunpack.c.l.b16 %v2333
        %v2367 = vunpack.c.l.b16 %v2334
        %v2368 = vunpack.c.l.b16 %v2335
        %v2369 = vunpack.c.l.b16 %v2336
        %v2370 = vunpack.c.l.b16 %v2337
        %v2371 = vunpack.c.l.b16 %v2338
        %v2372 = vunpack.c.l.b16 %v2339
        %v2373 = vunpack.c.l.b16 %v2340
        %v2374 = vunpack.c.l.b16 %v2341
        %v2375 = vunpack.c.l.b16 %v2342
        %v2376 = vpack.c.b16 %v2361, %v2360
        %v2377 = vpack.c.b16 %v2363, %v2362
        %v2378 = vpack.c.b16 %v2365, %v2364
        %v2379 = vpack.c.b16 %v2367, %v2366
        %v2380 = vpack.c.b16 %v2369, %v2368
        %v2381 = vpack.c.b16 %v2371, %v2370
        %v2382 = vpack.c.b16 %v2373, %v2372
        %v2383 = vpack.c.b16 %v2375, %v2374
        %2392 = vmatpush.bf16.msra.mxu0 %v2383
        %2393 = vmatpush.bf16.msra.mxu0 %v2382
        %2394 = vmatpush.bf16.msra.mxu0 %v2381
        %2395 = vmatpush.bf16.msra.mxu0 %v2380
        %2396 = vmatpush.bf16.msra.mxu0 %v2379
        %2397 = vmatpush.bf16.msra.mxu0 %v2378
        %2398 = vmatpush.bf16.msra.mxu0 %v2377
        %2399 = vmatpush.bf16.msra.mxu0 %v2376
        %2400 = vmatmul.bf16.gmra.mxu0 %v2343
        %v2401 = vpop.f32.mrf.mxu0
        %v2402 = vadd.f32 0.0, %v2401
        %v2403 = vpop.f32.mrf.mxu0
        %2404 = vdwg.mxu0
        %v2405 = vadd.f32 %v1920, %v2402
        %v2406 = vld [vmem:[%s1244] sm:$0x1]
        %v2408 = vperm.slane %v2406, 0
        %v2410 = vadd.f32 %v2405, %v2408
        %v2411 = vld [vmem:[%s1247] sm:$0x1]
        %v2412 = vld [vmem:[%s1250] sm:$0x1]
        %v2413 = vsel %vm1282, %v2410, 0.0
        %2414 = vadd.xlane.f32.xlu0 %v2413
        %v2415 = vpop.xlane.xlu0 %2414
        %v2416 = vmul.f32 %v2415, %v1292
        %v2417 = vsub.f32 %v2410, %v2416
        %v2418 = vmul.f32 %v2417, %v2417
        %v2419 = vsel %vm1282, %v2418, 0.0
        %2420 = vadd.xlane.f32.xlu0 %v2419
        %v2421 = vpop.xlane.xlu0 %2420
        %v2422 = vmul.f32 %v2421, %v1292
        %v2423 = vadd.f32 %v2422, 1e-05
        %v2424 = vrsqrt.pop %v2423
        %v2425 = vmul.f32 %v2424, %v2423
        %v2426 = vmul.f32 %v2425, %v2424
        %v2427 = vmul.f32 0.5, %v2426
        %v2428 = vsub.f32 1.5, %v2427
        %v2429 = vmul.f32 %v2424, %v2428
        %vm2430 = vweird.f32 %v2423
        %vm2431 = vweird.f32 %v2424
        %vm2432 = vmor %vm2430, %vm2431
        %v2433 = vsel %vm2432, %v2424, %v2429
        %v2434 = vmul.f32 %v2417, %v2433
        %v2436 = vperm.slane %v2411, 0
        %v2438 = vmul.f32 %v2434, %v2436
        %v2440 = vperm.slane %v2412, 0
        %v2442 = vadd.f32 %v2438, %v2440
        %v2443 = vld [vmem:[%s1255] sm:$0xff]
        %v2444 = vld [vmem:[%s1255 + $0x8] sm:$0xff]
        %v2445 = vld [vmem:[%s1255 + $0x10] sm:$0xff]
        %v2446 = vld [vmem:[%s1255 + $0x18] sm:$0xff]
        %v2447 = vld [vmem:[%s1255 + $0x20] sm:$0xff]
        %v2448 = vld [vmem:[%s1255 + $0x28] sm:$0xff]
        %v2449 = vld [vmem:[%s1255 + $0x30] sm:$0xff]
        %v2450 = vld [vmem:[%s1255 + $0x38] sm:$0xff]
        %v2451 = vld [vmem:[%s1255 + $0x40] sm:$0xff]
        %v2452 = vld [vmem:[%s1255 + $0x48] sm:$0xff]
        %v2453 = vld [vmem:[%s1255 + $0x50] sm:$0xff]
        %v2454 = vld [vmem:[%s1255 + $0x58] sm:$0xff]
        %v2455 = vld [vmem:[%s1255 + $0x60] sm:$0xff]
        %v2456 = vld [vmem:[%s1255 + $0x68] sm:$0xff]
        %v2457 = vld [vmem:[%s1255 + $0x70] sm:$0xff]
        %v2458 = vld [vmem:[%s1255 + $0x78] sm:$0xff]
        %v2459 = vpack.c.bf16 %v2442, %v2442
        %v2460 = vld [vmem:[%s1259] sm:$0x3]
        %v2462 = vperm.slane %v2460, 0
        %v2463 = vperm.slane %v2460, 1
        %v2482 = vunpack.c.l.b16 %v2443
        %v2483 = vunpack.c.h.b16 %v2443
        %v2484 = vunpack.c.l.b16 %v2444
        %v2485 = vunpack.c.h.b16 %v2444
        %v2486 = vunpack.c.l.b16 %v2445
        %v2487 = vunpack.c.h.b16 %v2445
        %v2488 = vunpack.c.l.b16 %v2446
        %v2489 = vunpack.c.h.b16 %v2446
        %v2490 = vunpack.c.l.b16 %v2447
        %v2491 = vunpack.c.h.b16 %v2447
        %v2492 = vunpack.c.l.b16 %v2448
        %v2493 = vunpack.c.h.b16 %v2448
        %v2494 = vunpack.c.l.b16 %v2449
        %v2495 = vunpack.c.h.b16 %v2449
        %v2496 = vunpack.c.l.b16 %v2450
        %v2497 = vunpack.c.h.b16 %v2450
        %v2498 = vunpack.c.l.b16 %v2451
        %v2499 = vunpack.c.h.b16 %v2451
        %v2500 = vunpack.c.l.b16 %v2452
        %v2501 = vunpack.c.h.b16 %v2452
        %v2502 = vunpack.c.l.b16 %v2453
        %v2503 = vunpack.c.h.b16 %v2453
        %v2504 = vunpack.c.l.b16 %v2454
        %v2505 = vunpack.c.h.b16 %v2454
        %v2506 = vunpack.c.l.b16 %v2455
        %v2507 = vunpack.c.h.b16 %v2455
        %v2508 = vunpack.c.l.b16 %v2456
        %v2509 = vunpack.c.h.b16 %v2456
        %v2510 = vunpack.c.l.b16 %v2457
        %v2511 = vunpack.c.h.b16 %v2457
        %v2512 = vunpack.c.l.b16 %v2458
        %v2513 = vunpack.c.h.b16 %v2458
        %v2514 = vpack.c.b16 %v2484, %v2482
        %v2515 = vpack.c.b16 %v2485, %v2483
        %v2516 = vpack.c.b16 %v2488, %v2486
        %v2517 = vpack.c.b16 %v2489, %v2487
        %v2518 = vpack.c.b16 %v2492, %v2490
        %v2519 = vpack.c.b16 %v2493, %v2491
        %v2520 = vpack.c.b16 %v2496, %v2494
        %v2521 = vpack.c.b16 %v2497, %v2495
        %v2522 = vpack.c.b16 %v2500, %v2498
        %v2523 = vpack.c.b16 %v2501, %v2499
        %v2524 = vpack.c.b16 %v2504, %v2502
        %v2525 = vpack.c.b16 %v2505, %v2503
        %v2526 = vpack.c.b16 %v2508, %v2506
        %v2527 = vpack.c.b16 %v2509, %v2507
        %v2528 = vpack.c.b16 %v2512, %v2510
        %v2529 = vpack.c.b16 %v2513, %v2511
        %2546 = vmatpush.bf16.msra.mxu0 %v2528
        %2547 = vmatpush.bf16.msra.mxu0 %v2526
        %2548 = vmatpush.bf16.msra.mxu0 %v2524
        %2549 = vmatpush.bf16.msra.mxu0 %v2522
        %2550 = vmatpush.bf16.msra.mxu0 %v2520
        %2551 = vmatpush.bf16.msra.mxu0 %v2518
        %2552 = vmatpush.bf16.msra.mxu0 %v2516
        %2553 = vmatpush.bf16.msra.mxu0 %v2514
        %2554 = vmatmul.bf16.gmra.mxu0 %v2459
        %v2555 = vpop.f32.mrf.mxu0
        %v2556 = vadd.f32 %v2462, %v2555
        %v2557 = vpop.f32.mrf.mxu0
        %2558 = vdwg.mxu0
        %2559 = vmatpush.bf16.msra.mxu0 %v2529
        %2560 = vmatpush.bf16.msra.mxu0 %v2527
        %2561 = vmatpush.bf16.msra.mxu0 %v2525
        %2562 = vmatpush.bf16.msra.mxu0 %v2523
        %2563 = vmatpush.bf16.msra.mxu0 %v2521
        %2564 = vmatpush.bf16.msra.mxu0 %v2519
        %2565 = vmatpush.bf16.msra.mxu0 %v2517
        %2566 = vmatpush.bf16.msra.mxu0 %v2515
        %2567 = vmatmul.bf16.gmra.mxu0 %v2459
        %v2568 = vpop.f32.mrf.mxu0
        %v2569 = vadd.f32 %v2463, %v2568
        %v2570 = vpop.f32.mrf.mxu0
        %2571 = vdwg.mxu0
        %v2572 = vmul.f32 %v2556, 0.5
        %v2573 = vmul.f32 %v2569, 0.5
        %v2574 = vmul.f32 %v2556, 0.70710677
        %v2575 = vmul.f32 %v2569, 0.70710677
        %v2576 = vmax.f32 %v2574, -4.0
        %v2577 = vmax.f32 %v2575, -4.0
        %v2578 = vmin.f32 %v2576, 4.0
        %v2579 = vmin.f32 %v2577, 4.0
        %v2580 = vmul.f32 %v2578, %v2578
        %v2581 = vmul.f32 %v2579, %v2579
        %v2582 = vmul.f32 %v2580, -2.7261424e-10
        %v2583 = vmul.f32 %v2581, -2.7261424e-10
        %v2584 = vadd.f32 %v2582, 2.7706815e-08
        %v2585 = vadd.f32 %v2583, 2.7706815e-08
        %v2586 = vmul.f32 %v2584, %v2580
        %v2587 = vmul.f32 %v2585, %v2581
        %v2588 = vadd.f32 %v2586, -2.101024e-06
        %v2589 = vadd.f32 %v2587, -2.101024e-06
        %v2590 = vmul.f32 %v2588, %v2580
        %v2591 = vmul.f32 %v2589, %v2581
        %v2592 = vadd.f32 %v2590, -5.6925062e-05
        %v2593 = vadd.f32 %v2591, -5.6925062e-05
        %v2594 = vmul.f32 %v2592, %v2580
        %v2595 = vmul.f32 %v2593, %v2581
        %v2596 = vadd.f32 %v2594, -0.00073499064
        %v2597 = vadd.f32 %v2595, -0.00073499064
        %v2598 = vmul.f32 %v2596, %v2580
        %v2599 = vmul.f32 %v2597, %v2581
        %v2600 = vadd.f32 %v2598, -0.0029546
        %v2601 = vadd.f32 %v2599, -0.0029546
        %v2602 = vmul.f32 %v2600, %v2580
        %v2603 = vmul.f32 %v2601, %v2581
        %v2604 = vadd.f32 %v2602, -0.016096033
        %v2605 = vadd.f32 %v2603, -0.016096033
        %v2606 = vmul.f32 %v2578, %v2604
        %v2607 = vmul.f32 %v2579, %v2605
        %v2608 = vmul.f32 %v2580, -1.45660715e-05
        %v2609 = vmul.f32 %v2581, -1.45660715e-05
        %v2610 = vadd.f32 %v2608, -0.00021337405
        %v2611 = vadd.f32 %v2609, -0.00021337405
        %v2612 = vmul.f32 %v2610, %v2580
        %v2613 = vmul.f32 %v2611, %v2581
        %v2614 = vadd.f32 %v2612, -0.001682827
        %v2615 = vadd.f32 %v2613, -0.001682827
        %v2616 = vmul.f32 %v2614, %v2580
        %v2617 = vmul.f32 %v2615, %v2581
        %v2618 = vadd.f32 %v2616, -0.0073733293
        %v2619 = vadd.f32 %v2617, -0.0073733293
        %v2620 = vmul.f32 %v2618, %v2580
        %v2621 = vmul.f32 %v2619, %v2581
        %v2622 = vadd.f32 %v2620, -0.014264739
        %v2623 = vadd.f32 %v2621, -0.014264739
        %v2624 = vrcp.pop %v2622
        %v2625 = vmul.f32 %v2622, %v2624
        %v2626 = vsub.f32 1.0, %v2625
        %v2627 = vmul.f32 %v2624, %v2626
        %v2628 = vadd.f32 %v2624, %v2627
        %vm2629 = vweird.f32 %v2622
        %vm2630 = vweird.f32 %v2624
        %vm2631 = vmor %vm2629, %vm2630
        %v2632 = vsel %vm2631, %v2624, %v2628
        %v2633 = vand.u32 2147483647, %v2622
        %vm2634 = vcmp.eq.f32.partialorder %v2633, 8.507059e+37
        %v2635 = vand.u32 %v2622, 2147483648
        %v2636 = vor.u32 1.1754944e-38, %v2635
        %v2637 = vsel %vm2634, %v2636, %v2632
        %v2638 = vmul.f32 %v2606, %v2637
        %v2639 = vrcp.pop %v2623
        %v2640 = vmul.f32 %v2623, %v2639
        %v2641 = vsub.f32 1.0, %v2640
        %v2642 = vmul.f32 %v2639, %v2641
        %v2643 = vadd.f32 %v2639, %v2642
        %vm2644 = vweird.f32 %v2623
        %vm2645 = vweird.f32 %v2639
        %vm2646 = vmor %vm2644, %vm2645
        %v2647 = vsel %vm2646, %v2639, %v2643
        %v2648 = vand.u32 2147483647, %v2623
        %vm2649 = vcmp.eq.f32.partialorder %v2648, 8.507059e+37
        %v2650 = vand.u32 %v2623, 2147483648
        %v2651 = vor.u32 1.1754944e-38, %v2650
        %v2652 = vsel %vm2649, %v2651, %v2647
        %v2653 = vmul.f32 %v2607, %v2652
        %v2654 = vadd.f32 %v2638, 1.0
        %v2655 = vadd.f32 %v2653, 1.0
        %v2656 = vmul.f32 %v2572, %v2654
        %v2657 = vmul.f32 %v2573, %v2655
        %v2658 = vld [vmem:[%s1028] sm:$0xf]
        %v2659 = vld [vmem:[%s1028 + $0x4] sm:$0xf]
        %v2660 = vld [vmem:[%s1028 + $0x8] sm:$0xf]
        %v2661 = vld [vmem:[%s1028 + $0xc] sm:$0xf]
        %v2662 = vld [vmem:[%s1028 + $0x10] sm:$0xf]
        %v2663 = vld [vmem:[%s1028 + $0x14] sm:$0xf]
        %v2664 = vld [vmem:[%s1028 + $0x18] sm:$0xf]
        %v2665 = vld [vmem:[%s1028 + $0x1c] sm:$0xf]
        %v2666 = vld [vmem:[%s1028 + $0x20] sm:$0xf]
        %v2667 = vld [vmem:[%s1028 + $0x24] sm:$0xf]
        %v2668 = vld [vmem:[%s1028 + $0x28] sm:$0xf]
        %v2669 = vld [vmem:[%s1028 + $0x2c] sm:$0xf]
        %v2670 = vld [vmem:[%s1028 + $0x30] sm:$0xf]
        %v2671 = vld [vmem:[%s1028 + $0x34] sm:$0xf]
        %v2672 = vld [vmem:[%s1028 + $0x38] sm:$0xf]
        %v2673 = vld [vmem:[%s1028 + $0x3c] sm:$0xf]
        %v2674 = vld [vmem:[%s1028 + $0x40] sm:$0xf]
        %v2675 = vld [vmem:[%s1028 + $0x44] sm:$0xf]
        %v2676 = vld [vmem:[%s1028 + $0x48] sm:$0xf]
        %v2677 = vld [vmem:[%s1028 + $0x4c] sm:$0xf]
        %v2678 = vld [vmem:[%s1028 + $0x50] sm:$0xf]
        %v2679 = vld [vmem:[%s1028 + $0x54] sm:$0xf]
        %v2680 = vld [vmem:[%s1028 + $0x58] sm:$0xf]
        %v2681 = vld [vmem:[%s1028 + $0x5c] sm:$0xf]
        %v2682 = vld [vmem:[%s1028 + $0x60] sm:$0xf]
        %v2683 = vld [vmem:[%s1028 + $0x64] sm:$0xf]
        %v2684 = vld [vmem:[%s1028 + $0x68] sm:$0xf]
        %v2685 = vld [vmem:[%s1028 + $0x6c] sm:$0xf]
        %v2686 = vld [vmem:[%s1028 + $0x70] sm:$0xf]
        %v2687 = vld [vmem:[%s1028 + $0x74] sm:$0xf]
        %v2688 = vld [vmem:[%s1028 + $0x78] sm:$0xf]
        %v2689 = vld [vmem:[%s1028 + $0x7c] sm:$0xf]
        %v2690 = vpack.c.bf16 %v2656, %v2656
        %v2691 = vpack.c.bf16 %v2657, %v2657
        %v2724 = vunpack.c.l.b16 %v2658
        %v2725 = vunpack.c.l.b16 %v2659
        %v2726 = vunpack.c.l.b16 %v2660
        %v2727 = vunpack.c.l.b16 %v2661
        %v2728 = vunpack.c.l.b16 %v2662
        %v2729 = vunpack.c.l.b16 %v2663
        %v2730 = vunpack.c.l.b16 %v2664
        %v2731 = vunpack.c.l.b16 %v2665
        %v2732 = vunpack.c.l.b16 %v2666
        %v2733 = vunpack.c.l.b16 %v2667
        %v2734 = vunpack.c.l.b16 %v2668
        %v2735 = vunpack.c.l.b16 %v2669
        %v2736 = vunpack.c.l.b16 %v2670
        %v2737 = vunpack.c.l.b16 %v2671
        %v2738 = vunpack.c.l.b16 %v2672
        %v2739 = vunpack.c.l.b16 %v2673
        %v2740 = vunpack.c.l.b16 %v2674
        %v2741 = vunpack.c.l.b16 %v2675
        %v2742 = vunpack.c.l.b16 %v2676
        %v2743 = vunpack.c.l.b16 %v2677
        %v2744 = vunpack.c.l.b16 %v2678
        %v2745 = vunpack.c.l.b16 %v2679
        %v2746 = vunpack.c.l.b16 %v2680
        %v2747 = vunpack.c.l.b16 %v2681
        %v2748 = vunpack.c.l.b16 %v2682
        %v2749 = vunpack.c.l.b16 %v2683
        %v2750 = vunpack.c.l.b16 %v2684
        %v2751 = vunpack.c.l.b16 %v2685
        %v2752 = vunpack.c.l.b16 %v2686
        %v2753 = vunpack.c.l.b16 %v2687
        %v2754 = vunpack.c.l.b16 %v2688
        %v2755 = vunpack.c.l.b16 %v2689
        %v2756 = vpack.c.b16 %v2725, %v2724
        %v2757 = vpack.c.b16 %v2727, %v2726
        %v2758 = vpack.c.b16 %v2729, %v2728
        %v2759 = vpack.c.b16 %v2731, %v2730
        %v2760 = vpack.c.b16 %v2733, %v2732
        %v2761 = vpack.c.b16 %v2735, %v2734
        %v2762 = vpack.c.b16 %v2737, %v2736
        %v2763 = vpack.c.b16 %v2739, %v2738
        %v2764 = vpack.c.b16 %v2741, %v2740
        %v2765 = vpack.c.b16 %v2743, %v2742
        %v2766 = vpack.c.b16 %v2745, %v2744
        %v2767 = vpack.c.b16 %v2747, %v2746
        %v2768 = vpack.c.b16 %v2749, %v2748
        %v2769 = vpack.c.b16 %v2751, %v2750
        %v2770 = vpack.c.b16 %v2753, %v2752
        %v2771 = vpack.c.b16 %v2755, %v2754
        %2788 = vmatpush.bf16.msra.mxu0 %v2763
        %2789 = vmatpush.bf16.msra.mxu0 %v2762
        %2790 = vmatpush.bf16.msra.mxu0 %v2761
        %2791 = vmatpush.bf16.msra.mxu0 %v2760
        %2792 = vmatpush.bf16.msra.mxu0 %v2759
        %2793 = vmatpush.bf16.msra.mxu0 %v2758
        %2794 = vmatpush.bf16.msra.mxu0 %v2757
        %2795 = vmatpush.bf16.msra.mxu0 %v2756
        %2796 = vmatmul.bf16.gmra.mxu0 %v2690
        %v2797 = vpop.f32.mrf.mxu0
        %v2798 = vadd.f32 0.0, %v2797
        %v2799 = vpop.f32.mrf.mxu0
        %2800 = vdwg.mxu0
        %2801 = vmatpush.bf16.msra.mxu0 %v2771
        %2802 = vmatpush.bf16.msra.mxu0 %v2770
        %2803 = vmatpush.bf16.msra.mxu0 %v2769
        %2804 = vmatpush.bf16.msra.mxu0 %v2768
        %2805 = vmatpush.bf16.msra.mxu0 %v2767
        %2806 = vmatpush.bf16.msra.mxu0 %v2766
        %2807 = vmatpush.bf16.msra.mxu0 %v2765
        %2808 = vmatpush.bf16.msra.mxu0 %v2764
        %2809 = vmatmul.bf16.gmra.mxu0 %v2691
        %v2810 = vpop.f32.mrf.mxu0
        %v2811 = vadd.f32 %v2798, %v2810
        %v2812 = vpop.f32.mrf.mxu0
        %2813 = vdwg.mxu0
        %v2814 = vadd.f32 %v2410, %v2811
        %v2815 = vld [vmem:[%s1262] sm:$0x1]
        %v2817 = vperm.slane %v2815, 0
        %v2819 = vadd.f32 %v2814, %v2817
        %2820 = vst [vmem:[#allocation2] sm:$0x3] %v2819
        %p2821 = scmp.eq.s32.totalorder %s46, 3
        // Predicated region
        $region141: #{whisper_decoder_with_past.1} parent=123 // pred_check
          %p2822 = pneg %p2821
        $region142: #{whisper_decoder_with_past.1} parent=123 // pred_check_branch
          %2824 = sbr.rel (%p2822) target = $region144
        $region143: #{whisper_decoder_with_past.1} parent=123 // pred_region
          %v2825 = vld [vmem:[%s23] sm:$0x1]
          %v2826 = vld [vmem:[%s24] sm:$0x1]
          %v2827 = vsel %vm1282, %v2819, 0.0
          %2828 = vadd.xlane.f32.xlu0 %v2827
          %v2829 = vpop.xlane.xlu0 %2828
          %v2830 = vmul.f32 %v2829, %v1292
          %v2831 = vsub.f32 %v2819, %v2830
          %v2832 = vmul.f32 %v2831, %v2831
          %v2833 = vsel %vm1282, %v2832, 0.0
          %2834 = vadd.xlane.f32.xlu0 %v2833
          %v2835 = vpop.xlane.xlu0 %2834
          %v2836 = vmul.f32 %v2835, %v1292
          %v2837 = vadd.f32 %v2836, 1e-05
          %v2838 = vrsqrt.pop %v2837
          %v2839 = vmul.f32 %v2838, %v2837
          %v2840 = vmul.f32 %v2839, %v2838
          %v2841 = vmul.f32 0.5, %v2840
          %v2842 = vsub.f32 1.5, %v2841
          %v2843 = vmul.f32 %v2838, %v2842
          %vm2844 = vweird.f32 %v2837
          %vm2845 = vweird.f32 %v2838
          %vm2846 = vmor %vm2844, %vm2845
          %v2847 = vsel %vm2846, %v2838, %v2843
          %v2848 = vmul.f32 %v2831, %v2847
          %v2850 = vperm.slane %v2825, 0
          %v2852 = vmul.f32 %v2848, %v2850
          %v2854 = vperm.slane %v2826, 0
          %v2856 = vadd.f32 %v2852, %v2854
          %v2857 = vpack.c.bf16 %v2856, %v2856
          %v2858 = vld [vmem:[%s25] sm:$0xf]
          %v2859 = vld [vmem:[%s25 + $0x4] sm:$0xf]
          %v2860 = vld [vmem:[%s25 + $0x8] sm:$0xf]
          %v2861 = vld [vmem:[%s25 + $0xc] sm:$0xf]
          %v2862 = vld [vmem:[%s25 + $0x10] sm:$0xf]
          %v2863 = vld [vmem:[%s25 + $0x14] sm:$0xf]
          %v2864 = vld [vmem:[%s25 + $0x18] sm:$0xf]
          %v2865 = vld [vmem:[%s25 + $0x1c] sm:$0xf]
          %v2866 = vld [vmem:[%s25 + $0x20] sm:$0xf]
          %v2867 = vld [vmem:[%s25 + $0x24] sm:$0xf]
          %v2868 = vld [vmem:[%s25 + $0x28] sm:$0xf]
          %v2869 = vld [vmem:[%s25 + $0x2c] sm:$0xf]
          %v2870 = vld [vmem:[%s25 + $0x30] sm:$0xf]
          %v2871 = vld [vmem:[%s25 + $0x34] sm:$0xf]
          %v2872 = vld [vmem:[%s25 + $0x38] sm:$0xf]
          %v2873 = vld [vmem:[%s25 + $0x3c] sm:$0xf]
          %v2874 = vld [vmem:[%s25 + $0x40] sm:$0xf]
          %v2875 = vld [vmem:[%s25 + $0x44] sm:$0xf]
          %v2876 = vld [vmem:[%s25 + $0x48] sm:$0xf]
          %v2877 = vld [vmem:[%s25 + $0x4c] sm:$0xf]
          %v2878 = vld [vmem:[%s25 + $0x50] sm:$0xf]
          %v2879 = vld [vmem:[%s25 + $0x54] sm:$0xf]
          %v2880 = vld [vmem:[%s25 + $0x58] sm:$0xf]
          %v2881 = vld [vmem:[%s25 + $0x5c] sm:$0xf]
          %v2882 = vld [vmem:[%s25 + $0x60] sm:$0xf]
          %v2883 = vld [vmem:[%s25 + $0x64] sm:$0xf]
          %v2884 = vld [vmem:[%s25 + $0x68] sm:$0xf]
          %v2885 = vld [vmem:[%s25 + $0x6c] sm:$0xf]
          %v2886 = vld [vmem:[%s25 + $0x70] sm:$0xf]
          %v2887 = vld [vmem:[%s25 + $0x74] sm:$0xf]
          %v2888 = vld [vmem:[%s25 + $0x78] sm:$0xf]
          %v2889 = vld [vmem:[%s25 + $0x7c] sm:$0xf]
          %v2890 = vld [vmem:[%s25 + $0x80] sm:$0xf]
          %v2891 = vld [vmem:[%s25 + $0x84] sm:$0xf]
          %v2892 = vld [vmem:[%s25 + $0x88] sm:$0xf]
          %v2893 = vld [vmem:[%s25 + $0x8c] sm:$0xf]
          %v2894 = vld [vmem:[%s25 + $0x90] sm:$0xf]
          %v2895 = vld [vmem:[%s25 + $0x94] sm:$0xf]
          %v2896 = vld [vmem:[%s25 + $0x98] sm:$0xf]
          %v2897 = vld [vmem:[%s25 + $0x9c] sm:$0xf]
          %v2898 = vld [vmem:[%s25 + $0xa0] sm:$0xf]
          %v2899 = vld [vmem:[%s25 + $0xa4] sm:$0xf]
          %v2900 = vld [vmem:[%s25 + $0xa8] sm:$0xf]
          %v2901 = vld [vmem:[%s25 + $0xac] sm:$0xf]
          %v2902 = vld [vmem:[%s25 + $0xb0] sm:$0xf]
          %v2903 = vld [vmem:[%s25 + $0xb4] sm:$0xf]
          %v2904 = vld [vmem:[%s25 + $0xb8] sm:$0xf]
          %v2905 = vld [vmem:[%s25 + $0xbc] sm:$0xf]
          %v2954 = vunpack.c.l.b16 %v2858
          %v2955 = vunpack.c.l.b16 %v2859
          %v2956 = vunpack.c.l.b16 %v2860
          %v2957 = vunpack.c.l.b16 %v2861
          %v2958 = vunpack.c.l.b16 %v2862
          %v2959 = vunpack.c.l.b16 %v2863
          %v2960 = vunpack.c.l.b16 %v2864
          %v2961 = vunpack.c.l.b16 %v2865
          %v2962 = vunpack.c.l.b16 %v2866
          %v2963 = vunpack.c.l.b16 %v2867
          %v2964 = vunpack.c.l.b16 %v2868
          %v2965 = vunpack.c.l.b16 %v2869
          %v2966 = vunpack.c.l.b16 %v2870
          %v2967 = vunpack.c.l.b16 %v2871
          %v2968 = vunpack.c.l.b16 %v2872
          %v2969 = vunpack.c.l.b16 %v2873
          %v2970 = vunpack.c.l.b16 %v2874
          %v2971 = vunpack.c.l.b16 %v2875
          %v2972 = vunpack.c.l.b16 %v2876
          %v2973 = vunpack.c.l.b16 %v2877
          %v2974 = vunpack.c.l.b16 %v2878
          %v2975 = vunpack.c.l.b16 %v2879
          %v2976 = vunpack.c.l.b16 %v2880
          %v2977 = vunpack.c.l.b16 %v2881
          %v2978 = vunpack.c.l.b16 %v2882
          %v2979 = vunpack.c.l.b16 %v2883
          %v2980 = vunpack.c.l.b16 %v2884
          %v2981 = vunpack.c.l.b16 %v2885
          %v2982 = vunpack.c.l.b16 %v2886
          %v2983 = vunpack.c.l.b16 %v2887
          %v2984 = vunpack.c.l.b16 %v2888
          %v2985 = vunpack.c.l.b16 %v2889
          %v2986 = vunpack.c.l.b16 %v2890
          %v2987 = vunpack.c.l.b16 %v2891
          %v2988 = vunpack.c.l.b16 %v2892
          %v2989 = vunpack.c.l.b16 %v2893
          %v2990 = vunpack.c.l.b16 %v2894
          %v2991 = vunpack.c.l.b16 %v2895
          %v2992 = vunpack.c.l.b16 %v2896
          %v2993 = vunpack.c.l.b16 %v2897
          %v2994 = vunpack.c.l.b16 %v2898
          %v2995 = vunpack.c.l.b16 %v2899
          %v2996 = vunpack.c.l.b16 %v2900
          %v2997 = vunpack.c.l.b16 %v2901
          %v2998 = vunpack.c.l.b16 %v2902
          %v2999 = vunpack.c.l.b16 %v2903
          %v3000 = vunpack.c.l.b16 %v2904
          %v3001 = vunpack.c.l.b16 %v2905
          %v3002 = vpack.c.b16 %v2955, %v2954
          %v3003 = vpack.c.b16 %v2957, %v2956
          %v3004 = vpack.c.b16 %v2959, %v2958
          %v3005 = vpack.c.b16 %v2961, %v2960
          %v3006 = vpack.c.b16 %v2963, %v2962
          %v3007 = vpack.c.b16 %v2965, %v2964
          %v3008 = vpack.c.b16 %v2967, %v2966
          %v3009 = vpack.c.b16 %v2969, %v2968
          %v3010 = vpack.c.b16 %v2971, %v2970
          %v3011 = vpack.c.b16 %v2973, %v2972
          %v3012 = vpack.c.b16 %v2975, %v2974
          %v3013 = vpack.c.b16 %v2977, %v2976
          %v3014 = vpack.c.b16 %v2979, %v2978
          %v3015 = vpack.c.b16 %v2981, %v2980
          %v3016 = vpack.c.b16 %v2983, %v2982
          %v3017 = vpack.c.b16 %v2985, %v2984
          %v3018 = vpack.c.b16 %v2987, %v2986
          %v3019 = vpack.c.b16 %v2989, %v2988
          %v3020 = vpack.c.b16 %v2991, %v2990
          %v3021 = vpack.c.b16 %v2993, %v2992
          %v3022 = vpack.c.b16 %v2995, %v2994
          %v3023 = vpack.c.b16 %v2997, %v2996
          %v3024 = vpack.c.b16 %v2999, %v2998
          %v3025 = vpack.c.b16 %v3001, %v3000
          %3050 = vmatpush.bf16.xpose.msra.mxu0 %v3009
          %3051 = vmatpush.bf16.xpose.msra.mxu0 %v3008
          %3052 = vmatpush.bf16.xpose.msra.mxu0 %v3007
          %3053 = vmatpush.bf16.xpose.msra.mxu0 %v3006
          %3054 = vmatpush.bf16.xpose.msra.mxu0 %v3005
          %3055 = vmatpush.bf16.xpose.msra.mxu0 %v3004
          %3056 = vmatpush.bf16.xpose.msra.mxu0 %v3003
          %3057 = vmatpush.bf16.xpose.msra.mxu0 %v3002
          %3058 = vmatmul.bf16.gmra.mxu0 %v2857
          %v3059 = vpop.f32.mrf.mxu0
          %v3060 = vadd.f32 0.0, %v3059
          %v3061 = vpop.f32.mrf.mxu0
          %3062 = vdwg.mxu0
          %3063 = vmatpush.bf16.xpose.msra.mxu0 %v3017
          %3064 = vmatpush.bf16.xpose.msra.mxu0 %v3016
          %3065 = vmatpush.bf16.xpose.msra.mxu0 %v3015
          %3066 = vmatpush.bf16.xpose.msra.mxu0 %v3014
          %3067 = vmatpush.bf16.xpose.msra.mxu0 %v3013
          %3068 = vmatpush.bf16.xpose.msra.mxu0 %v3012
          %3069 = vmatpush.bf16.xpose.msra.mxu0 %v3011
          %3070 = vmatpush.bf16.xpose.msra.mxu0 %v3010
          %3071 = vmatmul.bf16.gmra.mxu0 %v2857
          %v3072 = vpop.f32.mrf.mxu0
          %v3073 = vadd.f32 0.0, %v3072
          %v3074 = vpop.f32.mrf.mxu0
          %3075 = vdwg.mxu0
          %3076 = vmatpush.bf16.xpose.msra.mxu0 %v3025
          %3077 = vmatpush.bf16.xpose.msra.mxu0 %v3024
          %3078 = vmatpush.bf16.xpose.msra.mxu0 %v3023
          %3079 = vmatpush.bf16.xpose.msra.mxu0 %v3022
          %3080 = vmatpush.bf16.xpose.msra.mxu0 %v3021
          %3081 = vmatpush.bf16.xpose.msra.mxu0 %v3020
          %3082 = vmatpush.bf16.xpose.msra.mxu0 %v3019
          %3083 = vmatpush.bf16.xpose.msra.mxu0 %v3018
          %3084 = vmatmul.bf16.gmra.mxu0 %v2857
          %v3085 = vpop.f32.mrf.mxu0
          %v3086 = vadd.f32 0.0, %v3085
          %v3087 = vpop.f32.mrf.mxu0
          %3088 = vdwg.mxu0
          %v3092 = vrot.slane %v3073, 6
          %v3093 = vrot.slane %v3086, 4
          %v3094 = vsel %vm1282, %v3060, %v3092
          %vm3095 = vcmask 1043456
          %v3096 = vsel %vm3095, %v3094, %v3093
          %3098 = vst [vmem:[%s26] sm:$0x3f] %v3096
        $region144: #{whisper_decoder_with_past.1} parent=123 // pred_fallthru
          _
        %p3099 = scmp.lt.s32.totalorder %s46, 3
        %s3100 = scalar_select %p3099, %s46, 3
        %s3101 = smul.addr %s3100, 4
        %s3102 = smul.addr %s3101, 8
        %s3103 = scalar_lea.vmem %s27, %s3102
        %p3104 = scmp.lt.s32.totalorder %s46, 3
        %s3105 = scalar_select %p3104, %s46, 3
        %s3106 = smul.addr %s3105, 4
        %s3107 = smul.addr %s3106, 8
        %s3108 = scalar_lea.vmem %s28, %s3107
        // Predicated region
        $region145: #{whisper_decoder_with_past.1} parent=123 // pred_check
          %p3109 = pneg %p715
        $region146: #{whisper_decoder_with_past.1} parent=123 // pred_check_branch
          %3111 = sbr.rel (%p3109) target = $region148
        $region147: #{whisper_decoder_with_past.1} parent=123 // pred_region
          _
        $region148: #{whisper_decoder_with_past.1} parent=123 // pred_fallthru
          _
        // Predicated region
        $region149: #{whisper_decoder_with_past.1} parent=123 // pred_check
          %p3112 = pneg %p741
        $region150: #{whisper_decoder_with_past.1} parent=123 // pred_check_branch
          %3114 = sbr.rel (%p3112) target = $region152
        $region151: #{whisper_decoder_with_past.1} parent=123 // pred_region
          _
        $region152: #{whisper_decoder_with_past.1} parent=123 // pred_fallthru
          _
        // Predicated region
        $region153: #{whisper_decoder_with_past.1} parent=123 // pred_check
          %p3115 = pneg %p767
        $region154: #{whisper_decoder_with_past.1} parent=123 // pred_check_branch
          %3117 = sbr.rel (%p3115) target = $region156
        $region155: #{whisper_decoder_with_past.1} parent=123 // pred_region
          _
        $region156: #{whisper_decoder_with_past.1} parent=123 // pred_fallthru
          _
        // Predicated region
        $region157: #{whisper_decoder_with_past.1} parent=123 // pred_check
          %p3118 = pneg %p715
        $region158: #{whisper_decoder_with_past.1} parent=123 // pred_check_branch
          %3120 = sbr.rel (%p3118) target = $region160
        $region159: #{whisper_decoder_with_past.1} parent=123 // pred_region
          _
        $region160: #{whisper_decoder_with_past.1} parent=123 // pred_fallthru
          _
      $region124: #{whisper_decoder_with_past.1} parent=5 // pred_fallthru
        _
      %p3121 = scmp.le.s32.totalorder 2, %s41
      // Predicated region
      $region161: #{whisper_decoder_with_past.1} parent=5 // pred_check
        %p3122 = pneg %p3121
      $region162: #{whisper_decoder_with_past.1} parent=5 // pred_check_branch
        %3124 = sbr.rel (%p3122) target = $region164
      $region163: #{whisper_decoder_with_past.1} parent=5 // pred_region
        %s3125 = ssub.s32 %s41, 2
        // Predicated region
        $region165: #{whisper_decoder_with_past.1} parent=163 // pred_check
          %p3126 = pneg %p747
        $region166: #{whisper_decoder_with_past.1} parent=163 // pred_check_branch
          %3128 = sbr.rel (%p3126) target = $region168
        $region167: #{whisper_decoder_with_past.1} parent=163 // pred_region
          %p3129 = scmp.lt.s32.totalorder %s47, 3
          %s3130 = scalar_select %p3129, %s47, 3
          %s3131 = smul.addr %s3130, 4
          %s3132 = smul.addr %s3131, 8
          %s3133 = scalar_lea.vmem %s27, %s3132
        $region168: #{whisper_decoder_with_past.1} parent=163 // pred_fallthru
          _
        // Predicated region
        $region169: #{whisper_decoder_with_past.1} parent=163 // pred_check
          %p3134 = pneg %p773
        $region170: #{whisper_decoder_with_past.1} parent=163 // pred_check_branch
          %3136 = sbr.rel (%p3134) target = $region172
        $region171: #{whisper_decoder_with_past.1} parent=163 // pred_region
          %p3137 = scmp.lt.s32.totalorder %s47, 3
          %s3138 = scalar_select %p3137, %s47, 3
          %s3139 = smul.addr %s3138, 4
          %s3140 = smul.addr %s3139, 8
          %s3141 = scalar_lea.vmem %s28, %s3140
        $region172: #{whisper_decoder_with_past.1} parent=163 // pred_fallthru
          _
      $region164: #{whisper_decoder_with_past.1} parent=5 // pred_fallthru
        _
    $region6: #{whisper_decoder_with_past.1} parent=1 // loop_footer
      %s45 = sadd.s32 1, %s41
    $region7: #{whisper_decoder_with_past.1} parent=1 // loop_footer_branch
      %40 = sbr.rel target = $region3
    $region8: #{whisper_decoder_with_past.1} parent=1 // loop_exit
      _
    %3142 = vsyncpa [#allocation5], 1
    %s3143 = scalar_lea.sflag [#allocation5], 1
    %3144 = vsyncpa %s3143, 1
    %3145 = vsyncpa [#allocation7], 1
    %s3146 = scalar_lea.sflag [#allocation7], 1
    %3147 = vsyncpa %s3146, 1

</llo_original>
